<compile_context>
chip_gen: v7x
topology: tpu7x:2x2x1
jax: 0.10.0
libtpu: 0.0.40
codegen_flags: <defaults>
</compile_context>

<pallas_src>
import functools
import math

import jax
import jax.numpy as jnp
from jax.experimental import pallas as pl
from jax.experimental.pallas import tpu as pltpu  # noqa: F401  (TPU backend assumed)


# ------------------------------ fused kernel --------------------------------

def _gelu(y):
    c = jnp.float32(math.sqrt(2.0 / math.pi))
    return 0.5 * y * (1.0 + jnp.tanh(c * (y + 0.044715 * y * y * y)))


def _layernorm(x, g, b, eps):
    mean = jnp.mean(x, axis=-1, keepdims=True)
    xc = x - mean
    var = jnp.mean(xc * xc, axis=-1, keepdims=True)
    return xc * jax.lax.rsqrt(var + eps) * g + b


def _bert_fused_kernel(
    # activations
    x_ref, pos_ref,
    # embedding params
    emb_w_ref, emb_b_ref, emb_g_ref, emb_beta_ref,
    # stacked per-layer encoder params (leading dim = layer)
    wqkv_ref, bqkv_ref, wo_ref, bo_ref, ln1g_ref, ln1b_ref,
    w1_ref, b1_ref, w2_ref, b2_ref, ln2g_ref, ln2b_ref,
    # MLM head params
    tw_ref, tb_ref, tg_ref, tbeta_ref, decw_ref, decb_ref,
    # output
    out_ref,
    *, B, T, H, n_heads, n_layers, eps):
    """Whole BERT forward in a single kernel body; everything stays in VMEM."""
    Dh = H // n_heads
    M = B * T

    # ---- embeddings: linear projection + position embedding + LayerNorm ----
    x = x_ref[...]
    h = jnp.dot(x, emb_w_ref[...], preferred_element_type=jnp.float32)
    h = h + emb_b_ref[...] + pos_ref[...]
    h = _layernorm(h, emb_g_ref[...], emb_beta_ref[...], eps)

    hiddens = [h]

    # ---- encoder layers (statically unrolled, weights indexed per layer) ----
    for l in range(n_layers):
        # fused QKV projection (1/sqrt(Dh) already folded into Wq/bq)
        qkv = jnp.dot(h, wqkv_ref[l],
                      preferred_element_type=jnp.float32) + bqkv_ref[l]

        ctx_heads = []
        for hh in range(n_heads):
            base = hh * Dh
            qh = qkv[:, base:base + Dh].reshape(B, T, Dh)
            kh = qkv[:, H + base:H + base + Dh].reshape(B, T, Dh)
            vh = qkv[:, 2 * H + base:2 * H + base + Dh].reshape(B, T, Dh)

            s = jnp.einsum("bqd,bkd->bqk", qh, kh,
                           preferred_element_type=jnp.float32)
            s = s - jnp.max(s, axis=-1, keepdims=True)
            p = jnp.exp(s)
            p = p * pl.reciprocal(jnp.sum(p, axis=-1, keepdims=True),
                                  approx=True)
            ch = jnp.einsum("bqk,bkd->bqd", p, vh,
                            preferred_element_type=jnp.float32)
            ctx_heads.append(ch.reshape(M, Dh))
        ctx = jnp.concatenate(ctx_heads, axis=-1)            # [M, H]

        attn_out = jnp.dot(ctx, wo_ref[l],
                           preferred_element_type=jnp.float32) + bo_ref[l]
        h = _layernorm(h + attn_out, ln1g_ref[l], ln1b_ref[l], eps)  # fused residual

        ffn = _gelu(jnp.dot(h, w1_ref[l],
                            preferred_element_type=jnp.float32) + b1_ref[l])
        ffn = jnp.dot(ffn, w2_ref[l],
                      preferred_element_type=jnp.float32) + b2_ref[l]
        h = _layernorm(h + ffn, ln2g_ref[l], ln2b_ref[l], eps)       # fused residual

        hiddens.append(h)

    # ---- MLM head, applied once to all (n_layers + 1) hidden states ----
    hs = jnp.concatenate(hiddens, axis=0)                    # [(L+1)*M, H]
    t = _gelu(jnp.dot(hs, tw_ref[...],
                      preferred_element_type=jnp.float32) + tb_ref[...])
    t = _layernorm(t, tg_ref[...], tbeta_ref[...], eps)
    logits = jnp.dot(t, decw_ref[...],
                     preferred_element_type=jnp.float32) + decb_ref[...]
    out_ref[...] = logits.astype(out_ref.dtype)              # lane-dense (128) store


# ------------------------------- model glue ---------------------------------

class Config:
    input_feats = 33      # raw x feature dim; forward slices [:, :, 1:] -> 32
    hidden = 32
    heads = 4
    intermediate = 64
    layers = 2
    vocab_size = 48
    vocab_pad = 128       # decoder output padded to a full 128-lane vreg width
    max_pos = 16
    excessive_output = False


def init_params(key, cfg):
    scale = 0.02

    def nrm(k, shape):
        return scale * jax.random.normal(k, shape, dtype=jnp.float32)

    keys = iter(jax.random.split(key, 128))
    H, I, V = cfg.hidden, cfg.intermediate, cfg.vocab_size
    params = {
        "emb_w": nrm(next(keys), (cfg.input_feats - 1, H)),
        "emb_b": jnp.zeros((H,), jnp.float32),
        "pos_emb": nrm(next(keys), (cfg.max_pos, H)),
        "emb_ln_g": jnp.ones((H,), jnp.float32),
        "emb_ln_b": jnp.zeros((H,), jnp.float32),
        "layers": [],
        "cls": {
            "t_w": nrm(next(keys), (H, H)),
            "t_b": jnp.zeros((H,), jnp.float32),
            "t_ln_g": jnp.ones((H,), jnp.float32),
            "t_ln_b": jnp.zeros((H,), jnp.float32),
            "dec_w": nrm(next(keys), (H, V)),
            "dec_b": jnp.zeros((V,), jnp.float32),
        },
    }
    for _ in range(cfg.layers):
        params["layers"].append({
            "wq": nrm(next(keys), (H, H)), "bq": jnp.zeros((H,), jnp.float32),
            "wk": nrm(next(keys), (H, H)), "bk": jnp.zeros((H,), jnp.float32),
            "wv": nrm(next(keys), (H, H)), "bv": jnp.zeros((H,), jnp.float32),
            "wo": nrm(next(keys), (H, H)), "bo": jnp.zeros((H,), jnp.float32),
            "ln1_g": jnp.ones((H,), jnp.float32), "ln1_b": jnp.zeros((H,), jnp.float32),
            "w1": nrm(next(keys), (H, I)), "b1": jnp.zeros((I,), jnp.float32),
            "w2": nrm(next(keys), (I, H)), "b2": jnp.zeros((H,), jnp.float32),
            "ln2_g": jnp.ones((H,), jnp.float32), "ln2_b": jnp.zeros((H,), jnp.float32),
        })
    return params


def pack_params(params, cfg):
    """One-time repack: fuse QKV (+ fold attention scale), stack per-layer
    weights along a leading layer axis, pad the decoder to 128 output lanes."""
    H, V, Vp = cfg.hidden, cfg.vocab_size, cfg.vocab_pad
    Dh = H // cfg.heads
    q_scale = 1.0 / math.sqrt(Dh)
    lps = params["layers"]

    def row(v):                      # [N] -> [1, N] (2-D biases for the kernel)
        return v.reshape(1, -1)

    return {
        "emb_w": params["emb_w"],
        "emb_b": row(params["emb_b"]),
        "emb_ln_g": row(params["emb_ln_g"]),
        "emb_ln_b": row(params["emb_ln_b"]),
        "pos_emb": params["pos_emb"],
        "wqkv": jnp.stack([jnp.concatenate(
            [lp["wq"] * q_scale, lp["wk"], lp["wv"]], axis=1) for lp in lps]),
        "bqkv": jnp.stack([row(jnp.concatenate(
            [lp["bq"] * q_scale, lp["bk"], lp["bv"]])) for lp in lps]),
        "wo": jnp.stack([lp["wo"] for lp in lps]),
        "bo": jnp.stack([row(lp["bo"]) for lp in lps]),
        "ln1_g": jnp.stack([row(lp["ln1_g"]) for lp in lps]),
        "ln1_b": jnp.stack([row(lp["ln1_b"]) for lp in lps]),
        "w1": jnp.stack([lp["w1"] for lp in lps]),
        "b1": jnp.stack([row(lp["b1"]) for lp in lps]),
        "w2": jnp.stack([lp["w2"] for lp in lps]),
        "b2": jnp.stack([row(lp["b2"]) for lp in lps]),
        "ln2_g": jnp.stack([row(lp["ln2_g"]) for lp in lps]),
        "ln2_b": jnp.stack([row(lp["ln2_b"]) for lp in lps]),
        "t_w": params["cls"]["t_w"],
        "t_b": row(params["cls"]["t_b"]),
        "t_ln_g": row(params["cls"]["t_ln_g"]),
        "t_ln_b": row(params["cls"]["t_ln_b"]),
        # zero-pad decoder V -> Vp so the kernel's output store is lane-dense
        "dec_w": jnp.pad(params["cls"]["dec_w"], ((0, 0), (0, Vp - V))),
        "dec_b": row(jnp.pad(params["cls"]["dec_b"], (0, Vp - V))),
    }


def bert_forward(packed, x_batch, input_len, cfg, masked_LM=False):
    """Returns (prediction [B, V, T], list of (layers+1) predictions [B, V, T])."""
    del input_len  # TODO(synk): attention mask from input_len is not applied
    if not masked_LM:
        x_batch = x_batch[:, :, 1:]
    B, T, Fin = x_batch.shape
    H, V, Vp, L = cfg.hidden, cfg.vocab_size, cfg.vocab_pad, cfg.layers
    M = B * T

    x2d = x_batch.reshape(M, Fin)
    pos_full = jnp.tile(packed["pos_emb"][:T], (B, 1))       # [M, H]

    kernel = functools.partial(
        _bert_fused_kernel, B=B, T=T, H=H, n_heads=cfg.heads,
        n_layers=L, eps=1e-12)

    logits = pl.pallas_call(
        kernel,
        out_shape=jax.ShapeDtypeStruct(((L + 1) * M, Vp), jnp.float32),
    )(x2d, pos_full,
      packed["emb_w"], packed["emb_b"], packed["emb_ln_g"], packed["emb_ln_b"],
      packed["wqkv"], packed["bqkv"], packed["wo"], packed["bo"],
      packed["ln1_g"], packed["ln1_b"],
      packed["w1"], packed["b1"], packed["w2"], packed["b2"],
      packed["ln2_g"], packed["ln2_b"],
      packed["t_w"], packed["t_b"], packed["t_ln_g"], packed["t_ln_b"],
      packed["dec_w"], packed["dec_b"])

    # Drop the lane padding; cfg.excessive_output == False so the decoder
    # already produces exactly vocab_size real logits.
    preds = logits.reshape(L + 1, B, T, Vp)[..., :V]          # [(L+1), B, T, V]
    preds_perm = jnp.transpose(preds, (0, 1, 3, 2))           # one transpose for all outputs
    prediction = preds_perm[L]                                # == mlm_head(final hidden state)
    permuted_intermediate_pred = [preds_perm[j] for j in range(L + 1)]
    return prediction, permuted_intermediate_pred


# ---------------------------------- main -------------------------------------

if __name__ == "__main__":
    cfg = Config()
    B, T = 2, 8

    key = jax.random.PRNGKey(0)
    k_x, k_p = jax.random.split(key)
    x_batch = jax.random.normal(k_x, (B, T, cfg.input_feats), dtype=jnp.float32)
    input_len = jnp.array([T, T - 2], dtype=jnp.int32)

    params = init_params(k_p, cfg)
    packed = pack_params(params, cfg)

    prediction, intermediates = bert_forward(packed, x_batch, input_len, cfg,
                                             masked_LM=False)
    prediction = jax.block_until_ready(prediction)
    intermediates = [jax.block_until_ready(t) for t in intermediates]

    assert prediction.shape == (B, cfg.vocab_size, T), prediction.shape
    assert len(intermediates) == cfg.layers + 1
    for t in intermediates:
        assert t.shape == (B, cfg.vocab_size, T), t.shape
    assert bool(jnp.all(jnp.isfinite(prediction)))

    print("KERNEL_OK")
</pallas_src>

<mosaic_0001>
module attributes {stable_mosaic.version = 11 : i64} {
  func.func @_bert_fused_kernel(%arg0: memref<16x32xf32, #tpu.memory_space<vmem>>, %arg1: memref<16x32xf32, #tpu.memory_space<vmem>>, %arg2: memref<32x32xf32, #tpu.memory_space<vmem>>, %arg3: memref<1x32xf32, #tpu.memory_space<vmem>>, %arg4: memref<1x32xf32, #tpu.memory_space<vmem>>, %arg5: memref<1x32xf32, #tpu.memory_space<vmem>>, %arg6: memref<2x32x96xf32, #tpu.memory_space<vmem>>, %arg7: memref<2x1x96xf32, #tpu.memory_space<vmem>>, %arg8: memref<2x32x32xf32, #tpu.memory_space<vmem>>, %arg9: memref<2x1x32xf32, #tpu.memory_space<vmem>>, %arg10: memref<2x1x32xf32, #tpu.memory_space<vmem>>, %arg11: memref<2x1x32xf32, #tpu.memory_space<vmem>>, %arg12: memref<2x32x64xf32, #tpu.memory_space<vmem>>, %arg13: memref<2x1x64xf32, #tpu.memory_space<vmem>>, %arg14: memref<2x64x32xf32, #tpu.memory_space<vmem>>, %arg15: memref<2x1x32xf32, #tpu.memory_space<vmem>>, %arg16: memref<2x1x32xf32, #tpu.memory_space<vmem>>, %arg17: memref<2x1x32xf32, #tpu.memory_space<vmem>>, %arg18: memref<32x32xf32, #tpu.memory_space<vmem>>, %arg19: memref<1x32xf32, #tpu.memory_space<vmem>>, %arg20: memref<1x32xf32, #tpu.memory_space<vmem>>, %arg21: memref<1x32xf32, #tpu.memory_space<vmem>>, %arg22: memref<32x128xf32, #tpu.memory_space<vmem>>, %arg23: memref<1x128xf32, #tpu.memory_space<vmem>>, %arg24: memref<48x128xf32, #tpu.memory_space<vmem>>) attributes {dimension_semantics = [], scalar_prefetch = 0 : i64, scratch_operands = 0 : i64, tpu.core_type = #tpu.core_type<tc>} {
    %c0 = arith.constant 0 : index
    %c0_0 = arith.constant 0 : index
    %0 = vector.load %arg0[%c0, %c0_0] : memref<16x32xf32, #tpu.memory_space<vmem>>, vector<16x32xf32>
    %c0_1 = arith.constant 0 : index
    %c0_2 = arith.constant 0 : index
    %1 = vector.load %arg2[%c0_1, %c0_2] : memref<32x32xf32, #tpu.memory_space<vmem>>, vector<32x32xf32>
    %cst = arith.constant dense<0.000000e+00> : vector<16x32xf32>
    %2 = tpu.matmul %0, %1, %cst {dimension_numbers = #tpu.dot_dimension_numbers<[1], [0], [0], [1], [0, 0, 1, 1], [], []>} : vector<16x32xf32>, vector<32x32xf32>, vector<16x32xf32> -> vector<16x32xf32>
    %c0_3 = arith.constant 0 : index
    %c0_4 = arith.constant 0 : index
    %3 = vector.load %arg3[%c0_3, %c0_4] : memref<1x32xf32, #tpu.memory_space<vmem>>, vector<1x32xf32>
    %4 = vector.broadcast %3 : vector<1x32xf32> to vector<16x32xf32>
    %5 = arith.addf %2, %4 : vector<16x32xf32>
    %c0_5 = arith.constant 0 : index
    %c0_6 = arith.constant 0 : index
    %6 = vector.load %arg1[%c0_5, %c0_6] : memref<16x32xf32, #tpu.memory_space<vmem>>, vector<16x32xf32>
    %7 = arith.addf %5, %6 : vector<16x32xf32>
    %c0_7 = arith.constant 0 : index
    %c0_8 = arith.constant 0 : index
    %8 = vector.load %arg4[%c0_7, %c0_8] : memref<1x32xf32, #tpu.memory_space<vmem>>, vector<1x32xf32>
    %c0_9 = arith.constant 0 : index
    %c0_10 = arith.constant 0 : index
    %9 = vector.load %arg5[%c0_9, %c0_10] : memref<1x32xf32, #tpu.memory_space<vmem>>, vector<1x32xf32>
    %cst_11 = arith.constant dense<0.000000e+00> : vector<16xf32>
    %10 = vector.multi_reduction <add>, %7, %cst_11 [1] : vector<16x32xf32> to vector<16xf32>
    %11 = vector.shape_cast %10 : vector<16xf32> to vector<16x1xf32>
    %cst_12 = arith.constant 3.200000e+01 : f32
    %12 = vector.broadcast %cst_12 : f32 to vector<16x1xf32>
    %13 = arith.divf %11, %12 : vector<16x1xf32>
    %14 = vector.broadcast %13 : vector<16x1xf32> to vector<16x32xf32>
    %15 = arith.subf %7, %14 : vector<16x32xf32>
    %16 = arith.mulf %15, %15 : vector<16x32xf32>
    %cst_13 = arith.constant dense<0.000000e+00> : vector<16xf32>
    %17 = vector.multi_reduction <add>, %16, %cst_13 [1] : vector<16x32xf32> to vector<16xf32>
    %18 = vector.shape_cast %17 : vector<16xf32> to vector<16x1xf32>
    %cst_14 = arith.constant 3.200000e+01 : f32
    %19 = vector.broadcast %cst_14 : f32 to vector<16x1xf32>
    %20 = arith.divf %18, %19 : vector<16x1xf32>
    %cst_15 = arith.constant 9.99999996E-13 : f32
    %21 = vector.broadcast %cst_15 : f32 to vector<16x1xf32>
    %22 = arith.addf %20, %21 : vector<16x1xf32>
    %23 = math.rsqrt %22 : vector<16x1xf32>
    %24 = vector.broadcast %23 : vector<16x1xf32> to vector<16x32xf32>
    %25 = arith.mulf %15, %24 : vector<16x32xf32>
    %26 = vector.broadcast %8 : vector<1x32xf32> to vector<16x32xf32>
    %27 = arith.mulf %25, %26 : vector<16x32xf32>
    %28 = vector.broadcast %9 : vector<1x32xf32> to vector<16x32xf32>
    %29 = arith.addf %27, %28 : vector<16x32xf32>
    %c0_16 = arith.constant 0 : index
    %c0_17 = arith.constant 0 : index
    %c0_18 = arith.constant 0 : index
    %30 = vector.load %arg6[%c0_16, %c0_17, %c0_18] : memref<2x32x96xf32, #tpu.memory_space<vmem>>, vector<1x32x96xf32>
    %31 = vector.shape_cast %30 : vector<1x32x96xf32> to vector<32x96xf32>
    %cst_19 = arith.constant dense<0.000000e+00> : vector<16x96xf32>
    %32 = tpu.matmul %29, %31, %cst_19 {dimension_numbers = #tpu.dot_dimension_numbers<[1], [0], [0], [1], [0, 0, 1, 1], [], []>} : vector<16x32xf32>, vector<32x96xf32>, vector<16x96xf32> -> vector<16x96xf32>
    %c0_20 = arith.constant 0 : index
    %c0_21 = arith.constant 0 : index
    %c0_22 = arith.constant 0 : index
    %33 = vector.load %arg7[%c0_20, %c0_21, %c0_22] : memref<2x1x96xf32, #tpu.memory_space<vmem>>, vector<1x1x96xf32>
    %34 = vector.shape_cast %33 : vector<1x1x96xf32> to vector<1x96xf32>
    %35 = vector.broadcast %34 : vector<1x96xf32> to vector<16x96xf32>
    %36 = arith.addf %32, %35 : vector<16x96xf32>
    %37 = vector.extract_strided_slice %36 {offsets = [0, 0], sizes = [16, 8], strides = [1, 1]} : vector<16x96xf32> to vector<16x8xf32>
    %38 = vector.shape_cast %37 : vector<16x8xf32> to vector<2x8x8xf32>
    %39 = vector.extract_strided_slice %36 {offsets = [0, 32], sizes = [16, 8], strides = [1, 1]} : vector<16x96xf32> to vector<16x8xf32>
    %40 = vector.shape_cast %39 : vector<16x8xf32> to vector<2x8x8xf32>
    %41 = vector.extract_strided_slice %36 {offsets = [0, 64], sizes = [16, 8], strides = [1, 1]} : vector<16x96xf32> to vector<16x8xf32>
    %42 = vector.shape_cast %41 : vector<16x8xf32> to vector<2x8x8xf32>
    "tpu.trace_start"() <{level = 10 : i32, message = "bqd,bkd->bqk"}> : () -> ()
    %cst_23 = arith.constant dense<0.000000e+00> : vector<2x8x8xf32>
    %43 = tpu.matmul %38, %40, %cst_23 {dimension_numbers = #tpu.dot_dimension_numbers<[2], [2], [1], [1], [0, 0, 0, 1, 1, 1], [0], [0]>} : vector<2x8x8xf32>, vector<2x8x8xf32>, vector<2x8x8xf32> -> vector<2x8x8xf32>
    "tpu.trace_stop"() : () -> ()
    %cst_24 = arith.constant dense<0xFF800000> : vector<2x8xf32>
    %44 = vector.multi_reduction <maximumf>, %43, %cst_24 [2] : vector<2x8x8xf32> to vector<2x8xf32>
    %45 = vector.shape_cast %44 : vector<2x8xf32> to vector<2x8x1xf32>
    %46 = vector.broadcast %45 : vector<2x8x1xf32> to vector<2x8x8xf32>
    %47 = arith.subf %43, %46 : vector<2x8x8xf32>
    %48 = math.exp %47 : vector<2x8x8xf32>
    %cst_25 = arith.constant dense<0.000000e+00> : vector<2x8xf32>
    %49 = vector.multi_reduction <add>, %48, %cst_25 [2] : vector<2x8x8xf32> to vector<2x8xf32>
    %50 = vector.shape_cast %49 : vector<2x8xf32> to vector<2x8x1xf32>
    %51 = tpu.reciprocal %50 {approx = true} : vector<2x8x1xf32> -> vector<2x8x1xf32>
    %52 = vector.broadcast %51 : vector<2x8x1xf32> to vector<2x8x8xf32>
    %53 = arith.mulf %48, %52 : vector<2x8x8xf32>
    "tpu.trace_start"() <{level = 10 : i32, message = "bqk,bkd->bqd"}> : () -> ()
    %cst_26 = arith.constant dense<0.000000e+00> : vector<2x8x8xf32>
    %54 = tpu.matmul %53, %42, %cst_26 {dimension_numbers = #tpu.dot_dimension_numbers<[2], [1], [1], [2], [0, 0, 0, 1, 1, 2], [0], [0]>} : vector<2x8x8xf32>, vector<2x8x8xf32>, vector<2x8x8xf32> -> vector<2x8x8xf32>
    "tpu.trace_stop"() : () -> ()
    %55 = vector.shape_cast %54 : vector<2x8x8xf32> to vector<16x8xf32>
    %56 = vector.extract_strided_slice %36 {offsets = [0, 8], sizes = [16, 8], strides = [1, 1]} : vector<16x96xf32> to vector<16x8xf32>
    %57 = vector.shape_cast %56 : vector<16x8xf32> to vector<2x8x8xf32>
    %58 = vector.extract_strided_slice %36 {offsets = [0, 40], sizes = [16, 8], strides = [1, 1]} : vector<16x96xf32> to vector<16x8xf32>
    %59 = vector.shape_cast %58 : vector<16x8xf32> to vector<2x8x8xf32>
    %60 = vector.extract_strided_slice %36 {offsets = [0, 72], sizes = [16, 8], strides = [1, 1]} : vector<16x96xf32> to vector<16x8xf32>
    %61 = vector.shape_cast %60 : vector<16x8xf32> to vector<2x8x8xf32>
    "tpu.trace_start"() <{level = 10 : i32, message = "bqd,bkd->bqk"}> : () -> ()
    %cst_27 = arith.constant dense<0.000000e+00> : vector<2x8x8xf32>
    %62 = tpu.matmul %57, %59, %cst_27 {dimension_numbers = #tpu.dot_dimension_numbers<[2], [2], [1], [1], [0, 0, 0, 1, 1, 1], [0], [0]>} : vector<2x8x8xf32>, vector<2x8x8xf32>, vector<2x8x8xf32> -> vector<2x8x8xf32>
    "tpu.trace_stop"() : () -> ()
    %cst_28 = arith.constant dense<0xFF800000> : vector<2x8xf32>
    %63 = vector.multi_reduction <maximumf>, %62, %cst_28 [2] : vector<2x8x8xf32> to vector<2x8xf32>
    %64 = vector.shape_cast %63 : vector<2x8xf32> to vector<2x8x1xf32>
    %65 = vector.broadcast %64 : vector<2x8x1xf32> to vector<2x8x8xf32>
    %66 = arith.subf %62, %65 : vector<2x8x8xf32>
    %67 = math.exp %66 : vector<2x8x8xf32>
    %cst_29 = arith.constant dense<0.000000e+00> : vector<2x8xf32>
    %68 = vector.multi_reduction <add>, %67, %cst_29 [2] : vector<2x8x8xf32> to vector<2x8xf32>
    %69 = vector.shape_cast %68 : vector<2x8xf32> to vector<2x8x1xf32>
    %70 = tpu.reciprocal %69 {approx = true} : vector<2x8x1xf32> -> vector<2x8x1xf32>
    %71 = vector.broadcast %70 : vector<2x8x1xf32> to vector<2x8x8xf32>
    %72 = arith.mulf %67, %71 : vector<2x8x8xf32>
    "tpu.trace_start"() <{level = 10 : i32, message = "bqk,bkd->bqd"}> : () -> ()
    %cst_30 = arith.constant dense<0.000000e+00> : vector<2x8x8xf32>
    %73 = tpu.matmul %72, %61, %cst_30 {dimension_numbers = #tpu.dot_dimension_numbers<[2], [1], [1], [2], [0, 0, 0, 1, 1, 2], [0], [0]>} : vector<2x8x8xf32>, vector<2x8x8xf32>, vector<2x8x8xf32> -> vector<2x8x8xf32>
    "tpu.trace_stop"() : () -> ()
    %74 = vector.shape_cast %73 : vector<2x8x8xf32> to vector<16x8xf32>
    %75 = vector.extract_strided_slice %36 {offsets = [0, 16], sizes = [16, 8], strides = [1, 1]} : vector<16x96xf32> to vector<16x8xf32>
    %76 = vector.shape_cast %75 : vector<16x8xf32> to vector<2x8x8xf32>
    %77 = vector.extract_strided_slice %36 {offsets = [0, 48], sizes = [16, 8], strides = [1, 1]} : vector<16x96xf32> to vector<16x8xf32>
    %78 = vector.shape_cast %77 : vector<16x8xf32> to vector<2x8x8xf32>
    %79 = vector.extract_strided_slice %36 {offsets = [0, 80], sizes = [16, 8], strides = [1, 1]} : vector<16x96xf32> to vector<16x8xf32>
    %80 = vector.shape_cast %79 : vector<16x8xf32> to vector<2x8x8xf32>
    "tpu.trace_start"() <{level = 10 : i32, message = "bqd,bkd->bqk"}> : () -> ()
    %cst_31 = arith.constant dense<0.000000e+00> : vector<2x8x8xf32>
    %81 = tpu.matmul %76, %78, %cst_31 {dimension_numbers = #tpu.dot_dimension_numbers<[2], [2], [1], [1], [0, 0, 0, 1, 1, 1], [0], [0]>} : vector<2x8x8xf32>, vector<2x8x8xf32>, vector<2x8x8xf32> -> vector<2x8x8xf32>
    "tpu.trace_stop"() : () -> ()
    %cst_32 = arith.constant dense<0xFF800000> : vector<2x8xf32>
    %82 = vector.multi_reduction <maximumf>, %81, %cst_32 [2] : vector<2x8x8xf32> to vector<2x8xf32>
    %83 = vector.shape_cast %82 : vector<2x8xf32> to vector<2x8x1xf32>
    %84 = vector.broadcast %83 : vector<2x8x1xf32> to vector<2x8x8xf32>
    %85 = arith.subf %81, %84 : vector<2x8x8xf32>
    %86 = math.exp %85 : vector<2x8x8xf32>
    %cst_33 = arith.constant dense<0.000000e+00> : vector<2x8xf32>
    %87 = vector.multi_reduction <add>, %86, %cst_33 [2] : vector<2x8x8xf32> to vector<2x8xf32>
    %88 = vector.shape_cast %87 : vector<2x8xf32> to vector<2x8x1xf32>
    %89 = tpu.reciprocal %88 {approx = true} : vector<2x8x1xf32> -> vector<2x8x1xf32>
    %90 = vector.broadcast %89 : vector<2x8x1xf32> to vector<2x8x8xf32>
    %91 = arith.mulf %86, %90 : vector<2x8x8xf32>
    "tpu.trace_start"() <{level = 10 : i32, message = "bqk,bkd->bqd"}> : () -> ()
    %cst_34 = arith.constant dense<0.000000e+00> : vector<2x8x8xf32>
    %92 = tpu.matmul %91, %80, %cst_34 {dimension_numbers = #tpu.dot_dimension_numbers<[2], [1], [1], [2], [0, 0, 0, 1, 1, 2], [0], [0]>} : vector<2x8x8xf32>, vector<2x8x8xf32>, vector<2x8x8xf32> -> vector<2x8x8xf32>
    "tpu.trace_stop"() : () -> ()
    %93 = vector.shape_cast %92 : vector<2x8x8xf32> to vector<16x8xf32>
    %94 = vector.extract_strided_slice %36 {offsets = [0, 24], sizes = [16, 8], strides = [1, 1]} : vector<16x96xf32> to vector<16x8xf32>
    %95 = vector.shape_cast %94 : vector<16x8xf32> to vector<2x8x8xf32>
    %96 = vector.extract_strided_slice %36 {offsets = [0, 56], sizes = [16, 8], strides = [1, 1]} : vector<16x96xf32> to vector<16x8xf32>
    %97 = vector.shape_cast %96 : vector<16x8xf32> to vector<2x8x8xf32>
    %98 = vector.extract_strided_slice %36 {offsets = [0, 88], sizes = [16, 8], strides = [1, 1]} : vector<16x96xf32> to vector<16x8xf32>
    %99 = vector.shape_cast %98 : vector<16x8xf32> to vector<2x8x8xf32>
    "tpu.trace_start"() <{level = 10 : i32, message = "bqd,bkd->bqk"}> : () -> ()
    %cst_35 = arith.constant dense<0.000000e+00> : vector<2x8x8xf32>
    %100 = tpu.matmul %95, %97, %cst_35 {dimension_numbers = #tpu.dot_dimension_numbers<[2], [2], [1], [1], [0, 0, 0, 1, 1, 1], [0], [0]>} : vector<2x8x8xf32>, vector<2x8x8xf32>, vector<2x8x8xf32> -> vector<2x8x8xf32>
    "tpu.trace_stop"() : () -> ()
    %cst_36 = arith.constant dense<0xFF800000> : vector<2x8xf32>
    %101 = vector.multi_reduction <maximumf>, %100, %cst_36 [2] : vector<2x8x8xf32> to vector<2x8xf32>
    %102 = vector.shape_cast %101 : vector<2x8xf32> to vector<2x8x1xf32>
    %103 = vector.broadcast %102 : vector<2x8x1xf32> to vector<2x8x8xf32>
    %104 = arith.subf %100, %103 : vector<2x8x8xf32>
    %105 = math.exp %104 : vector<2x8x8xf32>
    %cst_37 = arith.constant dense<0.000000e+00> : vector<2x8xf32>
    %106 = vector.multi_reduction <add>, %105, %cst_37 [2] : vector<2x8x8xf32> to vector<2x8xf32>
    %107 = vector.shape_cast %106 : vector<2x8xf32> to vector<2x8x1xf32>
    %108 = tpu.reciprocal %107 {approx = true} : vector<2x8x1xf32> -> vector<2x8x1xf32>
    %109 = vector.broadcast %108 : vector<2x8x1xf32> to vector<2x8x8xf32>
    %110 = arith.mulf %105, %109 : vector<2x8x8xf32>
    "tpu.trace_start"() <{level = 10 : i32, message = "bqk,bkd->bqd"}> : () -> ()
    %cst_38 = arith.constant dense<0.000000e+00> : vector<2x8x8xf32>
    %111 = tpu.matmul %110, %99, %cst_38 {dimension_numbers = #tpu.dot_dimension_numbers<[2], [1], [1], [2], [0, 0, 0, 1, 1, 2], [0], [0]>} : vector<2x8x8xf32>, vector<2x8x8xf32>, vector<2x8x8xf32> -> vector<2x8x8xf32>
    "tpu.trace_stop"() : () -> ()
    %112 = vector.shape_cast %111 : vector<2x8x8xf32> to vector<16x8xf32>
    %113 = tpu.concatenate %55, %74, %93, %112 in 1 : vector<16x8xf32>, vector<16x8xf32>, vector<16x8xf32>, vector<16x8xf32> -> vector<16x32xf32>
    %c0_39 = arith.constant 0 : index
    %c0_40 = arith.constant 0 : index
    %c0_41 = arith.constant 0 : index
    %114 = vector.load %arg8[%c0_39, %c0_40, %c0_41] : memref<2x32x32xf32, #tpu.memory_space<vmem>>, vector<1x32x32xf32>
    %115 = vector.shape_cast %114 : vector<1x32x32xf32> to vector<32x32xf32>
    %cst_42 = arith.constant dense<0.000000e+00> : vector<16x32xf32>
    %116 = tpu.matmul %113, %115, %cst_42 {dimension_numbers = #tpu.dot_dimension_numbers<[1], [0], [0], [1], [0, 0, 1, 1], [], []>} : vector<16x32xf32>, vector<32x32xf32>, vector<16x32xf32> -> vector<16x32xf32>
    %c0_43 = arith.constant 0 : index
    %c0_44 = arith.constant 0 : index
    %c0_45 = arith.constant 0 : index
    %117 = vector.load %arg9[%c0_43, %c0_44, %c0_45] : memref<2x1x32xf32, #tpu.memory_space<vmem>>, vector<1x1x32xf32>
    %118 = vector.shape_cast %117 : vector<1x1x32xf32> to vector<1x32xf32>
    %119 = vector.broadcast %118 : vector<1x32xf32> to vector<16x32xf32>
    %120 = arith.addf %116, %119 : vector<16x32xf32>
    %121 = arith.addf %29, %120 : vector<16x32xf32>
    %c0_46 = arith.constant 0 : index
    %c0_47 = arith.constant 0 : index
    %c0_48 = arith.constant 0 : index
    %122 = vector.load %arg10[%c0_46, %c0_47, %c0_48] : memref<2x1x32xf32, #tpu.memory_space<vmem>>, vector<1x1x32xf32>
    %123 = vector.shape_cast %122 : vector<1x1x32xf32> to vector<1x32xf32>
    %c0_49 = arith.constant 0 : index
    %c0_50 = arith.constant 0 : index
    %c0_51 = arith.constant 0 : index
    %124 = vector.load %arg11[%c0_49, %c0_50, %c0_51] : memref<2x1x32xf32, #tpu.memory_space<vmem>>, vector<1x1x32xf32>
    %125 = vector.shape_cast %124 : vector<1x1x32xf32> to vector<1x32xf32>
    %cst_52 = arith.constant dense<0.000000e+00> : vector<16xf32>
    %126 = vector.multi_reduction <add>, %121, %cst_52 [1] : vector<16x32xf32> to vector<16xf32>
    %127 = vector.shape_cast %126 : vector<16xf32> to vector<16x1xf32>
    %cst_53 = arith.constant 3.200000e+01 : f32
    %128 = vector.broadcast %cst_53 : f32 to vector<16x1xf32>
    %129 = arith.divf %127, %128 : vector<16x1xf32>
    %130 = vector.broadcast %129 : vector<16x1xf32> to vector<16x32xf32>
    %131 = arith.subf %121, %130 : vector<16x32xf32>
    %132 = arith.mulf %131, %131 : vector<16x32xf32>
    %cst_54 = arith.constant dense<0.000000e+00> : vector<16xf32>
    %133 = vector.multi_reduction <add>, %132, %cst_54 [1] : vector<16x32xf32> to vector<16xf32>
    %134 = vector.shape_cast %133 : vector<16xf32> to vector<16x1xf32>
    %cst_55 = arith.constant 3.200000e+01 : f32
    %135 = vector.broadcast %cst_55 : f32 to vector<16x1xf32>
    %136 = arith.divf %134, %135 : vector<16x1xf32>
    %cst_56 = arith.constant 9.99999996E-13 : f32
    %137 = vector.broadcast %cst_56 : f32 to vector<16x1xf32>
    %138 = arith.addf %136, %137 : vector<16x1xf32>
    %139 = math.rsqrt %138 : vector<16x1xf32>
    %140 = vector.broadcast %139 : vector<16x1xf32> to vector<16x32xf32>
    %141 = arith.mulf %131, %140 : vector<16x32xf32>
    %142 = vector.broadcast %123 : vector<1x32xf32> to vector<16x32xf32>
    %143 = arith.mulf %141, %142 : vector<16x32xf32>
    %144 = vector.broadcast %125 : vector<1x32xf32> to vector<16x32xf32>
    %145 = arith.addf %143, %144 : vector<16x32xf32>
    %c0_57 = arith.constant 0 : index
    %c0_58 = arith.constant 0 : index
    %c0_59 = arith.constant 0 : index
    %146 = vector.load %arg12[%c0_57, %c0_58, %c0_59] : memref<2x32x64xf32, #tpu.memory_space<vmem>>, vector<1x32x64xf32>
    %147 = vector.shape_cast %146 : vector<1x32x64xf32> to vector<32x64xf32>
    %cst_60 = arith.constant dense<0.000000e+00> : vector<16x64xf32>
    %148 = tpu.matmul %145, %147, %cst_60 {dimension_numbers = #tpu.dot_dimension_numbers<[1], [0], [0], [1], [0, 0, 1, 1], [], []>} : vector<16x32xf32>, vector<32x64xf32>, vector<16x64xf32> -> vector<16x64xf32>
    %c0_61 = arith.constant 0 : index
    %c0_62 = arith.constant 0 : index
    %c0_63 = arith.constant 0 : index
    %149 = vector.load %arg13[%c0_61, %c0_62, %c0_63] : memref<2x1x64xf32, #tpu.memory_space<vmem>>, vector<1x1x64xf32>
    %150 = vector.shape_cast %149 : vector<1x1x64xf32> to vector<1x64xf32>
    %151 = vector.broadcast %150 : vector<1x64xf32> to vector<16x64xf32>
    %152 = arith.addf %148, %151 : vector<16x64xf32>
    %cst_64 = arith.constant 5.000000e-01 : f32
    %153 = vector.broadcast %cst_64 : f32 to vector<16x64xf32>
    %154 = arith.mulf %153, %152 : vector<16x64xf32>
    %cst_65 = arith.constant 4.471500e-02 : f32
    %155 = vector.broadcast %cst_65 : f32 to vector<16x64xf32>
    %156 = arith.mulf %155, %152 : vector<16x64xf32>
    %157 = arith.mulf %156, %152 : vector<16x64xf32>
    %158 = arith.mulf %157, %152 : vector<16x64xf32>
    %159 = arith.addf %152, %158 : vector<16x64xf32>
    %cst_66 = arith.constant 0.797884583 : f32
    %160 = vector.broadcast %cst_66 : f32 to vector<16x64xf32>
    %161 = arith.mulf %160, %159 : vector<16x64xf32>
    %162 = math.tanh %161 : vector<16x64xf32>
    %cst_67 = arith.constant 1.000000e+00 : f32
    %163 = vector.broadcast %cst_67 : f32 to vector<16x64xf32>
    %164 = arith.addf %163, %162 : vector<16x64xf32>
    %165 = arith.mulf %154, %164 : vector<16x64xf32>
    %c0_68 = arith.constant 0 : index
    %c0_69 = arith.constant 0 : index
    %c0_70 = arith.constant 0 : index
    %166 = vector.load %arg14[%c0_68, %c0_69, %c0_70] : memref<2x64x32xf32, #tpu.memory_space<vmem>>, vector<1x64x32xf32>
    %167 = vector.shape_cast %166 : vector<1x64x32xf32> to vector<64x32xf32>
    %cst_71 = arith.constant dense<0.000000e+00> : vector<16x32xf32>
    %168 = tpu.matmul %165, %167, %cst_71 {dimension_numbers = #tpu.dot_dimension_numbers<[1], [0], [0], [1], [0, 0, 1, 1], [], []>} : vector<16x64xf32>, vector<64x32xf32>, vector<16x32xf32> -> vector<16x32xf32>
    %c0_72 = arith.constant 0 : index
    %c0_73 = arith.constant 0 : index
    %c0_74 = arith.constant 0 : index
    %169 = vector.load %arg15[%c0_72, %c0_73, %c0_74] : memref<2x1x32xf32, #tpu.memory_space<vmem>>, vector<1x1x32xf32>
    %170 = vector.shape_cast %169 : vector<1x1x32xf32> to vector<1x32xf32>
    %171 = vector.broadcast %170 : vector<1x32xf32> to vector<16x32xf32>
    %172 = arith.addf %168, %171 : vector<16x32xf32>
    %173 = arith.addf %145, %172 : vector<16x32xf32>
    %c0_75 = arith.constant 0 : index
    %c0_76 = arith.constant 0 : index
    %c0_77 = arith.constant 0 : index
    %174 = vector.load %arg16[%c0_75, %c0_76, %c0_77] : memref<2x1x32xf32, #tpu.memory_space<vmem>>, vector<1x1x32xf32>
    %175 = vector.shape_cast %174 : vector<1x1x32xf32> to vector<1x32xf32>
    %c0_78 = arith.constant 0 : index
    %c0_79 = arith.constant 0 : index
    %c0_80 = arith.constant 0 : index
    %176 = vector.load %arg17[%c0_78, %c0_79, %c0_80] : memref<2x1x32xf32, #tpu.memory_space<vmem>>, vector<1x1x32xf32>
    %177 = vector.shape_cast %176 : vector<1x1x32xf32> to vector<1x32xf32>
    %cst_81 = arith.constant dense<0.000000e+00> : vector<16xf32>
    %178 = vector.multi_reduction <add>, %173, %cst_81 [1] : vector<16x32xf32> to vector<16xf32>
    %179 = vector.shape_cast %178 : vector<16xf32> to vector<16x1xf32>
    %cst_82 = arith.constant 3.200000e+01 : f32
    %180 = vector.broadcast %cst_82 : f32 to vector<16x1xf32>
    %181 = arith.divf %179, %180 : vector<16x1xf32>
    %182 = vector.broadcast %181 : vector<16x1xf32> to vector<16x32xf32>
    %183 = arith.subf %173, %182 : vector<16x32xf32>
    %184 = arith.mulf %183, %183 : vector<16x32xf32>
    %cst_83 = arith.constant dense<0.000000e+00> : vector<16xf32>
    %185 = vector.multi_reduction <add>, %184, %cst_83 [1] : vector<16x32xf32> to vector<16xf32>
    %186 = vector.shape_cast %185 : vector<16xf32> to vector<16x1xf32>
    %cst_84 = arith.constant 3.200000e+01 : f32
    %187 = vector.broadcast %cst_84 : f32 to vector<16x1xf32>
    %188 = arith.divf %186, %187 : vector<16x1xf32>
    %cst_85 = arith.constant 9.99999996E-13 : f32
    %189 = vector.broadcast %cst_85 : f32 to vector<16x1xf32>
    %190 = arith.addf %188, %189 : vector<16x1xf32>
    %191 = math.rsqrt %190 : vector<16x1xf32>
    %192 = vector.broadcast %191 : vector<16x1xf32> to vector<16x32xf32>
    %193 = arith.mulf %183, %192 : vector<16x32xf32>
    %194 = vector.broadcast %175 : vector<1x32xf32> to vector<16x32xf32>
    %195 = arith.mulf %193, %194 : vector<16x32xf32>
    %196 = vector.broadcast %177 : vector<1x32xf32> to vector<16x32xf32>
    %197 = arith.addf %195, %196 : vector<16x32xf32>
    %c1 = arith.constant 1 : index
    %c0_86 = arith.constant 0 : index
    %c0_87 = arith.constant 0 : index
    %198 = vector.load %arg6[%c1, %c0_86, %c0_87] : memref<2x32x96xf32, #tpu.memory_space<vmem>>, vector<1x32x96xf32>
    %199 = vector.shape_cast %198 : vector<1x32x96xf32> to vector<32x96xf32>
    %cst_88 = arith.constant dense<0.000000e+00> : vector<16x96xf32>
    %200 = tpu.matmul %197, %199, %cst_88 {dimension_numbers = #tpu.dot_dimension_numbers<[1], [0], [0], [1], [0, 0, 1, 1], [], []>} : vector<16x32xf32>, vector<32x96xf32>, vector<16x96xf32> -> vector<16x96xf32>
    %c1_89 = arith.constant 1 : index
    %c0_90 = arith.constant 0 : index
    %c0_91 = arith.constant 0 : index
    %201 = vector.load %arg7[%c1_89, %c0_90, %c0_91] : memref<2x1x96xf32, #tpu.memory_space<vmem>>, vector<1x1x96xf32>
    %202 = vector.shape_cast %201 : vector<1x1x96xf32> to vector<1x96xf32>
    %203 = vector.broadcast %202 : vector<1x96xf32> to vector<16x96xf32>
    %204 = arith.addf %200, %203 : vector<16x96xf32>
    %205 = vector.extract_strided_slice %204 {offsets = [0, 0], sizes = [16, 8], strides = [1, 1]} : vector<16x96xf32> to vector<16x8xf32>
    %206 = vector.shape_cast %205 : vector<16x8xf32> to vector<2x8x8xf32>
    %207 = vector.extract_strided_slice %204 {offsets = [0, 32], sizes = [16, 8], strides = [1, 1]} : vector<16x96xf32> to vector<16x8xf32>
    %208 = vector.shape_cast %207 : vector<16x8xf32> to vector<2x8x8xf32>
    %209 = vector.extract_strided_slice %204 {offsets = [0, 64], sizes = [16, 8], strides = [1, 1]} : vector<16x96xf32> to vector<16x8xf32>
    %210 = vector.shape_cast %209 : vector<16x8xf32> to vector<2x8x8xf32>
    "tpu.trace_start"() <{level = 10 : i32, message = "bqd,bkd->bqk"}> : () -> ()
    %cst_92 = arith.constant dense<0.000000e+00> : vector<2x8x8xf32>
    %211 = tpu.matmul %206, %208, %cst_92 {dimension_numbers = #tpu.dot_dimension_numbers<[2], [2], [1], [1], [0, 0, 0, 1, 1, 1], [0], [0]>} : vector<2x8x8xf32>, vector<2x8x8xf32>, vector<2x8x8xf32> -> vector<2x8x8xf32>
    "tpu.trace_stop"() : () -> ()
    %cst_93 = arith.constant dense<0xFF800000> : vector<2x8xf32>
    %212 = vector.multi_reduction <maximumf>, %211, %cst_93 [2] : vector<2x8x8xf32> to vector<2x8xf32>
    %213 = vector.shape_cast %212 : vector<2x8xf32> to vector<2x8x1xf32>
    %214 = vector.broadcast %213 : vector<2x8x1xf32> to vector<2x8x8xf32>
    %215 = arith.subf %211, %214 : vector<2x8x8xf32>
    %216 = math.exp %215 : vector<2x8x8xf32>
    %cst_94 = arith.constant dense<0.000000e+00> : vector<2x8xf32>
    %217 = vector.multi_reduction <add>, %216, %cst_94 [2] : vector<2x8x8xf32> to vector<2x8xf32>
    %218 = vector.shape_cast %217 : vector<2x8xf32> to vector<2x8x1xf32>
    %219 = tpu.reciprocal %218 {approx = true} : vector<2x8x1xf32> -> vector<2x8x1xf32>
    %220 = vector.broadcast %219 : vector<2x8x1xf32> to vector<2x8x8xf32>
    %221 = arith.mulf %216, %220 : vector<2x8x8xf32>
    "tpu.trace_start"() <{level = 10 : i32, message = "bqk,bkd->bqd"}> : () -> ()
    %cst_95 = arith.constant dense<0.000000e+00> : vector<2x8x8xf32>
    %222 = tpu.matmul %221, %210, %cst_95 {dimension_numbers = #tpu.dot_dimension_numbers<[2], [1], [1], [2], [0, 0, 0, 1, 1, 2], [0], [0]>} : vector<2x8x8xf32>, vector<2x8x8xf32>, vector<2x8x8xf32> -> vector<2x8x8xf32>
    "tpu.trace_stop"() : () -> ()
    %223 = vector.shape_cast %222 : vector<2x8x8xf32> to vector<16x8xf32>
    %224 = vector.extract_strided_slice %204 {offsets = [0, 8], sizes = [16, 8], strides = [1, 1]} : vector<16x96xf32> to vector<16x8xf32>
    %225 = vector.shape_cast %224 : vector<16x8xf32> to vector<2x8x8xf32>
    %226 = vector.extract_strided_slice %204 {offsets = [0, 40], sizes = [16, 8], strides = [1, 1]} : vector<16x96xf32> to vector<16x8xf32>
    %227 = vector.shape_cast %226 : vector<16x8xf32> to vector<2x8x8xf32>
    %228 = vector.extract_strided_slice %204 {offsets = [0, 72], sizes = [16, 8], strides = [1, 1]} : vector<16x96xf32> to vector<16x8xf32>
    %229 = vector.shape_cast %228 : vector<16x8xf32> to vector<2x8x8xf32>
    "tpu.trace_start"() <{level = 10 : i32, message = "bqd,bkd->bqk"}> : () -> ()
    %cst_96 = arith.constant dense<0.000000e+00> : vector<2x8x8xf32>
    %230 = tpu.matmul %225, %227, %cst_96 {dimension_numbers = #tpu.dot_dimension_numbers<[2], [2], [1], [1], [0, 0, 0, 1, 1, 1], [0], [0]>} : vector<2x8x8xf32>, vector<2x8x8xf32>, vector<2x8x8xf32> -> vector<2x8x8xf32>
    "tpu.trace_stop"() : () -> ()
    %cst_97 = arith.constant dense<0xFF800000> : vector<2x8xf32>
    %231 = vector.multi_reduction <maximumf>, %230, %cst_97 [2] : vector<2x8x8xf32> to vector<2x8xf32>
    %232 = vector.shape_cast %231 : vector<2x8xf32> to vector<2x8x1xf32>
    %233 = vector.broadcast %232 : vector<2x8x1xf32> to vector<2x8x8xf32>
    %234 = arith.subf %230, %233 : vector<2x8x8xf32>
    %235 = math.exp %234 : vector<2x8x8xf32>
    %cst_98 = arith.constant dense<0.000000e+00> : vector<2x8xf32>
    %236 = vector.multi_reduction <add>, %235, %cst_98 [2] : vector<2x8x8xf32> to vector<2x8xf32>
    %237 = vector.shape_cast %236 : vector<2x8xf32> to vector<2x8x1xf32>
    %238 = tpu.reciprocal %237 {approx = true} : vector<2x8x1xf32> -> vector<2x8x1xf32>
    %239 = vector.broadcast %238 : vector<2x8x1xf32> to vector<2x8x8xf32>
    %240 = arith.mulf %235, %239 : vector<2x8x8xf32>
    "tpu.trace_start"() <{level = 10 : i32, message = "bqk,bkd->bqd"}> : () -> ()
    %cst_99 = arith.constant dense<0.000000e+00> : vector<2x8x8xf32>
    %241 = tpu.matmul %240, %229, %cst_99 {dimension_numbers = #tpu.dot_dimension_numbers<[2], [1], [1], [2], [0, 0, 0, 1, 1, 2], [0], [0]>} : vector<2x8x8xf32>, vector<2x8x8xf32>, vector<2x8x8xf32> -> vector<2x8x8xf32>
    "tpu.trace_stop"() : () -> ()
    %242 = vector.shape_cast %241 : vector<2x8x8xf32> to vector<16x8xf32>
    %243 = vector.extract_strided_slice %204 {offsets = [0, 16], sizes = [16, 8], strides = [1, 1]} : vector<16x96xf32> to vector<16x8xf32>
    %244 = vector.shape_cast %243 : vector<16x8xf32> to vector<2x8x8xf32>
    %245 = vector.extract_strided_slice %204 {offsets = [0, 48], sizes = [16, 8], strides = [1, 1]} : vector<16x96xf32> to vector<16x8xf32>
    %246 = vector.shape_cast %245 : vector<16x8xf32> to vector<2x8x8xf32>
    %247 = vector.extract_strided_slice %204 {offsets = [0, 80], sizes = [16, 8], strides = [1, 1]} : vector<16x96xf32> to vector<16x8xf32>
    %248 = vector.shape_cast %247 : vector<16x8xf32> to vector<2x8x8xf32>
    "tpu.trace_start"() <{level = 10 : i32, message = "bqd,bkd->bqk"}> : () -> ()
    %cst_100 = arith.constant dense<0.000000e+00> : vector<2x8x8xf32>
    %249 = tpu.matmul %244, %246, %cst_100 {dimension_numbers = #tpu.dot_dimension_numbers<[2], [2], [1], [1], [0, 0, 0, 1, 1, 1], [0], [0]>} : vector<2x8x8xf32>, vector<2x8x8xf32>, vector<2x8x8xf32> -> vector<2x8x8xf32>
    "tpu.trace_stop"() : () -> ()
    %cst_101 = arith.constant dense<0xFF800000> : vector<2x8xf32>
    %250 = vector.multi_reduction <maximumf>, %249, %cst_101 [2] : vector<2x8x8xf32> to vector<2x8xf32>
    %251 = vector.shape_cast %250 : vector<2x8xf32> to vector<2x8x1xf32>
    %252 = vector.broadcast %251 : vector<2x8x1xf32> to vector<2x8x8xf32>
    %253 = arith.subf %249, %252 : vector<2x8x8xf32>
    %254 = math.exp %253 : vector<2x8x8xf32>
    %cst_102 = arith.constant dense<0.000000e+00> : vector<2x8xf32>
    %255 = vector.multi_reduction <add>, %254, %cst_102 [2] : vector<2x8x8xf32> to vector<2x8xf32>
    %256 = vector.shape_cast %255 : vector<2x8xf32> to vector<2x8x1xf32>
    %257 = tpu.reciprocal %256 {approx = true} : vector<2x8x1xf32> -> vector<2x8x1xf32>
    %258 = vector.broadcast %257 : vector<2x8x1xf32> to vector<2x8x8xf32>
    %259 = arith.mulf %254, %258 : vector<2x8x8xf32>
    "tpu.trace_start"() <{level = 10 : i32, message = "bqk,bkd->bqd"}> : () -> ()
    %cst_103 = arith.constant dense<0.000000e+00> : vector<2x8x8xf32>
    %260 = tpu.matmul %259, %248, %cst_103 {dimension_numbers = #tpu.dot_dimension_numbers<[2], [1], [1], [2], [0, 0, 0, 1, 1, 2], [0], [0]>} : vector<2x8x8xf32>, vector<2x8x8xf32>, vector<2x8x8xf32> -> vector<2x8x8xf32>
    "tpu.trace_stop"() : () -> ()
    %261 = vector.shape_cast %260 : vector<2x8x8xf32> to vector<16x8xf32>
    %262 = vector.extract_strided_slice %204 {offsets = [0, 24], sizes = [16, 8], strides = [1, 1]} : vector<16x96xf32> to vector<16x8xf32>
    %263 = vector.shape_cast %262 : vector<16x8xf32> to vector<2x8x8xf32>
    %264 = vector.extract_strided_slice %204 {offsets = [0, 56], sizes = [16, 8], strides = [1, 1]} : vector<16x96xf32> to vector<16x8xf32>
    %265 = vector.shape_cast %264 : vector<16x8xf32> to vector<2x8x8xf32>
    %266 = vector.extract_strided_slice %204 {offsets = [0, 88], sizes = [16, 8], strides = [1, 1]} : vector<16x96xf32> to vector<16x8xf32>
    %267 = vector.shape_cast %266 : vector<16x8xf32> to vector<2x8x8xf32>
    "tpu.trace_start"() <{level = 10 : i32, message = "bqd,bkd->bqk"}> : () -> ()
    %cst_104 = arith.constant dense<0.000000e+00> : vector<2x8x8xf32>
    %268 = tpu.matmul %263, %265, %cst_104 {dimension_numbers = #tpu.dot_dimension_numbers<[2], [2], [1], [1], [0, 0, 0, 1, 1, 1], [0], [0]>} : vector<2x8x8xf32>, vector<2x8x8xf32>, vector<2x8x8xf32> -> vector<2x8x8xf32>
    "tpu.trace_stop"() : () -> ()
    %cst_105 = arith.constant dense<0xFF800000> : vector<2x8xf32>
    %269 = vector.multi_reduction <maximumf>, %268, %cst_105 [2] : vector<2x8x8xf32> to vector<2x8xf32>
    %270 = vector.shape_cast %269 : vector<2x8xf32> to vector<2x8x1xf32>
    %271 = vector.broadcast %270 : vector<2x8x1xf32> to vector<2x8x8xf32>
    %272 = arith.subf %268, %271 : vector<2x8x8xf32>
    %273 = math.exp %272 : vector<2x8x8xf32>
    %cst_106 = arith.constant dense<0.000000e+00> : vector<2x8xf32>
    %274 = vector.multi_reduction <add>, %273, %cst_106 [2] : vector<2x8x8xf32> to vector<2x8xf32>
    %275 = vector.shape_cast %274 : vector<2x8xf32> to vector<2x8x1xf32>
    %276 = tpu.reciprocal %275 {approx = true} : vector<2x8x1xf32> -> vector<2x8x1xf32>
    %277 = vector.broadcast %276 : vector<2x8x1xf32> to vector<2x8x8xf32>
    %278 = arith.mulf %273, %277 : vector<2x8x8xf32>
    "tpu.trace_start"() <{level = 10 : i32, message = "bqk,bkd->bqd"}> : () -> ()
    %cst_107 = arith.constant dense<0.000000e+00> : vector<2x8x8xf32>
    %279 = tpu.matmul %278, %267, %cst_107 {dimension_numbers = #tpu.dot_dimension_numbers<[2], [1], [1], [2], [0, 0, 0, 1, 1, 2], [0], [0]>} : vector<2x8x8xf32>, vector<2x8x8xf32>, vector<2x8x8xf32> -> vector<2x8x8xf32>
    "tpu.trace_stop"() : () -> ()
    %280 = vector.shape_cast %279 : vector<2x8x8xf32> to vector<16x8xf32>
    %281 = tpu.concatenate %223, %242, %261, %280 in 1 : vector<16x8xf32>, vector<16x8xf32>, vector<16x8xf32>, vector<16x8xf32> -> vector<16x32xf32>
    %c1_108 = arith.constant 1 : index
    %c0_109 = arith.constant 0 : index
    %c0_110 = arith.constant 0 : index
    %282 = vector.load %arg8[%c1_108, %c0_109, %c0_110] : memref<2x32x32xf32, #tpu.memory_space<vmem>>, vector<1x32x32xf32>
    %283 = vector.shape_cast %282 : vector<1x32x32xf32> to vector<32x32xf32>
    %cst_111 = arith.constant dense<0.000000e+00> : vector<16x32xf32>
    %284 = tpu.matmul %281, %283, %cst_111 {dimension_numbers = #tpu.dot_dimension_numbers<[1], [0], [0], [1], [0, 0, 1, 1], [], []>} : vector<16x32xf32>, vector<32x32xf32>, vector<16x32xf32> -> vector<16x32xf32>
    %c1_112 = arith.constant 1 : index
    %c0_113 = arith.constant 0 : index
    %c0_114 = arith.constant 0 : index
    %285 = vector.load %arg9[%c1_112, %c0_113, %c0_114] : memref<2x1x32xf32, #tpu.memory_space<vmem>>, vector<1x1x32xf32>
    %286 = vector.shape_cast %285 : vector<1x1x32xf32> to vector<1x32xf32>
    %287 = vector.broadcast %286 : vector<1x32xf32> to vector<16x32xf32>
    %288 = arith.addf %284, %287 : vector<16x32xf32>
    %289 = arith.addf %197, %288 : vector<16x32xf32>
    %c1_115 = arith.constant 1 : index
    %c0_116 = arith.constant 0 : index
    %c0_117 = arith.constant 0 : index
    %290 = vector.load %arg10[%c1_115, %c0_116, %c0_117] : memref<2x1x32xf32, #tpu.memory_space<vmem>>, vector<1x1x32xf32>
    %291 = vector.shape_cast %290 : vector<1x1x32xf32> to vector<1x32xf32>
    %c1_118 = arith.constant 1 : index
    %c0_119 = arith.constant 0 : index
    %c0_120 = arith.constant 0 : index
    %292 = vector.load %arg11[%c1_118, %c0_119, %c0_120] : memref<2x1x32xf32, #tpu.memory_space<vmem>>, vector<1x1x32xf32>
    %293 = vector.shape_cast %292 : vector<1x1x32xf32> to vector<1x32xf32>
    %cst_121 = arith.constant dense<0.000000e+00> : vector<16xf32>
    %294 = vector.multi_reduction <add>, %289, %cst_121 [1] : vector<16x32xf32> to vector<16xf32>
    %295 = vector.shape_cast %294 : vector<16xf32> to vector<16x1xf32>
    %cst_122 = arith.constant 3.200000e+01 : f32
    %296 = vector.broadcast %cst_122 : f32 to vector<16x1xf32>
    %297 = arith.divf %295, %296 : vector<16x1xf32>
    %298 = vector.broadcast %297 : vector<16x1xf32> to vector<16x32xf32>
    %299 = arith.subf %289, %298 : vector<16x32xf32>
    %300 = arith.mulf %299, %299 : vector<16x32xf32>
    %cst_123 = arith.constant dense<0.000000e+00> : vector<16xf32>
    %301 = vector.multi_reduction <add>, %300, %cst_123 [1] : vector<16x32xf32> to vector<16xf32>
    %302 = vector.shape_cast %301 : vector<16xf32> to vector<16x1xf32>
    %cst_124 = arith.constant 3.200000e+01 : f32
    %303 = vector.broadcast %cst_124 : f32 to vector<16x1xf32>
    %304 = arith.divf %302, %303 : vector<16x1xf32>
    %cst_125 = arith.constant 9.99999996E-13 : f32
    %305 = vector.broadcast %cst_125 : f32 to vector<16x1xf32>
    %306 = arith.addf %304, %305 : vector<16x1xf32>
    %307 = math.rsqrt %306 : vector<16x1xf32>
    %308 = vector.broadcast %307 : vector<16x1xf32> to vector<16x32xf32>
    %309 = arith.mulf %299, %308 : vector<16x32xf32>
    %310 = vector.broadcast %291 : vector<1x32xf32> to vector<16x32xf32>
    %311 = arith.mulf %309, %310 : vector<16x32xf32>
    %312 = vector.broadcast %293 : vector<1x32xf32> to vector<16x32xf32>
    %313 = arith.addf %311, %312 : vector<16x32xf32>
    %c1_126 = arith.constant 1 : index
    %c0_127 = arith.constant 0 : index
    %c0_128 = arith.constant 0 : index
    %314 = vector.load %arg12[%c1_126, %c0_127, %c0_128] : memref<2x32x64xf32, #tpu.memory_space<vmem>>, vector<1x32x64xf32>
    %315 = vector.shape_cast %314 : vector<1x32x64xf32> to vector<32x64xf32>
    %cst_129 = arith.constant dense<0.000000e+00> : vector<16x64xf32>
    %316 = tpu.matmul %313, %315, %cst_129 {dimension_numbers = #tpu.dot_dimension_numbers<[1], [0], [0], [1], [0, 0, 1, 1], [], []>} : vector<16x32xf32>, vector<32x64xf32>, vector<16x64xf32> -> vector<16x64xf32>
    %c1_130 = arith.constant 1 : index
    %c0_131 = arith.constant 0 : index
    %c0_132 = arith.constant 0 : index
    %317 = vector.load %arg13[%c1_130, %c0_131, %c0_132] : memref<2x1x64xf32, #tpu.memory_space<vmem>>, vector<1x1x64xf32>
    %318 = vector.shape_cast %317 : vector<1x1x64xf32> to vector<1x64xf32>
    %319 = vector.broadcast %318 : vector<1x64xf32> to vector<16x64xf32>
    %320 = arith.addf %316, %319 : vector<16x64xf32>
    %cst_133 = arith.constant 5.000000e-01 : f32
    %321 = vector.broadcast %cst_133 : f32 to vector<16x64xf32>
    %322 = arith.mulf %321, %320 : vector<16x64xf32>
    %cst_134 = arith.constant 4.471500e-02 : f32
    %323 = vector.broadcast %cst_134 : f32 to vector<16x64xf32>
    %324 = arith.mulf %323, %320 : vector<16x64xf32>
    %325 = arith.mulf %324, %320 : vector<16x64xf32>
    %326 = arith.mulf %325, %320 : vector<16x64xf32>
    %327 = arith.addf %320, %326 : vector<16x64xf32>
    %cst_135 = arith.constant 0.797884583 : f32
    %328 = vector.broadcast %cst_135 : f32 to vector<16x64xf32>
    %329 = arith.mulf %328, %327 : vector<16x64xf32>
    %330 = math.tanh %329 : vector<16x64xf32>
    %cst_136 = arith.constant 1.000000e+00 : f32
    %331 = vector.broadcast %cst_136 : f32 to vector<16x64xf32>
    %332 = arith.addf %331, %330 : vector<16x64xf32>
    %333 = arith.mulf %322, %332 : vector<16x64xf32>
    %c1_137 = arith.constant 1 : index
    %c0_138 = arith.constant 0 : index
    %c0_139 = arith.constant 0 : index
    %334 = vector.load %arg14[%c1_137, %c0_138, %c0_139] : memref<2x64x32xf32, #tpu.memory_space<vmem>>, vector<1x64x32xf32>
    %335 = vector.shape_cast %334 : vector<1x64x32xf32> to vector<64x32xf32>
    %cst_140 = arith.constant dense<0.000000e+00> : vector<16x32xf32>
    %336 = tpu.matmul %333, %335, %cst_140 {dimension_numbers = #tpu.dot_dimension_numbers<[1], [0], [0], [1], [0, 0, 1, 1], [], []>} : vector<16x64xf32>, vector<64x32xf32>, vector<16x32xf32> -> vector<16x32xf32>
    %c1_141 = arith.constant 1 : index
    %c0_142 = arith.constant 0 : index
    %c0_143 = arith.constant 0 : index
    %337 = vector.load %arg15[%c1_141, %c0_142, %c0_143] : memref<2x1x32xf32, #tpu.memory_space<vmem>>, vector<1x1x32xf32>
    %338 = vector.shape_cast %337 : vector<1x1x32xf32> to vector<1x32xf32>
    %339 = vector.broadcast %338 : vector<1x32xf32> to vector<16x32xf32>
    %340 = arith.addf %336, %339 : vector<16x32xf32>
    %341 = arith.addf %313, %340 : vector<16x32xf32>
    %c1_144 = arith.constant 1 : index
    %c0_145 = arith.constant 0 : index
    %c0_146 = arith.constant 0 : index
    %342 = vector.load %arg16[%c1_144, %c0_145, %c0_146] : memref<2x1x32xf32, #tpu.memory_space<vmem>>, vector<1x1x32xf32>
    %343 = vector.shape_cast %342 : vector<1x1x32xf32> to vector<1x32xf32>
    %c1_147 = arith.constant 1 : index
    %c0_148 = arith.constant 0 : index
    %c0_149 = arith.constant 0 : index
    %344 = vector.load %arg17[%c1_147, %c0_148, %c0_149] : memref<2x1x32xf32, #tpu.memory_space<vmem>>, vector<1x1x32xf32>
    %345 = vector.shape_cast %344 : vector<1x1x32xf32> to vector<1x32xf32>
    %cst_150 = arith.constant dense<0.000000e+00> : vector<16xf32>
    %346 = vector.multi_reduction <add>, %341, %cst_150 [1] : vector<16x32xf32> to vector<16xf32>
    %347 = vector.shape_cast %346 : vector<16xf32> to vector<16x1xf32>
    %cst_151 = arith.constant 3.200000e+01 : f32
    %348 = vector.broadcast %cst_151 : f32 to vector<16x1xf32>
    %349 = arith.divf %347, %348 : vector<16x1xf32>
    %350 = vector.broadcast %349 : vector<16x1xf32> to vector<16x32xf32>
    %351 = arith.subf %341, %350 : vector<16x32xf32>
    %352 = arith.mulf %351, %351 : vector<16x32xf32>
    %cst_152 = arith.constant dense<0.000000e+00> : vector<16xf32>
    %353 = vector.multi_reduction <add>, %352, %cst_152 [1] : vector<16x32xf32> to vector<16xf32>
    %354 = vector.shape_cast %353 : vector<16xf32> to vector<16x1xf32>
    %cst_153 = arith.constant 3.200000e+01 : f32
    %355 = vector.broadcast %cst_153 : f32 to vector<16x1xf32>
    %356 = arith.divf %354, %355 : vector<16x1xf32>
    %cst_154 = arith.constant 9.99999996E-13 : f32
    %357 = vector.broadcast %cst_154 : f32 to vector<16x1xf32>
    %358 = arith.addf %356, %357 : vector<16x1xf32>
    %359 = math.rsqrt %358 : vector<16x1xf32>
    %360 = vector.broadcast %359 : vector<16x1xf32> to vector<16x32xf32>
    %361 = arith.mulf %351, %360 : vector<16x32xf32>
    %362 = vector.broadcast %343 : vector<1x32xf32> to vector<16x32xf32>
    %363 = arith.mulf %361, %362 : vector<16x32xf32>
    %364 = vector.broadcast %345 : vector<1x32xf32> to vector<16x32xf32>
    %365 = arith.addf %363, %364 : vector<16x32xf32>
    %366 = tpu.concatenate %29, %197, %365 in 0 : vector<16x32xf32>, vector<16x32xf32>, vector<16x32xf32> -> vector<48x32xf32>
    %c0_155 = arith.constant 0 : index
    %c0_156 = arith.constant 0 : index
    %367 = vector.load %arg18[%c0_155, %c0_156] : memref<32x32xf32, #tpu.memory_space<vmem>>, vector<32x32xf32>
    %cst_157 = arith.constant dense<0.000000e+00> : vector<48x32xf32>
    %368 = tpu.matmul %366, %367, %cst_157 {dimension_numbers = #tpu.dot_dimension_numbers<[1], [0], [0], [1], [0, 0, 1, 1], [], []>} : vector<48x32xf32>, vector<32x32xf32>, vector<48x32xf32> -> vector<48x32xf32>
    %c0_158 = arith.constant 0 : index
    %c0_159 = arith.constant 0 : index
    %369 = vector.load %arg19[%c0_158, %c0_159] : memref<1x32xf32, #tpu.memory_space<vmem>>, vector<1x32xf32>
    %370 = vector.broadcast %369 : vector<1x32xf32> to vector<48x32xf32>
    %371 = arith.addf %368, %370 : vector<48x32xf32>
    %cst_160 = arith.constant 5.000000e-01 : f32
    %372 = vector.broadcast %cst_160 : f32 to vector<48x32xf32>
    %373 = arith.mulf %372, %371 : vector<48x32xf32>
    %cst_161 = arith.constant 4.471500e-02 : f32
    %374 = vector.broadcast %cst_161 : f32 to vector<48x32xf32>
    %375 = arith.mulf %374, %371 : vector<48x32xf32>
    %376 = arith.mulf %375, %371 : vector<48x32xf32>
    %377 = arith.mulf %376, %371 : vector<48x32xf32>
    %378 = arith.addf %371, %377 : vector<48x32xf32>
    %cst_162 = arith.constant 0.797884583 : f32
    %379 = vector.broadcast %cst_162 : f32 to vector<48x32xf32>
    %380 = arith.mulf %379, %378 : vector<48x32xf32>
    %381 = math.tanh %380 : vector<48x32xf32>
    %cst_163 = arith.constant 1.000000e+00 : f32
    %382 = vector.broadcast %cst_163 : f32 to vector<48x32xf32>
    %383 = arith.addf %382, %381 : vector<48x32xf32>
    %384 = arith.mulf %373, %383 : vector<48x32xf32>
    %c0_164 = arith.constant 0 : index
    %c0_165 = arith.constant 0 : index
    %385 = vector.load %arg20[%c0_164, %c0_165] : memref<1x32xf32, #tpu.memory_space<vmem>>, vector<1x32xf32>
    %c0_166 = arith.constant 0 : index
    %c0_167 = arith.constant 0 : index
    %386 = vector.load %arg21[%c0_166, %c0_167] : memref<1x32xf32, #tpu.memory_space<vmem>>, vector<1x32xf32>
    %cst_168 = arith.constant dense<0.000000e+00> : vector<48xf32>
    %387 = vector.multi_reduction <add>, %384, %cst_168 [1] : vector<48x32xf32> to vector<48xf32>
    %388 = vector.shape_cast %387 : vector<48xf32> to vector<48x1xf32>
    %cst_169 = arith.constant 3.200000e+01 : f32
    %389 = vector.broadcast %cst_169 : f32 to vector<48x1xf32>
    %390 = arith.divf %388, %389 : vector<48x1xf32>
    %391 = vector.broadcast %390 : vector<48x1xf32> to vector<48x32xf32>
    %392 = arith.subf %384, %391 : vector<48x32xf32>
    %393 = arith.mulf %392, %392 : vector<48x32xf32>
    %cst_170 = arith.constant dense<0.000000e+00> : vector<48xf32>
    %394 = vector.multi_reduction <add>, %393, %cst_170 [1] : vector<48x32xf32> to vector<48xf32>
    %395 = vector.shape_cast %394 : vector<48xf32> to vector<48x1xf32>
    %cst_171 = arith.constant 3.200000e+01 : f32
    %396 = vector.broadcast %cst_171 : f32 to vector<48x1xf32>
    %397 = arith.divf %395, %396 : vector<48x1xf32>
    %cst_172 = arith.constant 9.99999996E-13 : f32
    %398 = vector.broadcast %cst_172 : f32 to vector<48x1xf32>
    %399 = arith.addf %397, %398 : vector<48x1xf32>
    %400 = math.rsqrt %399 : vector<48x1xf32>
    %401 = vector.broadcast %400 : vector<48x1xf32> to vector<48x32xf32>
    %402 = arith.mulf %392, %401 : vector<48x32xf32>
    %403 = vector.broadcast %385 : vector<1x32xf32> to vector<48x32xf32>
    %404 = arith.mulf %402, %403 : vector<48x32xf32>
    %405 = vector.broadcast %386 : vector<1x32xf32> to vector<48x32xf32>
    %406 = arith.addf %404, %405 : vector<48x32xf32>
    %c0_173 = arith.constant 0 : index
    %c0_174 = arith.constant 0 : index
    %407 = vector.load %arg22[%c0_173, %c0_174] : memref<32x128xf32, #tpu.memory_space<vmem>>, vector<32x128xf32>
    %cst_175 = arith.constant dense<0.000000e+00> : vector<48x128xf32>
    %408 = tpu.matmul %406, %407, %cst_175 {dimension_numbers = #tpu.dot_dimension_numbers<[1], [0], [0], [1], [0, 0, 1, 1], [], []>} : vector<48x32xf32>, vector<32x128xf32>, vector<48x128xf32> -> vector<48x128xf32>
    %c0_176 = arith.constant 0 : index
    %c0_177 = arith.constant 0 : index
    %409 = vector.load %arg23[%c0_176, %c0_177] : memref<1x128xf32, #tpu.memory_space<vmem>>, vector<1x128xf32>
    %410 = vector.broadcast %409 : vector<1x128xf32> to vector<48x128xf32>
    %411 = arith.addf %408, %410 : vector<48x128xf32>
    %c0_178 = arith.constant 0 : index
    %c0_179 = arith.constant 0 : index
    %412 = vector.load %arg24[%c0_178, %c0_179] : memref<48x128xf32, #tpu.memory_space<vmem>>, vector<48x128xf32>
    tpu.vector_store %arg24[%c0_178, %c0_179], %411 {strides = array<i32>} : memref<48x128xf32, #tpu.memory_space<vmem>>, vector<48x128xf32>,
    return
  }
}

</mosaic_0001>

<llo_original>
// kernel: tpu_custom_call.1
$region0: #{tpu_custom_call.1}
  #allocation0 [shape = 'u32[]', space=smem, size = 0x4, offset = 0x4, fixed_abs, tag = 'smem constant byte address 0x4 - core index']
  #allocation1 [shape = 'u32[144,128]{1,0:T(1,128)}', space=vmem, size = 0x12000, scoped, tag = 'internal scratch']
  %s0 = inlined_call_operand.hbm [shape: f32[16,32], index: 0, kind: input, shape index: {}]
  %s1 = inlined_call_operand.hbm [shape: f32[16,32], index: 1, kind: input, shape index: {}]
  %s2 = inlined_call_operand.hbm [shape: f32[32,32], index: 2, kind: input, shape index: {}]
  %s3 = inlined_call_operand.hbm [shape: f32[1,32], index: 3, kind: input, shape index: {}]
  %s4 = inlined_call_operand.hbm [shape: f32[1,32], index: 4, kind: input, shape index: {}]
  %s5 = inlined_call_operand.hbm [shape: f32[1,32], index: 5, kind: input, shape index: {}]
  %s6 = inlined_call_operand.vmem [shape: f32[2,32,96], index: 6, kind: input, shape index: {}]
  %s7 = inlined_call_operand.hbm [shape: f32[2,1,96], index: 7, kind: input, shape index: {}]
  %s8 = inlined_call_operand.vmem [shape: f32[2,32,32], index: 8, kind: input, shape index: {}]
  %s9 = inlined_call_operand.hbm [shape: f32[2,1,32], index: 9, kind: input, shape index: {}]
  %s10 = inlined_call_operand.hbm [shape: f32[2,1,32], index: 10, kind: input, shape index: {}]
  %s11 = inlined_call_operand.hbm [shape: f32[2,1,32], index: 11, kind: input, shape index: {}]
  %s12 = inlined_call_operand.vmem [shape: f32[2,32,64], index: 12, kind: input, shape index: {}]
  %s13 = inlined_call_operand.hbm [shape: f32[2,1,64], index: 13, kind: input, shape index: {}]
  %s14 = inlined_call_operand.vmem [shape: f32[2,64,32], index: 14, kind: input, shape index: {}]
  %s15 = inlined_call_operand.hbm [shape: f32[2,1,32], index: 15, kind: input, shape index: {}]
  %s16 = inlined_call_operand.hbm [shape: f32[2,1,32], index: 16, kind: input, shape index: {}]
  %s17 = inlined_call_operand.hbm [shape: f32[2,1,32], index: 17, kind: input, shape index: {}]
  %s18 = inlined_call_operand.vmem [shape: f32[32,32], index: 18, kind: input, shape index: {}]
  %s19 = inlined_call_operand.vmem [shape: f32[1,32], index: 19, kind: input, shape index: {}]
  %s20 = inlined_call_operand.vmem [shape: f32[1,32], index: 20, kind: input, shape index: {}]
  %s21 = inlined_call_operand.vmem [shape: f32[1,32], index: 21, kind: input, shape index: {}]
  %s22 = inlined_call_operand.vmem [shape: f32[32,128], index: 22, kind: input, shape index: {}]
  %s23 = inlined_call_operand.vmem [shape: f32[1,128], index: 23, kind: input, shape index: {}]
  %s24 = inlined_call_operand.hbm [shape: f32[48,128], index: 24, kind: output, shape index: {}]
  %s25 = sld [smem:[#allocation0]]
  $region162: #{tpu_custom_call.1} parent=0
    _
  %s27 = ssub.s32 1, %s25
  %s28 = scalar_select 0, %s27, %s25
  $region1: #{tpu_custom_call.1} parent=0
    #allocation2 [shape = 'u8[8192]{0}', space=vmem, size = 0x2000, scoped, tag = 'input window, operand 0, single buffered']
    #allocation3 [shape = 's32[1]{0}', space=sflag, size = 0x4, scoped, tag = 'scoped memory for tpu_custom_call.1']
    #allocation4 [shape = 's32[1]{0}', space=sflag, size = 0x4, scoped, tag = 'scoped memory for tpu_custom_call.1']
    #allocation5 [shape = 'u8[8192]{0}', space=vmem, size = 0x2000, scoped, tag = 'input window, operand 1, single buffered']
    #allocation6 [shape = 's32[1]{0}', space=sflag, size = 0x4, scoped, tag = 'scoped memory for tpu_custom_call.1']
    #allocation7 [shape = 'u8[16384]{0}', space=vmem, size = 0x4000, scoped, tag = 'input window, operand 2, single buffered']
    #allocation8 [shape = 'u8[512]{0}', space=vmem, size = 0x400, scoped, tag = 'input window, operand 3, single buffered']
    #allocation9 [shape = 's32[1]{0}', space=sflag, size = 0x4, scoped, tag = 'scoped memory for tpu_custom_call.1']
    #allocation10 [shape = 'u8[512]{0}', space=vmem, size = 0x400, scoped, tag = 'input window, operand 4, single buffered']
    #allocation11 [shape = 'u8[512]{0}', space=vmem, size = 0x400, scoped, tag = 'input window, operand 5, single buffered']
    #allocation12 [shape = 's32[1]{0}', space=sflag, size = 0x4, scoped, tag = 'scoped memory for tpu_custom_call.1']
    #allocation13 [shape = 'u8[1024]{0}', space=vmem, size = 0x400, scoped, tag = 'input window, operand 7, single buffered']
    #allocation14 [shape = 'u8[1024]{0}', space=vmem, size = 0x400, scoped, tag = 'input window, operand 9, single buffered']
    #allocation15 [shape = 's32[1]{0}', space=sflag, size = 0x4, scoped, tag = 'scoped memory for tpu_custom_call.1']
    #allocation16 [shape = 'u8[1024]{0}', space=vmem, size = 0x400, scoped, tag = 'input window, operand 10, single buffered']
    #allocation17 [shape = 'u8[1024]{0}', space=vmem, size = 0x400, scoped, tag = 'input window, operand 11, single buffered']
    #allocation18 [shape = 's32[1]{0}', space=sflag, size = 0x4, scoped, tag = 'scoped memory for tpu_custom_call.1']
    #allocation19 [shape = 'u8[1024]{0}', space=vmem, size = 0x400, scoped, tag = 'input window, operand 13, single buffered']
    #allocation20 [shape = 'u8[1024]{0}', space=vmem, size = 0x400, scoped, tag = 'input window, operand 15, single buffered']
    #allocation21 [shape = 's32[1]{0}', space=sflag, size = 0x4, scoped, tag = 'scoped memory for tpu_custom_call.1']
    #allocation22 [shape = 'u8[1024]{0}', space=vmem, size = 0x400, scoped, tag = 'input window, operand 16, single buffered']
    #allocation23 [shape = 'u8[1024]{0}', space=vmem, size = 0x400, scoped, tag = 'input window, operand 17, single buffered']
    #allocation24 [shape = 's32[1]{0}', space=sflag, size = 0x4, scoped, tag = 'scoped memory for tpu_custom_call.1']
    #allocation25 [shape = 'u8[24576]{0}', space=vmem, size = 0x6000, scoped, tag = 'output window, operand 0, single buffered']
    %29 = vsyncpa [#allocation3], 0
    %30 = vsyncpa [#allocation6], 0
    %31 = vsyncpa [#allocation9], 0
    %32 = vsyncpa [#allocation12], 0
    %33 = vsyncpa [#allocation15], 0
    %34 = vsyncpa [#allocation18], 0
    %35 = vsyncpa [#allocation21], 0
    %36 = vsyncpa [#allocation24], 0
    %37 = vsyncpa [#allocation4], 0
    // Predicated region
    $region2: #{tpu_custom_call.1} parent=1 // pred_check
      _
    $region3: #{tpu_custom_call.1} parent=1 // pred_check_branch
      %39 = sbr.rel (0) target = $region5
    $region4: #{tpu_custom_call.1} parent=1 // pred_region
      %s41 = ssub.s32 256, 256
      %42 = vsyncadd [#allocation3], %s41
      %s43 = sshll.u32 [#allocation2], 4
      %s44 = int_to_ptr.vmem [resolvable:$true] %s43
      %49 = dma.hbm_to_vmem [thread:$0]  %s0, 256, %s44, [#allocation3], 128, 128, 8
    $region5: #{tpu_custom_call.1} parent=1 // pred_fallthru
      _
    // Predicated region
    $region6: #{tpu_custom_call.1} parent=1 // pred_check
      _
    $region7: #{tpu_custom_call.1} parent=1 // pred_check_branch
      %51 = sbr.rel (0) target = $region9
    $region8: #{tpu_custom_call.1} parent=1 // pred_region
      %s53 = ssub.s32 256, 256
      %54 = vsyncadd [#allocation6], %s53
      %s55 = sshll.u32 [#allocation5], 4
      %s56 = int_to_ptr.vmem [resolvable:$true] %s55
      %61 = dma.hbm_to_vmem [thread:$0]  %s1, 256, %s56, [#allocation6], 128, 128, 8
    $region9: #{tpu_custom_call.1} parent=1 // pred_fallthru
      _
    // Predicated region
    $region10: #{tpu_custom_call.1} parent=1 // pred_check
      _
    $region11: #{tpu_custom_call.1} parent=1 // pred_check_branch
      %63 = sbr.rel (0) target = $region13
    $region12: #{tpu_custom_call.1} parent=1 // pred_region
      %s65 = ssub.s32 512, 512
      %66 = vsyncadd [#allocation6], %s65
      %s67 = sshll.u32 [#allocation7], 4
      %s68 = int_to_ptr.vmem [resolvable:$true] %s67
      %73 = dma.hbm_to_vmem [thread:$0]  %s2, 512, %s68, [#allocation6], 128, 128, 8
    $region13: #{tpu_custom_call.1} parent=1 // pred_fallthru
      _
    // Predicated region
    $region14: #{tpu_custom_call.1} parent=1 // pred_check
      _
    $region15: #{tpu_custom_call.1} parent=1 // pred_check_branch
      %75 = sbr.rel (0) target = $region17
    $region16: #{tpu_custom_call.1} parent=1 // pred_region
      %s77 = ssub.s32 16, 16
      %78 = vsyncadd [#allocation9], %s77
      %s80 = sshll.u32 [#allocation8], 4
      %s81 = int_to_ptr.vmem [resolvable:$true] %s80
      %83 = dma.hbm_to_vmem [thread:$0]  %s3, 16, %s81, [#allocation9]
    $region17: #{tpu_custom_call.1} parent=1 // pred_fallthru
      _
    // Predicated region
    $region18: #{tpu_custom_call.1} parent=1 // pred_check
      _
    $region19: #{tpu_custom_call.1} parent=1 // pred_check_branch
      %85 = sbr.rel (0) target = $region21
    $region20: #{tpu_custom_call.1} parent=1 // pred_region
      %s87 = ssub.s32 16, 16
      %88 = vsyncadd [#allocation9], %s87
      %s90 = sshll.u32 [#allocation10], 4
      %s91 = int_to_ptr.vmem [resolvable:$true] %s90
      %93 = dma.hbm_to_vmem [thread:$0]  %s4, 16, %s91, [#allocation9]
    $region21: #{tpu_custom_call.1} parent=1 // pred_fallthru
      _
    // Predicated region
    $region22: #{tpu_custom_call.1} parent=1 // pred_check
      _
    $region23: #{tpu_custom_call.1} parent=1 // pred_check_branch
      %95 = sbr.rel (0) target = $region25
    $region24: #{tpu_custom_call.1} parent=1 // pred_region
      %s97 = ssub.s32 16, 16
      %98 = vsyncadd [#allocation12], %s97
      %s100 = sshll.u32 [#allocation11], 4
      %s101 = int_to_ptr.vmem [resolvable:$true] %s100
      %103 = dma.hbm_to_vmem [thread:$0]  %s5, 16, %s101, [#allocation12]
    $region25: #{tpu_custom_call.1} parent=1 // pred_fallthru
      _
    // Predicated region
    $region26: #{tpu_custom_call.1} parent=1 // pred_check
      _
    $region27: #{tpu_custom_call.1} parent=1 // pred_check_branch
      %105 = sbr.rel (0) target = $region29
    $region28: #{tpu_custom_call.1} parent=1 // pred_region
      _
    $region29: #{tpu_custom_call.1} parent=1 // pred_fallthru
      _
    // Predicated region
    $region30: #{tpu_custom_call.1} parent=1 // pred_check
      _
    $region31: #{tpu_custom_call.1} parent=1 // pred_check_branch
      %107 = sbr.rel (0) target = $region33
    $region32: #{tpu_custom_call.1} parent=1 // pred_region
      %s109 = ssub.s32 32, 32
      %110 = vsyncadd [#allocation12], %s109
      %s111 = sshll.u32 [#allocation13], 4
      %s112 = int_to_ptr.vmem [resolvable:$true] %s111
      %117 = dma.hbm_to_vmem [thread:$0]  %s7, 32, %s112, [#allocation12], 16, 16, 1
    $region33: #{tpu_custom_call.1} parent=1 // pred_fallthru
      _
    // Predicated region
    $region34: #{tpu_custom_call.1} parent=1 // pred_check
      _
    $region35: #{tpu_custom_call.1} parent=1 // pred_check_branch
      %119 = sbr.rel (0) target = $region37
    $region36: #{tpu_custom_call.1} parent=1 // pred_region
      _
    $region37: #{tpu_custom_call.1} parent=1 // pred_fallthru
      _
    // Predicated region
    $region38: #{tpu_custom_call.1} parent=1 // pred_check
      _
    $region39: #{tpu_custom_call.1} parent=1 // pred_check_branch
      %121 = sbr.rel (0) target = $region41
    $region40: #{tpu_custom_call.1} parent=1 // pred_region
      %s123 = ssub.s32 32, 32
      %124 = vsyncadd [#allocation15], %s123
      %s125 = sshll.u32 [#allocation14], 4
      %s126 = int_to_ptr.vmem [resolvable:$true] %s125
      %131 = dma.hbm_to_vmem [thread:$0]  %s9, 32, %s126, [#allocation15], 16, 16, 1
    $region41: #{tpu_custom_call.1} parent=1 // pred_fallthru
      _
    // Predicated region
    $region42: #{tpu_custom_call.1} parent=1 // pred_check
      _
    $region43: #{tpu_custom_call.1} parent=1 // pred_check_branch
      %133 = sbr.rel (0) target = $region45
    $region44: #{tpu_custom_call.1} parent=1 // pred_region
      %s135 = ssub.s32 32, 32
      %136 = vsyncadd [#allocation15], %s135
      %s137 = sshll.u32 [#allocation16], 4
      %s138 = int_to_ptr.vmem [resolvable:$true] %s137
      %143 = dma.hbm_to_vmem [thread:$0]  %s10, 32, %s138, [#allocation15], 16, 16, 1
    $region45: #{tpu_custom_call.1} parent=1 // pred_fallthru
      _
    // Predicated region
    $region46: #{tpu_custom_call.1} parent=1 // pred_check
      _
    $region47: #{tpu_custom_call.1} parent=1 // pred_check_branch
      %145 = sbr.rel (0) target = $region49
    $region48: #{tpu_custom_call.1} parent=1 // pred_region
      %s147 = ssub.s32 32, 32
      %148 = vsyncadd [#allocation18], %s147
      %s149 = sshll.u32 [#allocation17], 4
      %s150 = int_to_ptr.vmem [resolvable:$true] %s149
      %155 = dma.hbm_to_vmem [thread:$0]  %s11, 32, %s150, [#allocation18], 16, 16, 1
    $region49: #{tpu_custom_call.1} parent=1 // pred_fallthru
      _
    // Predicated region
    $region50: #{tpu_custom_call.1} parent=1 // pred_check
      _
    $region51: #{tpu_custom_call.1} parent=1 // pred_check_branch
      %157 = sbr.rel (0) target = $region53
    $region52: #{tpu_custom_call.1} parent=1 // pred_region
      _
    $region53: #{tpu_custom_call.1} parent=1 // pred_fallthru
      _
    // Predicated region
    $region54: #{tpu_custom_call.1} parent=1 // pred_check
      _
    $region55: #{tpu_custom_call.1} parent=1 // pred_check_branch
      %159 = sbr.rel (0) target = $region57
    $region56: #{tpu_custom_call.1} parent=1 // pred_region
      %s161 = ssub.s32 32, 32
      %162 = vsyncadd [#allocation18], %s161
      %s163 = sshll.u32 [#allocation19], 4
      %s164 = int_to_ptr.vmem [resolvable:$true] %s163
      %169 = dma.hbm_to_vmem [thread:$0]  %s13, 32, %s164, [#allocation18], 16, 16, 1
    $region57: #{tpu_custom_call.1} parent=1 // pred_fallthru
      _
    // Predicated region
    $region58: #{tpu_custom_call.1} parent=1 // pred_check
      _
    $region59: #{tpu_custom_call.1} parent=1 // pred_check_branch
      %171 = sbr.rel (0) target = $region61
    $region60: #{tpu_custom_call.1} parent=1 // pred_region
      _
    $region61: #{tpu_custom_call.1} parent=1 // pred_fallthru
      _
    // Predicated region
    $region62: #{tpu_custom_call.1} parent=1 // pred_check
      _
    $region63: #{tpu_custom_call.1} parent=1 // pred_check_branch
      %173 = sbr.rel (0) target = $region65
    $region64: #{tpu_custom_call.1} parent=1 // pred_region
      %s175 = ssub.s32 32, 32
      %176 = vsyncadd [#allocation21], %s175
      %s177 = sshll.u32 [#allocation20], 4
      %s178 = int_to_ptr.vmem [resolvable:$true] %s177
      %183 = dma.hbm_to_vmem [thread:$0]  %s15, 32, %s178, [#allocation21], 16, 16, 1
    $region65: #{tpu_custom_call.1} parent=1 // pred_fallthru
      _
    // Predicated region
    $region66: #{tpu_custom_call.1} parent=1 // pred_check
      _
    $region67: #{tpu_custom_call.1} parent=1 // pred_check_branch
      %185 = sbr.rel (0) target = $region69
    $region68: #{tpu_custom_call.1} parent=1 // pred_region
      %s187 = ssub.s32 32, 32
      %188 = vsyncadd [#allocation21], %s187
      %s189 = sshll.u32 [#allocation22], 4
      %s190 = int_to_ptr.vmem [resolvable:$true] %s189
      %195 = dma.hbm_to_vmem [thread:$0]  %s16, 32, %s190, [#allocation21], 16, 16, 1
    $region69: #{tpu_custom_call.1} parent=1 // pred_fallthru
      _
    // Predicated region
    $region70: #{tpu_custom_call.1} parent=1 // pred_check
      _
    $region71: #{tpu_custom_call.1} parent=1 // pred_check_branch
      %197 = sbr.rel (0) target = $region73
    $region72: #{tpu_custom_call.1} parent=1 // pred_region
      %s199 = ssub.s32 32, 32
      %200 = vsyncadd [#allocation24], %s199
      %s201 = sshll.u32 [#allocation23], 4
      %s202 = int_to_ptr.vmem [resolvable:$true] %s201
      %207 = dma.hbm_to_vmem [thread:$0]  %s17, 32, %s202, [#allocation24], 16, 16, 1
    $region73: #{tpu_custom_call.1} parent=1 // pred_fallthru
      _
    // Predicated region
    $region74: #{tpu_custom_call.1} parent=1 // pred_check
      _
    $region75: #{tpu_custom_call.1} parent=1 // pred_check_branch
      %209 = sbr.rel (0) target = $region77
    $region76: #{tpu_custom_call.1} parent=1 // pred_region
      _
    $region77: #{tpu_custom_call.1} parent=1 // pred_fallthru
      _
    // Predicated region
    $region78: #{tpu_custom_call.1} parent=1 // pred_check
      _
    $region79: #{tpu_custom_call.1} parent=1 // pred_check_branch
      %211 = sbr.rel (0) target = $region81
    $region80: #{tpu_custom_call.1} parent=1 // pred_region
      _
    $region81: #{tpu_custom_call.1} parent=1 // pred_fallthru
      _
    // Predicated region
    $region82: #{tpu_custom_call.1} parent=1 // pred_check
      _
    $region83: #{tpu_custom_call.1} parent=1 // pred_check_branch
      %213 = sbr.rel (0) target = $region85
    $region84: #{tpu_custom_call.1} parent=1 // pred_region
      _
    $region85: #{tpu_custom_call.1} parent=1 // pred_fallthru
      _
    // Predicated region
    $region86: #{tpu_custom_call.1} parent=1 // pred_check
      _
    $region87: #{tpu_custom_call.1} parent=1 // pred_check_branch
      %215 = sbr.rel (0) target = $region89
    $region88: #{tpu_custom_call.1} parent=1 // pred_region
      _
    $region89: #{tpu_custom_call.1} parent=1 // pred_fallthru
      _
    // Predicated region
    $region90: #{tpu_custom_call.1} parent=1 // pred_check
      _
    $region91: #{tpu_custom_call.1} parent=1 // pred_check_branch
      %217 = sbr.rel (0) target = $region93
    $region92: #{tpu_custom_call.1} parent=1 // pred_region
      _
    $region93: #{tpu_custom_call.1} parent=1 // pred_fallthru
      _
    // Predicated region
    $region94: #{tpu_custom_call.1} parent=1 // pred_check
      _
    $region95: #{tpu_custom_call.1} parent=1 // pred_check_branch
      %219 = sbr.rel (0) target = $region97
    $region96: #{tpu_custom_call.1} parent=1 // pred_region
      _
    $region97: #{tpu_custom_call.1} parent=1 // pred_fallthru
      _
    // Predicated region
    $region98: #{tpu_custom_call.1} parent=1 // pred_check
      _
    $region99: #{tpu_custom_call.1} parent=1 // pred_check_branch
      %221 = sbr.rel (0) target = $region101
    $region100: #{tpu_custom_call.1} parent=1 // pred_region
      %222 = dma.done [#allocation3], 256
    $region101: #{tpu_custom_call.1} parent=1 // pred_fallthru
      _
    // Predicated region
    $region102: #{tpu_custom_call.1} parent=1 // pred_check
      _
    $region103: #{tpu_custom_call.1} parent=1 // pred_check_branch
      %224 = sbr.rel (0) target = $region105
    $region104: #{tpu_custom_call.1} parent=1 // pred_region
      %225 = dma.done [#allocation6], 256
    $region105: #{tpu_custom_call.1} parent=1 // pred_fallthru
      _
    // Predicated region
    $region106: #{tpu_custom_call.1} parent=1 // pred_check
      _
    $region107: #{tpu_custom_call.1} parent=1 // pred_check_branch
      %227 = sbr.rel (0) target = $region109
    $region108: #{tpu_custom_call.1} parent=1 // pred_region
      %228 = dma.done [#allocation6], 512
    $region109: #{tpu_custom_call.1} parent=1 // pred_fallthru
      _
    // Predicated region
    $region110: #{tpu_custom_call.1} parent=1 // pred_check
      _
    $region111: #{tpu_custom_call.1} parent=1 // pred_check_branch
      %230 = sbr.rel (0) target = $region113
    $region112: #{tpu_custom_call.1} parent=1 // pred_region
      %231 = dma.done [#allocation9], 16
    $region113: #{tpu_custom_call.1} parent=1 // pred_fallthru
      _
    // Predicated region
    $region114: #{tpu_custom_call.1} parent=1 // pred_check
      _
    $region115: #{tpu_custom_call.1} parent=1 // pred_check_branch
      %233 = sbr.rel (0) target = $region117
    $region116: #{tpu_custom_call.1} parent=1 // pred_region
      %234 = dma.done [#allocation9], 16
    $region117: #{tpu_custom_call.1} parent=1 // pred_fallthru
      _
    // Predicated region
    $region118: #{tpu_custom_call.1} parent=1 // pred_check
      _
    $region119: #{tpu_custom_call.1} parent=1 // pred_check_branch
      %236 = sbr.rel (0) target = $region121
    $region120: #{tpu_custom_call.1} parent=1 // pred_region
      %237 = dma.done [#allocation12], 16
    $region121: #{tpu_custom_call.1} parent=1 // pred_fallthru
      _
    // Predicated region
    $region122: #{tpu_custom_call.1} parent=1 // pred_check
      _
    $region123: #{tpu_custom_call.1} parent=1 // pred_check_branch
      %239 = sbr.rel (0) target = $region125
    $region124: #{tpu_custom_call.1} parent=1 // pred_region
      %240 = dma.done [#allocation12], 32
    $region125: #{tpu_custom_call.1} parent=1 // pred_fallthru
      _
    // Predicated region
    $region126: #{tpu_custom_call.1} parent=1 // pred_check
      _
    $region127: #{tpu_custom_call.1} parent=1 // pred_check_branch
      %242 = sbr.rel (0) target = $region129
    $region128: #{tpu_custom_call.1} parent=1 // pred_region
      %243 = dma.done [#allocation15], 32
    $region129: #{tpu_custom_call.1} parent=1 // pred_fallthru
      _
    // Predicated region
    $region130: #{tpu_custom_call.1} parent=1 // pred_check
      _
    $region131: #{tpu_custom_call.1} parent=1 // pred_check_branch
      %245 = sbr.rel (0) target = $region133
    $region132: #{tpu_custom_call.1} parent=1 // pred_region
      %246 = dma.done [#allocation15], 32
    $region133: #{tpu_custom_call.1} parent=1 // pred_fallthru
      _
    // Predicated region
    $region134: #{tpu_custom_call.1} parent=1 // pred_check
      _
    $region135: #{tpu_custom_call.1} parent=1 // pred_check_branch
      %248 = sbr.rel (0) target = $region137
    $region136: #{tpu_custom_call.1} parent=1 // pred_region
      %249 = dma.done [#allocation18], 32
    $region137: #{tpu_custom_call.1} parent=1 // pred_fallthru
      _
    // Predicated region
    $region138: #{tpu_custom_call.1} parent=1 // pred_check
      _
    $region139: #{tpu_custom_call.1} parent=1 // pred_check_branch
      %251 = sbr.rel (0) target = $region141
    $region140: #{tpu_custom_call.1} parent=1 // pred_region
      %252 = dma.done [#allocation18], 32
    $region141: #{tpu_custom_call.1} parent=1 // pred_fallthru
      _
    // Predicated region
    $region142: #{tpu_custom_call.1} parent=1 // pred_check
      _
    $region143: #{tpu_custom_call.1} parent=1 // pred_check_branch
      %254 = sbr.rel (0) target = $region145
    $region144: #{tpu_custom_call.1} parent=1 // pred_region
      %255 = dma.done [#allocation21], 32
    $region145: #{tpu_custom_call.1} parent=1 // pred_fallthru
      _
    // Predicated region
    $region146: #{tpu_custom_call.1} parent=1 // pred_check
      _
    $region147: #{tpu_custom_call.1} parent=1 // pred_check_branch
      %257 = sbr.rel (0) target = $region149
    $region148: #{tpu_custom_call.1} parent=1 // pred_region
      %258 = dma.done [#allocation21], 32
    $region149: #{tpu_custom_call.1} parent=1 // pred_fallthru
      _
    // Predicated region
    $region150: #{tpu_custom_call.1} parent=1 // pred_check
      _
    $region151: #{tpu_custom_call.1} parent=1 // pred_check_branch
      %260 = sbr.rel (0) target = $region153
    $region152: #{tpu_custom_call.1} parent=1 // pred_region
      %261 = dma.done [#allocation24], 32
    $region153: #{tpu_custom_call.1} parent=1 // pred_fallthru
      _
    %v262 = vld [vmem:[#allocation2] sm:$0xff]
    %v263 = vld [vmem:[#allocation2 + $0x8] sm:$0xff]
    %v264 = vld [vmem:[#allocation7] sm:$0xff]
    %v265 = vld [vmem:[#allocation7 + $0x8] sm:$0xff]
    %v266 = vld [vmem:[#allocation7 + $0x10] sm:$0xff]
    %v267 = vld [vmem:[#allocation7 + $0x18] sm:$0xff]
    %v268 = vld [vmem:[#allocation8] sm:$0x1]
    %v270 = vlaneseq
    %v271 = vshrl.u32 %v270, 7
    %v272 = vsub.s32 0, %v271
    %v273 = vrot.slane %v268, %v272
    %vm275 = vcmask 261120
    %v277 = vsel %vm275, %v262, 0
    %v280 = vsel %vm275, %v263, 0
    %282 = vmatprep.subr.mxu0 0.0
    %283 = vmatpush1.msra.mxu0 %v264
    %284 = vmatprep.subr.mxu0 0.0
    %285 = vmatpush1.msra.mxu0 %v265
    %286 = vmatprep.subr.mxu0 0.0
    %287 = vmatpush1.msra.mxu0 %v266
    %288 = vmatprep.subr.mxu0 0.0
    %289 = vmatpush1.msra.mxu0 %v267
    %290 = vmatprep.subr.mxu0 0.0
    %291 = vmatpush1.msra.mxu0 0.0
    %292 = vmatprep.subr.mxu0 0.0
    %293 = vmatpush1.msra.mxu0 0.0
    %294 = vmatprep.subr.mxu0 0.0
    %295 = vmatpush1.msra.mxu0 0.0
    %296 = vmatprep.subr.mxu0 0.0
    %297 = vmatpush1.msra.mxu0 0.0
    %298 = vmatprep.subr.mxu0 0.0
    %299 = vmatpush1.msra.mxu0 0.0
    %300 = vmatprep.subr.mxu0 0.0
    %301 = vmatpush1.msra.mxu0 0.0
    %302 = vmatprep.subr.mxu0 0.0
    %303 = vmatpush1.msra.mxu0 0.0
    %304 = vmatprep.subr.mxu0 0.0
    %305 = vmatpush1.msra.mxu0 0.0
    %306 = vmatprep.subr.mxu0 0.0
    %307 = vmatpush1.msra.mxu0 0.0
    %308 = vmatprep.subr.mxu0 0.0
    %309 = vmatpush1.msra.mxu0 0.0
    %310 = vmatprep.subr.mxu0 0.0
    %311 = vmatpush1.msra.mxu0 0.0
    %312 = vmatprep.subr.mxu0 0.0
    %313 = vmatpush1.msra.mxu0 0.0
    %314 = vmatprep.subr.mxu0 0.0
    %315 = vmatpush1.msra.mxu0 0.0
    %316 = vmatprep.subr.mxu0 0.0
    %317 = vmatpush1.msra.mxu0 0.0
    %318 = vmatprep.subr.mxu0 0.0
    %319 = vmatpush1.msra.mxu0 0.0
    %320 = vmatprep.subr.mxu0 0.0
    %321 = vmatpush1.msra.mxu0 0.0
    %322 = vmatprep.subr.mxu0 0.0
    %323 = vmatpush1.msra.mxu0 0.0
    %324 = vmatprep.subr.mxu0 0.0
    %325 = vmatpush1.msra.mxu0 0.0
    %326 = vmatprep.subr.mxu0 0.0
    %327 = vmatpush1.msra.mxu0 0.0
    %328 = vmatprep.subr.mxu0 0.0
    %329 = vmatpush1.msra.mxu0 0.0
    %330 = vmatprep.subr.mxu0 0.0
    %331 = vmatpush1.msra.mxu0 0.0
    %332 = vmatprep.subr.mxu0 0.0
    %333 = vmatpush1.msra.mxu0 0.0
    %334 = vmatprep.subr.mxu0 0.0
    %335 = vmatpush1.msra.mxu0 0.0
    %336 = vmatprep.subr.mxu0 0.0
    %337 = vmatpush1.msra.mxu0 0.0
    %338 = vmatprep.subr.mxu0 0.0
    %339 = vmatpush1.msra.mxu0 0.0
    %340 = vmatprep.subr.mxu0 0.0
    %341 = vmatpush1.msra.mxu0 0.0
    %342 = vmatprep.subr.mxu0 0.0
    %343 = vmatpush1.msra.mxu0 0.0
    %344 = vmatprep.subr.mxu0 0.0
    %345 = vmatpush1.msra.mxu0 0.0
    %346 = vmatprep.mubr.f32.mxu0 0.0
    %347 = vmatmul.mubr.f32.gmra.mrb[0].mxu0 %v277
    %v348 = vpop.f32.mrb[0].mxu0
    %v349 = vadd.f32 %v273, %v348
    %v350 = vpop.f32.mrb[0].mxu0
    %351 = vmatprep.mubr.f32.mxu0 0.0
    %352 = vmatmul.mubr.f32.gmra.mrb[0].mxu0 %v280
    %v353 = vpop.f32.mrb[0].mxu0
    %v354 = vadd.f32 %v273, %v353
    %v355 = vpop.f32.mrb[0].mxu0
    %356 = vdwg.mxu0
    %v357 = vld [vmem:[#allocation5] sm:$0xff]
    %v358 = vld [vmem:[#allocation5 + $0x8] sm:$0xff]
    %v359 = vadd.f32 %v349, %v357
    %v360 = vadd.f32 %v354, %v358
    %v361 = vld [vmem:[#allocation10] sm:$0x1]
    %v362 = vld [vmem:[#allocation11] sm:$0x1]
    %v363 = vsel %vm275, %v359, 0.0
    %364 = vadd.xlane.f32.xlu0 %v363
    %v365 = vpop.xlane.xlu0 %364
    %v366 = vsel %vm275, %v360, 0.0
    %367 = vadd.xlane.f32.xlu0 %v366
    %v368 = vpop.xlane.xlu0 %367
    %v369 = vrcp.pop 32.0
    %v370 = vmul.f32 %v365, %v369
    %v371 = vmul.f32 %v368, %v369
    %v372 = vsub.f32 %v359, %v370
    %v373 = vsub.f32 %v360, %v371
    %v374 = vmul.f32 %v372, %v372
    %v375 = vmul.f32 %v373, %v373
    %v376 = vsel %vm275, %v374, 0.0
    %377 = vadd.xlane.f32.xlu0 %v376
    %v378 = vpop.xlane.xlu0 %377
    %v379 = vsel %vm275, %v375, 0.0
    %380 = vadd.xlane.f32.xlu0 %v379
    %v381 = vpop.xlane.xlu0 %380
    %v382 = vmul.f32 %v378, %v369
    %v383 = vmul.f32 %v381, %v369
    %v384 = vadd.f32 %v382, 1e-12
    %v385 = vadd.f32 %v383, 1e-12
    %v386 = vrsqrt.pop %v384
    %v387 = vrsqrt.pop %v385
    %v388 = vmul.f32 %v372, %v386
    %v389 = vmul.f32 %v373, %v387
    %v391 = vlaneseq
    %v392 = vshrl.u32 %v391, 7
    %v393 = vsub.s32 0, %v392
    %v394 = vrot.slane %v361, %v393
    %v396 = vmul.f32 %v388, %v394
    %v397 = vmul.f32 %v389, %v394
    %v399 = vlaneseq
    %v400 = vshrl.u32 %v399, 7
    %v401 = vsub.s32 0, %v400
    %v402 = vrot.slane %v362, %v401
    %v404 = vadd.f32 %v396, %v402
    %v405 = vadd.f32 %v397, %v402
    %v406 = vld [vmem:[%s6] sm:$0xff]
    %v407 = vld [vmem:[%s6 + $0x8] sm:$0xff]
    %v408 = vld [vmem:[%s6 + $0x10] sm:$0xff]
    %v409 = vld [vmem:[%s6 + $0x18] sm:$0xff]
    %v410 = vld [vmem:[#allocation13] sm:$0x1]
    %v412 = vlaneseq
    %v413 = vshrl.u32 %v412, 7
    %v414 = vsub.s32 0, %v413
    %v415 = vrot.slane %v410, %v414
    %v418 = vsel %vm275, %v404, 0
    %v421 = vsel %vm275, %v405, 0
    %423 = vmatprep.subr.mxu0 0.0
    %424 = vmatpush1.msra.mxu0 %v406
    %425 = vmatprep.subr.mxu0 0.0
    %426 = vmatpush1.msra.mxu0 %v407
    %427 = vmatprep.subr.mxu0 0.0
    %428 = vmatpush1.msra.mxu0 %v408
    %429 = vmatprep.subr.mxu0 0.0
    %430 = vmatpush1.msra.mxu0 %v409
    %431 = vmatprep.subr.mxu0 0.0
    %432 = vmatpush1.msra.mxu0 0.0
    %433 = vmatprep.subr.mxu0 0.0
    %434 = vmatpush1.msra.mxu0 0.0
    %435 = vmatprep.subr.mxu0 0.0
    %436 = vmatpush1.msra.mxu0 0.0
    %437 = vmatprep.subr.mxu0 0.0
    %438 = vmatpush1.msra.mxu0 0.0
    %439 = vmatprep.subr.mxu0 0.0
    %440 = vmatpush1.msra.mxu0 0.0
    %441 = vmatprep.subr.mxu0 0.0
    %442 = vmatpush1.msra.mxu0 0.0
    %443 = vmatprep.subr.mxu0 0.0
    %444 = vmatpush1.msra.mxu0 0.0
    %445 = vmatprep.subr.mxu0 0.0
    %446 = vmatpush1.msra.mxu0 0.0
    %447 = vmatprep.subr.mxu0 0.0
    %448 = vmatpush1.msra.mxu0 0.0
    %449 = vmatprep.subr.mxu0 0.0
    %450 = vmatpush1.msra.mxu0 0.0
    %451 = vmatprep.subr.mxu0 0.0
    %452 = vmatpush1.msra.mxu0 0.0
    %453 = vmatprep.subr.mxu0 0.0
    %454 = vmatpush1.msra.mxu0 0.0
    %455 = vmatprep.subr.mxu0 0.0
    %456 = vmatpush1.msra.mxu0 0.0
    %457 = vmatprep.subr.mxu0 0.0
    %458 = vmatpush1.msra.mxu0 0.0
    %459 = vmatprep.subr.mxu0 0.0
    %460 = vmatpush1.msra.mxu0 0.0
    %461 = vmatprep.subr.mxu0 0.0
    %462 = vmatpush1.msra.mxu0 0.0
    %463 = vmatprep.subr.mxu0 0.0
    %464 = vmatpush1.msra.mxu0 0.0
    %465 = vmatprep.subr.mxu0 0.0
    %466 = vmatpush1.msra.mxu0 0.0
    %467 = vmatprep.subr.mxu0 0.0
    %468 = vmatpush1.msra.mxu0 0.0
    %469 = vmatprep.subr.mxu0 0.0
    %470 = vmatpush1.msra.mxu0 0.0
    %471 = vmatprep.subr.mxu0 0.0
    %472 = vmatpush1.msra.mxu0 0.0
    %473 = vmatprep.subr.mxu0 0.0
    %474 = vmatpush1.msra.mxu0 0.0
    %475 = vmatprep.subr.mxu0 0.0
    %476 = vmatpush1.msra.mxu0 0.0
    %477 = vmatprep.subr.mxu0 0.0
    %478 = vmatpush1.msra.mxu0 0.0
    %479 = vmatprep.subr.mxu0 0.0
    %480 = vmatpush1.msra.mxu0 0.0
    %481 = vmatprep.subr.mxu0 0.0
    %482 = vmatpush1.msra.mxu0 0.0
    %483 = vmatprep.subr.mxu0 0.0
    %484 = vmatpush1.msra.mxu0 0.0
    %485 = vmatprep.subr.mxu0 0.0
    %486 = vmatpush1.msra.mxu0 0.0
    %487 = vmatprep.mubr.f32.mxu0 0.0
    %488 = vmatmul.mubr.f32.gmra.mrb[0].mxu0 %v418
    %v489 = vpop.f32.mrb[0].mxu0
    %v490 = vadd.f32 %v415, %v489
    %v491 = vpop.f32.mrb[0].mxu0
    %492 = vmatprep.mubr.f32.mxu0 0.0
    %493 = vmatmul.mubr.f32.gmra.mrb[0].mxu0 %v421
    %v494 = vpop.f32.mrb[0].mxu0
    %v495 = vadd.f32 %v415, %v494
    %v496 = vpop.f32.mrb[0].mxu0
    %497 = vdwg.mxu0
    %499 = vrot.lane.b32.xlu0 %v490, 96
    %v500 = vpop.permute.xlu0 %499
    %vm501 = vcmask 64512
    %v502 = vsel %vm501, %v490, 0
    %v504 = vsel %vm501, %v500, 0
    %506 = vmatprep.subr.mxu0 0.0
    %507 = vmatpush1.xpose.msra.mxu0 %v504
    %508 = vmatprep.subr.mxu0 0.0
    %509 = vmatpush1.xpose.msra.mxu0 0.0
    %510 = vmatprep.subr.mxu0 0.0
    %511 = vmatpush1.xpose.msra.mxu0 0.0
    %512 = vmatprep.subr.mxu0 0.0
    %513 = vmatpush1.xpose.msra.mxu0 0.0
    %514 = vmatprep.subr.mxu0 0.0
    %515 = vmatpush1.xpose.msra.mxu0 0.0
    %516 = vmatprep.subr.mxu0 0.0
    %517 = vmatpush1.xpose.msra.mxu0 0.0
    %518 = vmatprep.subr.mxu0 0.0
    %519 = vmatpush1.xpose.msra.mxu0 0.0
    %520 = vmatprep.subr.mxu0 0.0
    %521 = vmatpush1.xpose.msra.mxu0 0.0
    %522 = vmatprep.subr.mxu0 0.0
    %523 = vmatpush1.xpose.msra.mxu0 0.0
    %524 = vmatprep.subr.mxu0 0.0
    %525 = vmatpush1.xpose.msra.mxu0 0.0
    %526 = vmatprep.subr.mxu0 0.0
    %527 = vmatpush1.xpose.msra.mxu0 0.0
    %528 = vmatprep.subr.mxu0 0.0
    %529 = vmatpush1.xpose.msra.mxu0 0.0
    %530 = vmatprep.subr.mxu0 0.0
    %531 = vmatpush1.xpose.msra.mxu0 0.0
    %532 = vmatprep.subr.mxu0 0.0
    %533 = vmatpush1.xpose.msra.mxu0 0.0
    %534 = vmatprep.subr.mxu0 0.0
    %535 = vmatpush1.xpose.msra.mxu0 0.0
    %536 = vmatprep.subr.mxu0 0.0
    %537 = vmatpush1.xpose.msra.mxu0 0.0
    %538 = vmatprep.subr.mxu0 0.0
    %539 = vmatpush1.xpose.msra.mxu0 0.0
    %540 = vmatprep.subr.mxu0 0.0
    %541 = vmatpush1.xpose.msra.mxu0 0.0
    %542 = vmatprep.subr.mxu0 0.0
    %543 = vmatpush1.xpose.msra.mxu0 0.0
    %544 = vmatprep.subr.mxu0 0.0
    %545 = vmatpush1.xpose.msra.mxu0 0.0
    %546 = vmatprep.subr.mxu0 0.0
    %547 = vmatpush1.xpose.msra.mxu0 0.0
    %548 = vmatprep.subr.mxu0 0.0
    %549 = vmatpush1.xpose.msra.mxu0 0.0
    %550 = vmatprep.subr.mxu0 0.0
    %551 = vmatpush1.xpose.msra.mxu0 0.0
    %552 = vmatprep.subr.mxu0 0.0
    %553 = vmatpush1.xpose.msra.mxu0 0.0
    %554 = vmatprep.subr.mxu0 0.0
    %555 = vmatpush1.xpose.msra.mxu0 0.0
    %556 = vmatprep.subr.mxu0 0.0
    %557 = vmatpush1.xpose.msra.mxu0 0.0
    %558 = vmatprep.subr.mxu0 0.0
    %559 = vmatpush1.xpose.msra.mxu0 0.0
    %560 = vmatprep.subr.mxu0 0.0
    %561 = vmatpush1.xpose.msra.mxu0 0.0
    %562 = vmatprep.subr.mxu0 0.0
    %563 = vmatpush1.xpose.msra.mxu0 0.0
    %564 = vmatprep.subr.mxu0 0.0
    %565 = vmatpush1.xpose.msra.mxu0 0.0
    %566 = vmatprep.subr.mxu0 0.0
    %567 = vmatpush1.xpose.msra.mxu0 0.0
    %568 = vmatprep.subr.mxu0 0.0
    %569 = vmatpush1.xpose.msra.mxu0 0.0
    %570 = vmatprep.mubr.f32.mxu0 0.0
    %571 = vmatmul.mubr.f32.gmra.mrb[0].mxu0 %v502
    %v572 = vpop.f32.mrb[0].mxu0
    %v573 = vadd.f32 0.0, %v572
    %v574 = vpop.f32.mrb[0].mxu0
    %575 = vdwg.mxu0
    %577 = vrot.lane.b32.xlu0 %v495, 96
    %v578 = vpop.permute.xlu0 %577
    %v579 = vsel %vm501, %v495, 0
    %v581 = vsel %vm501, %v578, 0
    %583 = vmatprep.subr.mxu0 0.0
    %584 = vmatpush1.xpose.msra.mxu0 %v581
    %585 = vmatprep.subr.mxu0 0.0
    %586 = vmatpush1.xpose.msra.mxu0 0.0
    %587 = vmatprep.subr.mxu0 0.0
    %588 = vmatpush1.xpose.msra.mxu0 0.0
    %589 = vmatprep.subr.mxu0 0.0
    %590 = vmatpush1.xpose.msra.mxu0 0.0
    %591 = vmatprep.subr.mxu0 0.0
    %592 = vmatpush1.xpose.msra.mxu0 0.0
    %593 = vmatprep.subr.mxu0 0.0
    %594 = vmatpush1.xpose.msra.mxu0 0.0
    %595 = vmatprep.subr.mxu0 0.0
    %596 = vmatpush1.xpose.msra.mxu0 0.0
    %597 = vmatprep.subr.mxu0 0.0
    %598 = vmatpush1.xpose.msra.mxu0 0.0
    %599 = vmatprep.subr.mxu0 0.0
    %600 = vmatpush1.xpose.msra.mxu0 0.0
    %601 = vmatprep.subr.mxu0 0.0
    %602 = vmatpush1.xpose.msra.mxu0 0.0
    %603 = vmatprep.subr.mxu0 0.0
    %604 = vmatpush1.xpose.msra.mxu0 0.0
    %605 = vmatprep.subr.mxu0 0.0
    %606 = vmatpush1.xpose.msra.mxu0 0.0
    %607 = vmatprep.subr.mxu0 0.0
    %608 = vmatpush1.xpose.msra.mxu0 0.0
    %609 = vmatprep.subr.mxu0 0.0
    %610 = vmatpush1.xpose.msra.mxu0 0.0
    %611 = vmatprep.subr.mxu0 0.0
    %612 = vmatpush1.xpose.msra.mxu0 0.0
    %613 = vmatprep.subr.mxu0 0.0
    %614 = vmatpush1.xpose.msra.mxu0 0.0
    %615 = vmatprep.subr.mxu0 0.0
    %616 = vmatpush1.xpose.msra.mxu0 0.0
    %617 = vmatprep.subr.mxu0 0.0
    %618 = vmatpush1.xpose.msra.mxu0 0.0
    %619 = vmatprep.subr.mxu0 0.0
    %620 = vmatpush1.xpose.msra.mxu0 0.0
    %621 = vmatprep.subr.mxu0 0.0
    %622 = vmatpush1.xpose.msra.mxu0 0.0
    %623 = vmatprep.subr.mxu0 0.0
    %624 = vmatpush1.xpose.msra.mxu0 0.0
    %625 = vmatprep.subr.mxu0 0.0
    %626 = vmatpush1.xpose.msra.mxu0 0.0
    %627 = vmatprep.subr.mxu0 0.0
    %628 = vmatpush1.xpose.msra.mxu0 0.0
    %629 = vmatprep.subr.mxu0 0.0
    %630 = vmatpush1.xpose.msra.mxu0 0.0
    %631 = vmatprep.subr.mxu0 0.0
    %632 = vmatpush1.xpose.msra.mxu0 0.0
    %633 = vmatprep.subr.mxu0 0.0
    %634 = vmatpush1.xpose.msra.mxu0 0.0
    %635 = vmatprep.subr.mxu0 0.0
    %636 = vmatpush1.xpose.msra.mxu0 0.0
    %637 = vmatprep.subr.mxu0 0.0
    %638 = vmatpush1.xpose.msra.mxu0 0.0
    %639 = vmatprep.subr.mxu0 0.0
    %640 = vmatpush1.xpose.msra.mxu0 0.0
    %641 = vmatprep.subr.mxu0 0.0
    %642 = vmatpush1.xpose.msra.mxu0 0.0
    %643 = vmatprep.subr.mxu0 0.0
    %644 = vmatpush1.xpose.msra.mxu0 0.0
    %645 = vmatprep.subr.mxu0 0.0
    %646 = vmatpush1.xpose.msra.mxu0 0.0
    %647 = vmatprep.mubr.f32.mxu0 0.0
    %648 = vmatmul.mubr.f32.gmra.mrb[0].mxu0 %v579
    %v649 = vpop.f32.mrb[0].mxu0
    %v650 = vadd.f32 0.0, %v649
    %v651 = vpop.f32.mrb[0].mxu0
    %652 = vdwg.mxu0
    %v653 = vsel %vm501, %v573, -inf
    %654 = vmax.xlane.f32.xlu0 %v653
    %v655 = vpop.xlane.xlu0 %654
    %v656 = vsel %vm501, %v650, -inf
    %657 = vmax.xlane.f32.xlu0 %v656
    %v658 = vpop.xlane.xlu0 %657
    %v659 = vsub.f32 %v573, %v655
    %v660 = vsub.f32 %v650, %v658
    %v661 = vmul.f32 %v659, 1.442695
    %v662 = vpow.pop %v661
    %v663 = vmul.f32 %v660, 1.442695
    %v664 = vpow.pop %v663
    %v665 = vsel %vm501, %v662, 0.0
    %666 = vadd.xlane.f32.xlu0 %v665
    %v667 = vpop.xlane.xlu0 %666
    %v668 = vsel %vm501, %v664, 0.0
    %669 = vadd.xlane.f32.xlu0 %v668
    %v670 = vpop.xlane.xlu0 %669
    %v671 = vrcp.pop %v667
    %v672 = vrcp.pop %v670
    %v673 = vmul.f32 %v662, %v671
    %v674 = vmul.f32 %v664, %v672
    %675 = vrot.lane.b32.xlu0 %v490, 64
    %v676 = vpop.permute.xlu0 %675
    %v679 = vsel %vm501, %v673, 0
    %681 = vmatprep.subr.mxu0 0.0
    %682 = vmatpush1.msra.mxu0 %v676
    %683 = vmatprep.subr.mxu0 0.0
    %684 = vmatpush1.msra.mxu0 0.0
    %685 = vmatprep.subr.mxu0 0.0
    %686 = vmatpush1.msra.mxu0 0.0
    %687 = vmatprep.subr.mxu0 0.0
    %688 = vmatpush1.msra.mxu0 0.0
    %689 = vmatprep.subr.mxu0 0.0
    %690 = vmatpush1.msra.mxu0 0.0
    %691 = vmatprep.subr.mxu0 0.0
    %692 = vmatpush1.msra.mxu0 0.0
    %693 = vmatprep.subr.mxu0 0.0
    %694 = vmatpush1.msra.mxu0 0.0
    %695 = vmatprep.subr.mxu0 0.0
    %696 = vmatpush1.msra.mxu0 0.0
    %697 = vmatprep.subr.mxu0 0.0
    %698 = vmatpush1.msra.mxu0 0.0
    %699 = vmatprep.subr.mxu0 0.0
    %700 = vmatpush1.msra.mxu0 0.0
    %701 = vmatprep.subr.mxu0 0.0
    %702 = vmatpush1.msra.mxu0 0.0
    %703 = vmatprep.subr.mxu0 0.0
    %704 = vmatpush1.msra.mxu0 0.0
    %705 = vmatprep.subr.mxu0 0.0
    %706 = vmatpush1.msra.mxu0 0.0
    %707 = vmatprep.subr.mxu0 0.0
    %708 = vmatpush1.msra.mxu0 0.0
    %709 = vmatprep.subr.mxu0 0.0
    %710 = vmatpush1.msra.mxu0 0.0
    %711 = vmatprep.subr.mxu0 0.0
    %712 = vmatpush1.msra.mxu0 0.0
    %713 = vmatprep.subr.mxu0 0.0
    %714 = vmatpush1.msra.mxu0 0.0
    %715 = vmatprep.subr.mxu0 0.0
    %716 = vmatpush1.msra.mxu0 0.0
    %717 = vmatprep.subr.mxu0 0.0
    %718 = vmatpush1.msra.mxu0 0.0
    %719 = vmatprep.subr.mxu0 0.0
    %720 = vmatpush1.msra.mxu0 0.0
    %721 = vmatprep.subr.mxu0 0.0
    %722 = vmatpush1.msra.mxu0 0.0
    %723 = vmatprep.subr.mxu0 0.0
    %724 = vmatpush1.msra.mxu0 0.0
    %725 = vmatprep.subr.mxu0 0.0
    %726 = vmatpush1.msra.mxu0 0.0
    %727 = vmatprep.subr.mxu0 0.0
    %728 = vmatpush1.msra.mxu0 0.0
    %729 = vmatprep.subr.mxu0 0.0
    %730 = vmatpush1.msra.mxu0 0.0
    %731 = vmatprep.subr.mxu0 0.0
    %732 = vmatpush1.msra.mxu0 0.0
    %733 = vmatprep.subr.mxu0 0.0
    %734 = vmatpush1.msra.mxu0 0.0
    %735 = vmatprep.subr.mxu0 0.0
    %736 = vmatpush1.msra.mxu0 0.0
    %737 = vmatprep.subr.mxu0 0.0
    %738 = vmatpush1.msra.mxu0 0.0
    %739 = vmatprep.subr.mxu0 0.0
    %740 = vmatpush1.msra.mxu0 0.0
    %741 = vmatprep.subr.mxu0 0.0
    %742 = vmatpush1.msra.mxu0 0.0
    %743 = vmatprep.subr.mxu0 0.0
    %744 = vmatpush1.msra.mxu0 0.0
    %745 = vmatprep.mubr.f32.mxu0 0.0
    %746 = vmatmul.mubr.f32.gmra.mrb[0].mxu0 %v679
    %v747 = vpop.f32.mrb[0].mxu0
    %v748 = vadd.f32 0.0, %v747
    %v749 = vpop.f32.mrb[0].mxu0
    %750 = vdwg.mxu0
    %751 = vrot.lane.b32.xlu0 %v495, 64
    %v752 = vpop.permute.xlu0 %751
    %v755 = vsel %vm501, %v674, 0
    %757 = vmatprep.subr.mxu0 0.0
    %758 = vmatpush1.msra.mxu0 %v752
    %759 = vmatprep.subr.mxu0 0.0
    %760 = vmatpush1.msra.mxu0 0.0
    %761 = vmatprep.subr.mxu0 0.0
    %762 = vmatpush1.msra.mxu0 0.0
    %763 = vmatprep.subr.mxu0 0.0
    %764 = vmatpush1.msra.mxu0 0.0
    %765 = vmatprep.subr.mxu0 0.0
    %766 = vmatpush1.msra.mxu0 0.0
    %767 = vmatprep.subr.mxu0 0.0
    %768 = vmatpush1.msra.mxu0 0.0
    %769 = vmatprep.subr.mxu0 0.0
    %770 = vmatpush1.msra.mxu0 0.0
    %771 = vmatprep.subr.mxu0 0.0
    %772 = vmatpush1.msra.mxu0 0.0
    %773 = vmatprep.subr.mxu0 0.0
    %774 = vmatpush1.msra.mxu0 0.0
    %775 = vmatprep.subr.mxu0 0.0
    %776 = vmatpush1.msra.mxu0 0.0
    %777 = vmatprep.subr.mxu0 0.0
    %778 = vmatpush1.msra.mxu0 0.0
    %779 = vmatprep.subr.mxu0 0.0
    %780 = vmatpush1.msra.mxu0 0.0
    %781 = vmatprep.subr.mxu0 0.0
    %782 = vmatpush1.msra.mxu0 0.0
    %783 = vmatprep.subr.mxu0 0.0
    %784 = vmatpush1.msra.mxu0 0.0
    %785 = vmatprep.subr.mxu0 0.0
    %786 = vmatpush1.msra.mxu0 0.0
    %787 = vmatprep.subr.mxu0 0.0
    %788 = vmatpush1.msra.mxu0 0.0
    %789 = vmatprep.subr.mxu0 0.0
    %790 = vmatpush1.msra.mxu0 0.0
    %791 = vmatprep.subr.mxu0 0.0
    %792 = vmatpush1.msra.mxu0 0.0
    %793 = vmatprep.subr.mxu0 0.0
    %794 = vmatpush1.msra.mxu0 0.0
    %795 = vmatprep.subr.mxu0 0.0
    %796 = vmatpush1.msra.mxu0 0.0
    %797 = vmatprep.subr.mxu0 0.0
    %798 = vmatpush1.msra.mxu0 0.0
    %799 = vmatprep.subr.mxu0 0.0
    %800 = vmatpush1.msra.mxu0 0.0
    %801 = vmatprep.subr.mxu0 0.0
    %802 = vmatpush1.msra.mxu0 0.0
    %803 = vmatprep.subr.mxu0 0.0
    %804 = vmatpush1.msra.mxu0 0.0
    %805 = vmatprep.subr.mxu0 0.0
    %806 = vmatpush1.msra.mxu0 0.0
    %807 = vmatprep.subr.mxu0 0.0
    %808 = vmatpush1.msra.mxu0 0.0
    %809 = vmatprep.subr.mxu0 0.0
    %810 = vmatpush1.msra.mxu0 0.0
    %811 = vmatprep.subr.mxu0 0.0
    %812 = vmatpush1.msra.mxu0 0.0
    %813 = vmatprep.subr.mxu0 0.0
    %814 = vmatpush1.msra.mxu0 0.0
    %815 = vmatprep.subr.mxu0 0.0
    %816 = vmatpush1.msra.mxu0 0.0
    %817 = vmatprep.subr.mxu0 0.0
    %818 = vmatpush1.msra.mxu0 0.0
    %819 = vmatprep.subr.mxu0 0.0
    %820 = vmatpush1.msra.mxu0 0.0
    %821 = vmatprep.mubr.f32.mxu0 0.0
    %822 = vmatmul.mubr.f32.gmra.mrb[0].mxu0 %v755
    %v823 = vpop.f32.mrb[0].mxu0
    %v824 = vadd.f32 0.0, %v823
    %v825 = vpop.f32.mrb[0].mxu0
    %826 = vdwg.mxu0
    %827 = vrot.lane.b32.xlu0 %v490, 120
    %v828 = vpop.permute.xlu0 %827
    %829 = vrot.lane.b32.xlu0 %v490, 88
    %v830 = vpop.permute.xlu0 %829
    %v831 = vsel %vm501, %v828, 0
    %v833 = vsel %vm501, %v830, 0
    %835 = vmatprep.subr.mxu0 0.0
    %836 = vmatpush1.xpose.msra.mxu0 %v833
    %837 = vmatprep.subr.mxu0 0.0
    %838 = vmatpush1.xpose.msra.mxu0 0.0
    %839 = vmatprep.subr.mxu0 0.0
    %840 = vmatpush1.xpose.msra.mxu0 0.0
    %841 = vmatprep.subr.mxu0 0.0
    %842 = vmatpush1.xpose.msra.mxu0 0.0
    %843 = vmatprep.subr.mxu0 0.0
    %844 = vmatpush1.xpose.msra.mxu0 0.0
    %845 = vmatprep.subr.mxu0 0.0
    %846 = vmatpush1.xpose.msra.mxu0 0.0
    %847 = vmatprep.subr.mxu0 0.0
    %848 = vmatpush1.xpose.msra.mxu0 0.0
    %849 = vmatprep.subr.mxu0 0.0
    %850 = vmatpush1.xpose.msra.mxu0 0.0
    %851 = vmatprep.subr.mxu0 0.0
    %852 = vmatpush1.xpose.msra.mxu0 0.0
    %853 = vmatprep.subr.mxu0 0.0
    %854 = vmatpush1.xpose.msra.mxu0 0.0
    %855 = vmatprep.subr.mxu0 0.0
    %856 = vmatpush1.xpose.msra.mxu0 0.0
    %857 = vmatprep.subr.mxu0 0.0
    %858 = vmatpush1.xpose.msra.mxu0 0.0
    %859 = vmatprep.subr.mxu0 0.0
    %860 = vmatpush1.xpose.msra.mxu0 0.0
    %861 = vmatprep.subr.mxu0 0.0
    %862 = vmatpush1.xpose.msra.mxu0 0.0
    %863 = vmatprep.subr.mxu0 0.0
    %864 = vmatpush1.xpose.msra.mxu0 0.0
    %865 = vmatprep.subr.mxu0 0.0
    %866 = vmatpush1.xpose.msra.mxu0 0.0
    %867 = vmatprep.subr.mxu0 0.0
    %868 = vmatpush1.xpose.msra.mxu0 0.0
    %869 = vmatprep.subr.mxu0 0.0
    %870 = vmatpush1.xpose.msra.mxu0 0.0
    %871 = vmatprep.subr.mxu0 0.0
    %872 = vmatpush1.xpose.msra.mxu0 0.0
    %873 = vmatprep.subr.mxu0 0.0
    %874 = vmatpush1.xpose.msra.mxu0 0.0
    %875 = vmatprep.subr.mxu0 0.0
    %876 = vmatpush1.xpose.msra.mxu0 0.0
    %877 = vmatprep.subr.mxu0 0.0
    %878 = vmatpush1.xpose.msra.mxu0 0.0
    %879 = vmatprep.subr.mxu0 0.0
    %880 = vmatpush1.xpose.msra.mxu0 0.0
    %881 = vmatprep.subr.mxu0 0.0
    %882 = vmatpush1.xpose.msra.mxu0 0.0
    %883 = vmatprep.subr.mxu0 0.0
    %884 = vmatpush1.xpose.msra.mxu0 0.0
    %885 = vmatprep.subr.mxu0 0.0
    %886 = vmatpush1.xpose.msra.mxu0 0.0
    %887 = vmatprep.subr.mxu0 0.0
    %888 = vmatpush1.xpose.msra.mxu0 0.0
    %889 = vmatprep.subr.mxu0 0.0
    %890 = vmatpush1.xpose.msra.mxu0 0.0
    %891 = vmatprep.subr.mxu0 0.0
    %892 = vmatpush1.xpose.msra.mxu0 0.0
    %893 = vmatprep.subr.mxu0 0.0
    %894 = vmatpush1.xpose.msra.mxu0 0.0
    %895 = vmatprep.subr.mxu0 0.0
    %896 = vmatpush1.xpose.msra.mxu0 0.0
    %897 = vmatprep.subr.mxu0 0.0
    %898 = vmatpush1.xpose.msra.mxu0 0.0
    %899 = vmatprep.mubr.f32.mxu0 0.0
    %900 = vmatmul.mubr.f32.gmra.mrb[0].mxu0 %v831
    %v901 = vpop.f32.mrb[0].mxu0
    %v902 = vadd.f32 0.0, %v901
    %v903 = vpop.f32.mrb[0].mxu0
    %904 = vdwg.mxu0
    %905 = vrot.lane.b32.xlu0 %v495, 120
    %v906 = vpop.permute.xlu0 %905
    %907 = vrot.lane.b32.xlu0 %v495, 88
    %v908 = vpop.permute.xlu0 %907
    %v909 = vsel %vm501, %v906, 0
    %v911 = vsel %vm501, %v908, 0
    %913 = vmatprep.subr.mxu0 0.0
    %914 = vmatpush1.xpose.msra.mxu0 %v911
    %915 = vmatprep.subr.mxu0 0.0
    %916 = vmatpush1.xpose.msra.mxu0 0.0
    %917 = vmatprep.subr.mxu0 0.0
    %918 = vmatpush1.xpose.msra.mxu0 0.0
    %919 = vmatprep.subr.mxu0 0.0
    %920 = vmatpush1.xpose.msra.mxu0 0.0
    %921 = vmatprep.subr.mxu0 0.0
    %922 = vmatpush1.xpose.msra.mxu0 0.0
    %923 = vmatprep.subr.mxu0 0.0
    %924 = vmatpush1.xpose.msra.mxu0 0.0
    %925 = vmatprep.subr.mxu0 0.0
    %926 = vmatpush1.xpose.msra.mxu0 0.0
    %927 = vmatprep.subr.mxu0 0.0
    %928 = vmatpush1.xpose.msra.mxu0 0.0
    %929 = vmatprep.subr.mxu0 0.0
    %930 = vmatpush1.xpose.msra.mxu0 0.0
    %931 = vmatprep.subr.mxu0 0.0
    %932 = vmatpush1.xpose.msra.mxu0 0.0
    %933 = vmatprep.subr.mxu0 0.0
    %934 = vmatpush1.xpose.msra.mxu0 0.0
    %935 = vmatprep.subr.mxu0 0.0
    %936 = vmatpush1.xpose.msra.mxu0 0.0
    %937 = vmatprep.subr.mxu0 0.0
    %938 = vmatpush1.xpose.msra.mxu0 0.0
    %939 = vmatprep.subr.mxu0 0.0
    %940 = vmatpush1.xpose.msra.mxu0 0.0
    %941 = vmatprep.subr.mxu0 0.0
    %942 = vmatpush1.xpose.msra.mxu0 0.0
    %943 = vmatprep.subr.mxu0 0.0
    %944 = vmatpush1.xpose.msra.mxu0 0.0
    %945 = vmatprep.subr.mxu0 0.0
    %946 = vmatpush1.xpose.msra.mxu0 0.0
    %947 = vmatprep.subr.mxu0 0.0
    %948 = vmatpush1.xpose.msra.mxu0 0.0
    %949 = vmatprep.subr.mxu0 0.0
    %950 = vmatpush1.xpose.msra.mxu0 0.0
    %951 = vmatprep.subr.mxu0 0.0
    %952 = vmatpush1.xpose.msra.mxu0 0.0
    %953 = vmatprep.subr.mxu0 0.0
    %954 = vmatpush1.xpose.msra.mxu0 0.0
    %955 = vmatprep.subr.mxu0 0.0
    %956 = vmatpush1.xpose.msra.mxu0 0.0
    %957 = vmatprep.subr.mxu0 0.0
    %958 = vmatpush1.xpose.msra.mxu0 0.0
    %959 = vmatprep.subr.mxu0 0.0
    %960 = vmatpush1.xpose.msra.mxu0 0.0
    %961 = vmatprep.subr.mxu0 0.0
    %962 = vmatpush1.xpose.msra.mxu0 0.0
    %963 = vmatprep.subr.mxu0 0.0
    %964 = vmatpush1.xpose.msra.mxu0 0.0
    %965 = vmatprep.subr.mxu0 0.0
    %966 = vmatpush1.xpose.msra.mxu0 0.0
    %967 = vmatprep.subr.mxu0 0.0
    %968 = vmatpush1.xpose.msra.mxu0 0.0
    %969 = vmatprep.subr.mxu0 0.0
    %970 = vmatpush1.xpose.msra.mxu0 0.0
    %971 = vmatprep.subr.mxu0 0.0
    %972 = vmatpush1.xpose.msra.mxu0 0.0
    %973 = vmatprep.subr.mxu0 0.0
    %974 = vmatpush1.xpose.msra.mxu0 0.0
    %975 = vmatprep.subr.mxu0 0.0
    %976 = vmatpush1.xpose.msra.mxu0 0.0
    %977 = vmatprep.mubr.f32.mxu0 0.0
    %978 = vmatmul.mubr.f32.gmra.mrb[0].mxu0 %v909
    %v979 = vpop.f32.mrb[0].mxu0
    %v980 = vadd.f32 0.0, %v979
    %v981 = vpop.f32.mrb[0].mxu0
    %982 = vdwg.mxu0
    %v983 = vsel %vm501, %v902, -inf
    %984 = vmax.xlane.f32.xlu0 %v983
    %v985 = vpop.xlane.xlu0 %984
    %v986 = vsel %vm501, %v980, -inf
    %987 = vmax.xlane.f32.xlu0 %v986
    %v988 = vpop.xlane.xlu0 %987
    %v989 = vsub.f32 %v902, %v985
    %v990 = vsub.f32 %v980, %v988
    %v991 = vmul.f32 %v989, 1.442695
    %v992 = vpow.pop %v991
    %v993 = vmul.f32 %v990, 1.442695
    %v994 = vpow.pop %v993
    %v995 = vsel %vm501, %v992, 0.0
    %996 = vadd.xlane.f32.xlu0 %v995
    %v997 = vpop.xlane.xlu0 %996
    %v998 = vsel %vm501, %v994, 0.0
    %999 = vadd.xlane.f32.xlu0 %v998
    %v1000 = vpop.xlane.xlu0 %999
    %v1001 = vrcp.pop %v997
    %v1002 = vrcp.pop %v1000
    %v1003 = vmul.f32 %v992, %v1001
    %v1004 = vmul.f32 %v994, %v1002
    %1005 = vrot.lane.b32.xlu0 %v490, 56
    %v1006 = vpop.permute.xlu0 %1005
    %v1009 = vsel %vm501, %v1003, 0
    %1011 = vmatprep.subr.mxu0 0.0
    %1012 = vmatpush1.msra.mxu0 %v1006
    %1013 = vmatprep.subr.mxu0 0.0
    %1014 = vmatpush1.msra.mxu0 0.0
    %1015 = vmatprep.subr.mxu0 0.0
    %1016 = vmatpush1.msra.mxu0 0.0
    %1017 = vmatprep.subr.mxu0 0.0
    %1018 = vmatpush1.msra.mxu0 0.0
    %1019 = vmatprep.subr.mxu0 0.0
    %1020 = vmatpush1.msra.mxu0 0.0
    %1021 = vmatprep.subr.mxu0 0.0
    %1022 = vmatpush1.msra.mxu0 0.0
    %1023 = vmatprep.subr.mxu0 0.0
    %1024 = vmatpush1.msra.mxu0 0.0
    %1025 = vmatprep.subr.mxu0 0.0
    %1026 = vmatpush1.msra.mxu0 0.0
    %1027 = vmatprep.subr.mxu0 0.0
    %1028 = vmatpush1.msra.mxu0 0.0
    %1029 = vmatprep.subr.mxu0 0.0
    %1030 = vmatpush1.msra.mxu0 0.0
    %1031 = vmatprep.subr.mxu0 0.0
    %1032 = vmatpush1.msra.mxu0 0.0
    %1033 = vmatprep.subr.mxu0 0.0
    %1034 = vmatpush1.msra.mxu0 0.0
    %1035 = vmatprep.subr.mxu0 0.0
    %1036 = vmatpush1.msra.mxu0 0.0
    %1037 = vmatprep.subr.mxu0 0.0
    %1038 = vmatpush1.msra.mxu0 0.0
    %1039 = vmatprep.subr.mxu0 0.0
    %1040 = vmatpush1.msra.mxu0 0.0
    %1041 = vmatprep.subr.mxu0 0.0
    %1042 = vmatpush1.msra.mxu0 0.0
    %1043 = vmatprep.subr.mxu0 0.0
    %1044 = vmatpush1.msra.mxu0 0.0
    %1045 = vmatprep.subr.mxu0 0.0
    %1046 = vmatpush1.msra.mxu0 0.0
    %1047 = vmatprep.subr.mxu0 0.0
    %1048 = vmatpush1.msra.mxu0 0.0
    %1049 = vmatprep.subr.mxu0 0.0
    %1050 = vmatpush1.msra.mxu0 0.0
    %1051 = vmatprep.subr.mxu0 0.0
    %1052 = vmatpush1.msra.mxu0 0.0
    %1053 = vmatprep.subr.mxu0 0.0
    %1054 = vmatpush1.msra.mxu0 0.0
    %1055 = vmatprep.subr.mxu0 0.0
    %1056 = vmatpush1.msra.mxu0 0.0
    %1057 = vmatprep.subr.mxu0 0.0
    %1058 = vmatpush1.msra.mxu0 0.0
    %1059 = vmatprep.subr.mxu0 0.0
    %1060 = vmatpush1.msra.mxu0 0.0
    %1061 = vmatprep.subr.mxu0 0.0
    %1062 = vmatpush1.msra.mxu0 0.0
    %1063 = vmatprep.subr.mxu0 0.0
    %1064 = vmatpush1.msra.mxu0 0.0
    %1065 = vmatprep.subr.mxu0 0.0
    %1066 = vmatpush1.msra.mxu0 0.0
    %1067 = vmatprep.subr.mxu0 0.0
    %1068 = vmatpush1.msra.mxu0 0.0
    %1069 = vmatprep.subr.mxu0 0.0
    %1070 = vmatpush1.msra.mxu0 0.0
    %1071 = vmatprep.subr.mxu0 0.0
    %1072 = vmatpush1.msra.mxu0 0.0
    %1073 = vmatprep.subr.mxu0 0.0
    %1074 = vmatpush1.msra.mxu0 0.0
    %1075 = vmatprep.mubr.f32.mxu0 0.0
    %1076 = vmatmul.mubr.f32.gmra.mrb[0].mxu0 %v1009
    %v1077 = vpop.f32.mrb[0].mxu0
    %v1078 = vadd.f32 0.0, %v1077
    %v1079 = vpop.f32.mrb[0].mxu0
    %1080 = vdwg.mxu0
    %1081 = vrot.lane.b32.xlu0 %v495, 56
    %v1082 = vpop.permute.xlu0 %1081
    %v1085 = vsel %vm501, %v1004, 0
    %1087 = vmatprep.subr.mxu0 0.0
    %1088 = vmatpush1.msra.mxu0 %v1082
    %1089 = vmatprep.subr.mxu0 0.0
    %1090 = vmatpush1.msra.mxu0 0.0
    %1091 = vmatprep.subr.mxu0 0.0
    %1092 = vmatpush1.msra.mxu0 0.0
    %1093 = vmatprep.subr.mxu0 0.0
    %1094 = vmatpush1.msra.mxu0 0.0
    %1095 = vmatprep.subr.mxu0 0.0
    %1096 = vmatpush1.msra.mxu0 0.0
    %1097 = vmatprep.subr.mxu0 0.0
    %1098 = vmatpush1.msra.mxu0 0.0
    %1099 = vmatprep.subr.mxu0 0.0
    %1100 = vmatpush1.msra.mxu0 0.0
    %1101 = vmatprep.subr.mxu0 0.0
    %1102 = vmatpush1.msra.mxu0 0.0
    %1103 = vmatprep.subr.mxu0 0.0
    %1104 = vmatpush1.msra.mxu0 0.0
    %1105 = vmatprep.subr.mxu0 0.0
    %1106 = vmatpush1.msra.mxu0 0.0
    %1107 = vmatprep.subr.mxu0 0.0
    %1108 = vmatpush1.msra.mxu0 0.0
    %1109 = vmatprep.subr.mxu0 0.0
    %1110 = vmatpush1.msra.mxu0 0.0
    %1111 = vmatprep.subr.mxu0 0.0
    %1112 = vmatpush1.msra.mxu0 0.0
    %1113 = vmatprep.subr.mxu0 0.0
    %1114 = vmatpush1.msra.mxu0 0.0
    %1115 = vmatprep.subr.mxu0 0.0
    %1116 = vmatpush1.msra.mxu0 0.0
    %1117 = vmatprep.subr.mxu0 0.0
    %1118 = vmatpush1.msra.mxu0 0.0
    %1119 = vmatprep.subr.mxu0 0.0
    %1120 = vmatpush1.msra.mxu0 0.0
    %1121 = vmatprep.subr.mxu0 0.0
    %1122 = vmatpush1.msra.mxu0 0.0
    %1123 = vmatprep.subr.mxu0 0.0
    %1124 = vmatpush1.msra.mxu0 0.0
    %1125 = vmatprep.subr.mxu0 0.0
    %1126 = vmatpush1.msra.mxu0 0.0
    %1127 = vmatprep.subr.mxu0 0.0
    %1128 = vmatpush1.msra.mxu0 0.0
    %1129 = vmatprep.subr.mxu0 0.0
    %1130 = vmatpush1.msra.mxu0 0.0
    %1131 = vmatprep.subr.mxu0 0.0
    %1132 = vmatpush1.msra.mxu0 0.0
    %1133 = vmatprep.subr.mxu0 0.0
    %1134 = vmatpush1.msra.mxu0 0.0
    %1135 = vmatprep.subr.mxu0 0.0
    %1136 = vmatpush1.msra.mxu0 0.0
    %1137 = vmatprep.subr.mxu0 0.0
    %1138 = vmatpush1.msra.mxu0 0.0
    %1139 = vmatprep.subr.mxu0 0.0
    %1140 = vmatpush1.msra.mxu0 0.0
    %1141 = vmatprep.subr.mxu0 0.0
    %1142 = vmatpush1.msra.mxu0 0.0
    %1143 = vmatprep.subr.mxu0 0.0
    %1144 = vmatpush1.msra.mxu0 0.0
    %1145 = vmatprep.subr.mxu0 0.0
    %1146 = vmatpush1.msra.mxu0 0.0
    %1147 = vmatprep.subr.mxu0 0.0
    %1148 = vmatpush1.msra.mxu0 0.0
    %1149 = vmatprep.subr.mxu0 0.0
    %1150 = vmatpush1.msra.mxu0 0.0
    %1151 = vmatprep.mubr.f32.mxu0 0.0
    %1152 = vmatmul.mubr.f32.gmra.mrb[0].mxu0 %v1085
    %v1153 = vpop.f32.mrb[0].mxu0
    %v1154 = vadd.f32 0.0, %v1153
    %v1155 = vpop.f32.mrb[0].mxu0
    %1156 = vdwg.mxu0
    %1157 = vrot.lane.b32.xlu0 %v490, 112
    %v1158 = vpop.permute.xlu0 %1157
    %1159 = vrot.lane.b32.xlu0 %v490, 80
    %v1160 = vpop.permute.xlu0 %1159
    %v1161 = vsel %vm501, %v1158, 0
    %v1163 = vsel %vm501, %v1160, 0
    %1165 = vmatprep.subr.mxu0 0.0
    %1166 = vmatpush1.xpose.msra.mxu0 %v1163
    %1167 = vmatprep.subr.mxu0 0.0
    %1168 = vmatpush1.xpose.msra.mxu0 0.0
    %1169 = vmatprep.subr.mxu0 0.0
    %1170 = vmatpush1.xpose.msra.mxu0 0.0
    %1171 = vmatprep.subr.mxu0 0.0
    %1172 = vmatpush1.xpose.msra.mxu0 0.0
    %1173 = vmatprep.subr.mxu0 0.0
    %1174 = vmatpush1.xpose.msra.mxu0 0.0
    %1175 = vmatprep.subr.mxu0 0.0
    %1176 = vmatpush1.xpose.msra.mxu0 0.0
    %1177 = vmatprep.subr.mxu0 0.0
    %1178 = vmatpush1.xpose.msra.mxu0 0.0
    %1179 = vmatprep.subr.mxu0 0.0
    %1180 = vmatpush1.xpose.msra.mxu0 0.0
    %1181 = vmatprep.subr.mxu0 0.0
    %1182 = vmatpush1.xpose.msra.mxu0 0.0
    %1183 = vmatprep.subr.mxu0 0.0
    %1184 = vmatpush1.xpose.msra.mxu0 0.0
    %1185 = vmatprep.subr.mxu0 0.0
    %1186 = vmatpush1.xpose.msra.mxu0 0.0
    %1187 = vmatprep.subr.mxu0 0.0
    %1188 = vmatpush1.xpose.msra.mxu0 0.0
    %1189 = vmatprep.subr.mxu0 0.0
    %1190 = vmatpush1.xpose.msra.mxu0 0.0
    %1191 = vmatprep.subr.mxu0 0.0
    %1192 = vmatpush1.xpose.msra.mxu0 0.0
    %1193 = vmatprep.subr.mxu0 0.0
    %1194 = vmatpush1.xpose.msra.mxu0 0.0
    %1195 = vmatprep.subr.mxu0 0.0
    %1196 = vmatpush1.xpose.msra.mxu0 0.0
    %1197 = vmatprep.subr.mxu0 0.0
    %1198 = vmatpush1.xpose.msra.mxu0 0.0
    %1199 = vmatprep.subr.mxu0 0.0
    %1200 = vmatpush1.xpose.msra.mxu0 0.0
    %1201 = vmatprep.subr.mxu0 0.0
    %1202 = vmatpush1.xpose.msra.mxu0 0.0
    %1203 = vmatprep.subr.mxu0 0.0
    %1204 = vmatpush1.xpose.msra.mxu0 0.0
    %1205 = vmatprep.subr.mxu0 0.0
    %1206 = vmatpush1.xpose.msra.mxu0 0.0
    %1207 = vmatprep.subr.mxu0 0.0
    %1208 = vmatpush1.xpose.msra.mxu0 0.0
    %1209 = vmatprep.subr.mxu0 0.0
    %1210 = vmatpush1.xpose.msra.mxu0 0.0
    %1211 = vmatprep.subr.mxu0 0.0
    %1212 = vmatpush1.xpose.msra.mxu0 0.0
    %1213 = vmatprep.subr.mxu0 0.0
    %1214 = vmatpush1.xpose.msra.mxu0 0.0
    %1215 = vmatprep.subr.mxu0 0.0
    %1216 = vmatpush1.xpose.msra.mxu0 0.0
    %1217 = vmatprep.subr.mxu0 0.0
    %1218 = vmatpush1.xpose.msra.mxu0 0.0
    %1219 = vmatprep.subr.mxu0 0.0
    %1220 = vmatpush1.xpose.msra.mxu0 0.0
    %1221 = vmatprep.subr.mxu0 0.0
    %1222 = vmatpush1.xpose.msra.mxu0 0.0
    %1223 = vmatprep.subr.mxu0 0.0
    %1224 = vmatpush1.xpose.msra.mxu0 0.0
    %1225 = vmatprep.subr.mxu0 0.0
    %1226 = vmatpush1.xpose.msra.mxu0 0.0
    %1227 = vmatprep.subr.mxu0 0.0
    %1228 = vmatpush1.xpose.msra.mxu0 0.0
    %1229 = vmatprep.mubr.f32.mxu0 0.0
    %1230 = vmatmul.mubr.f32.gmra.mrb[0].mxu0 %v1161
    %v1231 = vpop.f32.mrb[0].mxu0
    %v1232 = vadd.f32 0.0, %v1231
    %v1233 = vpop.f32.mrb[0].mxu0
    %1234 = vdwg.mxu0
    %1235 = vrot.lane.b32.xlu0 %v495, 112
    %v1236 = vpop.permute.xlu0 %1235
    %1237 = vrot.lane.b32.xlu0 %v495, 80
    %v1238 = vpop.permute.xlu0 %1237
    %v1239 = vsel %vm501, %v1236, 0
    %v1241 = vsel %vm501, %v1238, 0
    %1243 = vmatprep.subr.mxu0 0.0
    %1244 = vmatpush1.xpose.msra.mxu0 %v1241
    %1245 = vmatprep.subr.mxu0 0.0
    %1246 = vmatpush1.xpose.msra.mxu0 0.0
    %1247 = vmatprep.subr.mxu0 0.0
    %1248 = vmatpush1.xpose.msra.mxu0 0.0
    %1249 = vmatprep.subr.mxu0 0.0
    %1250 = vmatpush1.xpose.msra.mxu0 0.0
    %1251 = vmatprep.subr.mxu0 0.0
    %1252 = vmatpush1.xpose.msra.mxu0 0.0
    %1253 = vmatprep.subr.mxu0 0.0
    %1254 = vmatpush1.xpose.msra.mxu0 0.0
    %1255 = vmatprep.subr.mxu0 0.0
    %1256 = vmatpush1.xpose.msra.mxu0 0.0
    %1257 = vmatprep.subr.mxu0 0.0
    %1258 = vmatpush1.xpose.msra.mxu0 0.0
    %1259 = vmatprep.subr.mxu0 0.0
    %1260 = vmatpush1.xpose.msra.mxu0 0.0
    %1261 = vmatprep.subr.mxu0 0.0
    %1262 = vmatpush1.xpose.msra.mxu0 0.0
    %1263 = vmatprep.subr.mxu0 0.0
    %1264 = vmatpush1.xpose.msra.mxu0 0.0
    %1265 = vmatprep.subr.mxu0 0.0
    %1266 = vmatpush1.xpose.msra.mxu0 0.0
    %1267 = vmatprep.subr.mxu0 0.0
    %1268 = vmatpush1.xpose.msra.mxu0 0.0
    %1269 = vmatprep.subr.mxu0 0.0
    %1270 = vmatpush1.xpose.msra.mxu0 0.0
    %1271 = vmatprep.subr.mxu0 0.0
    %1272 = vmatpush1.xpose.msra.mxu0 0.0
    %1273 = vmatprep.subr.mxu0 0.0
    %1274 = vmatpush1.xpose.msra.mxu0 0.0
    %1275 = vmatprep.subr.mxu0 0.0
    %1276 = vmatpush1.xpose.msra.mxu0 0.0
    %1277 = vmatprep.subr.mxu0 0.0
    %1278 = vmatpush1.xpose.msra.mxu0 0.0
    %1279 = vmatprep.subr.mxu0 0.0
    %1280 = vmatpush1.xpose.msra.mxu0 0.0
    %1281 = vmatprep.subr.mxu0 0.0
    %1282 = vmatpush1.xpose.msra.mxu0 0.0
    %1283 = vmatprep.subr.mxu0 0.0
    %1284 = vmatpush1.xpose.msra.mxu0 0.0
    %1285 = vmatprep.subr.mxu0 0.0
    %1286 = vmatpush1.xpose.msra.mxu0 0.0
    %1287 = vmatprep.subr.mxu0 0.0
    %1288 = vmatpush1.xpose.msra.mxu0 0.0
    %1289 = vmatprep.subr.mxu0 0.0
    %1290 = vmatpush1.xpose.msra.mxu0 0.0
    %1291 = vmatprep.subr.mxu0 0.0
    %1292 = vmatpush1.xpose.msra.mxu0 0.0
    %1293 = vmatprep.subr.mxu0 0.0
    %1294 = vmatpush1.xpose.msra.mxu0 0.0
    %1295 = vmatprep.subr.mxu0 0.0
    %1296 = vmatpush1.xpose.msra.mxu0 0.0
    %1297 = vmatprep.subr.mxu0 0.0
    %1298 = vmatpush1.xpose.msra.mxu0 0.0
    %1299 = vmatprep.subr.mxu0 0.0
    %1300 = vmatpush1.xpose.msra.mxu0 0.0
    %1301 = vmatprep.subr.mxu0 0.0
    %1302 = vmatpush1.xpose.msra.mxu0 0.0
    %1303 = vmatprep.subr.mxu0 0.0
    %1304 = vmatpush1.xpose.msra.mxu0 0.0
    %1305 = vmatprep.subr.mxu0 0.0
    %1306 = vmatpush1.xpose.msra.mxu0 0.0
    %1307 = vmatprep.mubr.f32.mxu0 0.0
    %1308 = vmatmul.mubr.f32.gmra.mrb[0].mxu0 %v1239
    %v1309 = vpop.f32.mrb[0].mxu0
    %v1310 = vadd.f32 0.0, %v1309
    %v1311 = vpop.f32.mrb[0].mxu0
    %1312 = vdwg.mxu0
    %v1313 = vsel %vm501, %v1232, -inf
    %1314 = vmax.xlane.f32.xlu0 %v1313
    %v1315 = vpop.xlane.xlu0 %1314
    %v1316 = vsel %vm501, %v1310, -inf
    %1317 = vmax.xlane.f32.xlu0 %v1316
    %v1318 = vpop.xlane.xlu0 %1317
    %v1319 = vsub.f32 %v1232, %v1315
    %v1320 = vsub.f32 %v1310, %v1318
    %v1321 = vmul.f32 %v1319, 1.442695
    %v1322 = vpow.pop %v1321
    %v1323 = vmul.f32 %v1320, 1.442695
    %v1324 = vpow.pop %v1323
    %v1325 = vsel %vm501, %v1322, 0.0
    %1326 = vadd.xlane.f32.xlu0 %v1325
    %v1327 = vpop.xlane.xlu0 %1326
    %v1328 = vsel %vm501, %v1324, 0.0
    %1329 = vadd.xlane.f32.xlu0 %v1328
    %v1330 = vpop.xlane.xlu0 %1329
    %v1331 = vrcp.pop %v1327
    %v1332 = vrcp.pop %v1330
    %v1333 = vmul.f32 %v1322, %v1331
    %v1334 = vmul.f32 %v1324, %v1332
    %1335 = vrot.lane.b32.xlu0 %v490, 48
    %v1336 = vpop.permute.xlu0 %1335
    %v1339 = vsel %vm501, %v1333, 0
    %1341 = vmatprep.subr.mxu0 0.0
    %1342 = vmatpush1.msra.mxu0 %v1336
    %1343 = vmatprep.subr.mxu0 0.0
    %1344 = vmatpush1.msra.mxu0 0.0
    %1345 = vmatprep.subr.mxu0 0.0
    %1346 = vmatpush1.msra.mxu0 0.0
    %1347 = vmatprep.subr.mxu0 0.0
    %1348 = vmatpush1.msra.mxu0 0.0
    %1349 = vmatprep.subr.mxu0 0.0
    %1350 = vmatpush1.msra.mxu0 0.0
    %1351 = vmatprep.subr.mxu0 0.0
    %1352 = vmatpush1.msra.mxu0 0.0
    %1353 = vmatprep.subr.mxu0 0.0
    %1354 = vmatpush1.msra.mxu0 0.0
    %1355 = vmatprep.subr.mxu0 0.0
    %1356 = vmatpush1.msra.mxu0 0.0
    %1357 = vmatprep.subr.mxu0 0.0
    %1358 = vmatpush1.msra.mxu0 0.0
    %1359 = vmatprep.subr.mxu0 0.0
    %1360 = vmatpush1.msra.mxu0 0.0
    %1361 = vmatprep.subr.mxu0 0.0
    %1362 = vmatpush1.msra.mxu0 0.0
    %1363 = vmatprep.subr.mxu0 0.0
    %1364 = vmatpush1.msra.mxu0 0.0
    %1365 = vmatprep.subr.mxu0 0.0
    %1366 = vmatpush1.msra.mxu0 0.0
    %1367 = vmatprep.subr.mxu0 0.0
    %1368 = vmatpush1.msra.mxu0 0.0
    %1369 = vmatprep.subr.mxu0 0.0
    %1370 = vmatpush1.msra.mxu0 0.0
    %1371 = vmatprep.subr.mxu0 0.0
    %1372 = vmatpush1.msra.mxu0 0.0
    %1373 = vmatprep.subr.mxu0 0.0
    %1374 = vmatpush1.msra.mxu0 0.0
    %1375 = vmatprep.subr.mxu0 0.0
    %1376 = vmatpush1.msra.mxu0 0.0
    %1377 = vmatprep.subr.mxu0 0.0
    %1378 = vmatpush1.msra.mxu0 0.0
    %1379 = vmatprep.subr.mxu0 0.0
    %1380 = vmatpush1.msra.mxu0 0.0
    %1381 = vmatprep.subr.mxu0 0.0
    %1382 = vmatpush1.msra.mxu0 0.0
    %1383 = vmatprep.subr.mxu0 0.0
    %1384 = vmatpush1.msra.mxu0 0.0
    %1385 = vmatprep.subr.mxu0 0.0
    %1386 = vmatpush1.msra.mxu0 0.0
    %1387 = vmatprep.subr.mxu0 0.0
    %1388 = vmatpush1.msra.mxu0 0.0
    %1389 = vmatprep.subr.mxu0 0.0
    %1390 = vmatpush1.msra.mxu0 0.0
    %1391 = vmatprep.subr.mxu0 0.0
    %1392 = vmatpush1.msra.mxu0 0.0
    %1393 = vmatprep.subr.mxu0 0.0
    %1394 = vmatpush1.msra.mxu0 0.0
    %1395 = vmatprep.subr.mxu0 0.0
    %1396 = vmatpush1.msra.mxu0 0.0
    %1397 = vmatprep.subr.mxu0 0.0
    %1398 = vmatpush1.msra.mxu0 0.0
    %1399 = vmatprep.subr.mxu0 0.0
    %1400 = vmatpush1.msra.mxu0 0.0
    %1401 = vmatprep.subr.mxu0 0.0
    %1402 = vmatpush1.msra.mxu0 0.0
    %1403 = vmatprep.subr.mxu0 0.0
    %1404 = vmatpush1.msra.mxu0 0.0
    %1405 = vmatprep.mubr.f32.mxu0 0.0
    %1406 = vmatmul.mubr.f32.gmra.mrb[0].mxu0 %v1339
    %v1407 = vpop.f32.mrb[0].mxu0
    %v1408 = vadd.f32 0.0, %v1407
    %v1409 = vpop.f32.mrb[0].mxu0
    %1410 = vdwg.mxu0
    %1411 = vrot.lane.b32.xlu0 %v495, 48
    %v1412 = vpop.permute.xlu0 %1411
    %v1415 = vsel %vm501, %v1334, 0
    %1417 = vmatprep.subr.mxu0 0.0
    %1418 = vmatpush1.msra.mxu0 %v1412
    %1419 = vmatprep.subr.mxu0 0.0
    %1420 = vmatpush1.msra.mxu0 0.0
    %1421 = vmatprep.subr.mxu0 0.0
    %1422 = vmatpush1.msra.mxu0 0.0
    %1423 = vmatprep.subr.mxu0 0.0
    %1424 = vmatpush1.msra.mxu0 0.0
    %1425 = vmatprep.subr.mxu0 0.0
    %1426 = vmatpush1.msra.mxu0 0.0
    %1427 = vmatprep.subr.mxu0 0.0
    %1428 = vmatpush1.msra.mxu0 0.0
    %1429 = vmatprep.subr.mxu0 0.0
    %1430 = vmatpush1.msra.mxu0 0.0
    %1431 = vmatprep.subr.mxu0 0.0
    %1432 = vmatpush1.msra.mxu0 0.0
    %1433 = vmatprep.subr.mxu0 0.0
    %1434 = vmatpush1.msra.mxu0 0.0
    %1435 = vmatprep.subr.mxu0 0.0
    %1436 = vmatpush1.msra.mxu0 0.0
    %1437 = vmatprep.subr.mxu0 0.0
    %1438 = vmatpush1.msra.mxu0 0.0
    %1439 = vmatprep.subr.mxu0 0.0
    %1440 = vmatpush1.msra.mxu0 0.0
    %1441 = vmatprep.subr.mxu0 0.0
    %1442 = vmatpush1.msra.mxu0 0.0
    %1443 = vmatprep.subr.mxu0 0.0
    %1444 = vmatpush1.msra.mxu0 0.0
    %1445 = vmatprep.subr.mxu0 0.0
    %1446 = vmatpush1.msra.mxu0 0.0
    %1447 = vmatprep.subr.mxu0 0.0
    %1448 = vmatpush1.msra.mxu0 0.0
    %1449 = vmatprep.subr.mxu0 0.0
    %1450 = vmatpush1.msra.mxu0 0.0
    %1451 = vmatprep.subr.mxu0 0.0
    %1452 = vmatpush1.msra.mxu0 0.0
    %1453 = vmatprep.subr.mxu0 0.0
    %1454 = vmatpush1.msra.mxu0 0.0
    %1455 = vmatprep.subr.mxu0 0.0
    %1456 = vmatpush1.msra.mxu0 0.0
    %1457 = vmatprep.subr.mxu0 0.0
    %1458 = vmatpush1.msra.mxu0 0.0
    %1459 = vmatprep.subr.mxu0 0.0
    %1460 = vmatpush1.msra.mxu0 0.0
    %1461 = vmatprep.subr.mxu0 0.0
    %1462 = vmatpush1.msra.mxu0 0.0
    %1463 = vmatprep.subr.mxu0 0.0
    %1464 = vmatpush1.msra.mxu0 0.0
    %1465 = vmatprep.subr.mxu0 0.0
    %1466 = vmatpush1.msra.mxu0 0.0
    %1467 = vmatprep.subr.mxu0 0.0
    %1468 = vmatpush1.msra.mxu0 0.0
    %1469 = vmatprep.subr.mxu0 0.0
    %1470 = vmatpush1.msra.mxu0 0.0
    %1471 = vmatprep.subr.mxu0 0.0
    %1472 = vmatpush1.msra.mxu0 0.0
    %1473 = vmatprep.subr.mxu0 0.0
    %1474 = vmatpush1.msra.mxu0 0.0
    %1475 = vmatprep.subr.mxu0 0.0
    %1476 = vmatpush1.msra.mxu0 0.0
    %1477 = vmatprep.subr.mxu0 0.0
    %1478 = vmatpush1.msra.mxu0 0.0
    %1479 = vmatprep.subr.mxu0 0.0
    %1480 = vmatpush1.msra.mxu0 0.0
    %1481 = vmatprep.mubr.f32.mxu0 0.0
    %1482 = vmatmul.mubr.f32.gmra.mrb[0].mxu0 %v1415
    %v1483 = vpop.f32.mrb[0].mxu0
    %v1484 = vadd.f32 0.0, %v1483
    %v1485 = vpop.f32.mrb[0].mxu0
    %1486 = vdwg.mxu0
    %1487 = vrot.lane.b32.xlu0 %v490, 104
    %v1488 = vpop.permute.xlu0 %1487
    %1489 = vrot.lane.b32.xlu0 %v490, 72
    %v1490 = vpop.permute.xlu0 %1489
    %v1491 = vsel %vm501, %v1488, 0
    %v1493 = vsel %vm501, %v1490, 0
    %1495 = vmatprep.subr.mxu0 0.0
    %1496 = vmatpush1.xpose.msra.mxu0 %v1493
    %1497 = vmatprep.subr.mxu0 0.0
    %1498 = vmatpush1.xpose.msra.mxu0 0.0
    %1499 = vmatprep.subr.mxu0 0.0
    %1500 = vmatpush1.xpose.msra.mxu0 0.0
    %1501 = vmatprep.subr.mxu0 0.0
    %1502 = vmatpush1.xpose.msra.mxu0 0.0
    %1503 = vmatprep.subr.mxu0 0.0
    %1504 = vmatpush1.xpose.msra.mxu0 0.0
    %1505 = vmatprep.subr.mxu0 0.0
    %1506 = vmatpush1.xpose.msra.mxu0 0.0
    %1507 = vmatprep.subr.mxu0 0.0
    %1508 = vmatpush1.xpose.msra.mxu0 0.0
    %1509 = vmatprep.subr.mxu0 0.0
    %1510 = vmatpush1.xpose.msra.mxu0 0.0
    %1511 = vmatprep.subr.mxu0 0.0
    %1512 = vmatpush1.xpose.msra.mxu0 0.0
    %1513 = vmatprep.subr.mxu0 0.0
    %1514 = vmatpush1.xpose.msra.mxu0 0.0
    %1515 = vmatprep.subr.mxu0 0.0
    %1516 = vmatpush1.xpose.msra.mxu0 0.0
    %1517 = vmatprep.subr.mxu0 0.0
    %1518 = vmatpush1.xpose.msra.mxu0 0.0
    %1519 = vmatprep.subr.mxu0 0.0
    %1520 = vmatpush1.xpose.msra.mxu0 0.0
    %1521 = vmatprep.subr.mxu0 0.0
    %1522 = vmatpush1.xpose.msra.mxu0 0.0
    %1523 = vmatprep.subr.mxu0 0.0
    %1524 = vmatpush1.xpose.msra.mxu0 0.0
    %1525 = vmatprep.subr.mxu0 0.0
    %1526 = vmatpush1.xpose.msra.mxu0 0.0
    %1527 = vmatprep.subr.mxu0 0.0
    %1528 = vmatpush1.xpose.msra.mxu0 0.0
    %1529 = vmatprep.subr.mxu0 0.0
    %1530 = vmatpush1.xpose.msra.mxu0 0.0
    %1531 = vmatprep.subr.mxu0 0.0
    %1532 = vmatpush1.xpose.msra.mxu0 0.0
    %1533 = vmatprep.subr.mxu0 0.0
    %1534 = vmatpush1.xpose.msra.mxu0 0.0
    %1535 = vmatprep.subr.mxu0 0.0
    %1536 = vmatpush1.xpose.msra.mxu0 0.0
    %1537 = vmatprep.subr.mxu0 0.0
    %1538 = vmatpush1.xpose.msra.mxu0 0.0
    %1539 = vmatprep.subr.mxu0 0.0
    %1540 = vmatpush1.xpose.msra.mxu0 0.0
    %1541 = vmatprep.subr.mxu0 0.0
    %1542 = vmatpush1.xpose.msra.mxu0 0.0
    %1543 = vmatprep.subr.mxu0 0.0
    %1544 = vmatpush1.xpose.msra.mxu0 0.0
    %1545 = vmatprep.subr.mxu0 0.0
    %1546 = vmatpush1.xpose.msra.mxu0 0.0
    %1547 = vmatprep.subr.mxu0 0.0
    %1548 = vmatpush1.xpose.msra.mxu0 0.0
    %1549 = vmatprep.subr.mxu0 0.0
    %1550 = vmatpush1.xpose.msra.mxu0 0.0
    %1551 = vmatprep.subr.mxu0 0.0
    %1552 = vmatpush1.xpose.msra.mxu0 0.0
    %1553 = vmatprep.subr.mxu0 0.0
    %1554 = vmatpush1.xpose.msra.mxu0 0.0
    %1555 = vmatprep.subr.mxu0 0.0
    %1556 = vmatpush1.xpose.msra.mxu0 0.0
    %1557 = vmatprep.subr.mxu0 0.0
    %1558 = vmatpush1.xpose.msra.mxu0 0.0
    %1559 = vmatprep.mubr.f32.mxu0 0.0
    %1560 = vmatmul.mubr.f32.gmra.mrb[0].mxu0 %v1491
    %v1561 = vpop.f32.mrb[0].mxu0
    %v1562 = vadd.f32 0.0, %v1561
    %v1563 = vpop.f32.mrb[0].mxu0
    %1564 = vdwg.mxu0
    %1565 = vrot.lane.b32.xlu0 %v495, 104
    %v1566 = vpop.permute.xlu0 %1565
    %1567 = vrot.lane.b32.xlu0 %v495, 72
    %v1568 = vpop.permute.xlu0 %1567
    %v1569 = vsel %vm501, %v1566, 0
    %v1571 = vsel %vm501, %v1568, 0
    %1573 = vmatprep.subr.mxu0 0.0
    %1574 = vmatpush1.xpose.msra.mxu0 %v1571
    %1575 = vmatprep.subr.mxu0 0.0
    %1576 = vmatpush1.xpose.msra.mxu0 0.0
    %1577 = vmatprep.subr.mxu0 0.0
    %1578 = vmatpush1.xpose.msra.mxu0 0.0
    %1579 = vmatprep.subr.mxu0 0.0
    %1580 = vmatpush1.xpose.msra.mxu0 0.0
    %1581 = vmatprep.subr.mxu0 0.0
    %1582 = vmatpush1.xpose.msra.mxu0 0.0
    %1583 = vmatprep.subr.mxu0 0.0
    %1584 = vmatpush1.xpose.msra.mxu0 0.0
    %1585 = vmatprep.subr.mxu0 0.0
    %1586 = vmatpush1.xpose.msra.mxu0 0.0
    %1587 = vmatprep.subr.mxu0 0.0
    %1588 = vmatpush1.xpose.msra.mxu0 0.0
    %1589 = vmatprep.subr.mxu0 0.0
    %1590 = vmatpush1.xpose.msra.mxu0 0.0
    %1591 = vmatprep.subr.mxu0 0.0
    %1592 = vmatpush1.xpose.msra.mxu0 0.0
    %1593 = vmatprep.subr.mxu0 0.0
    %1594 = vmatpush1.xpose.msra.mxu0 0.0
    %1595 = vmatprep.subr.mxu0 0.0
    %1596 = vmatpush1.xpose.msra.mxu0 0.0
    %1597 = vmatprep.subr.mxu0 0.0
    %1598 = vmatpush1.xpose.msra.mxu0 0.0
    %1599 = vmatprep.subr.mxu0 0.0
    %1600 = vmatpush1.xpose.msra.mxu0 0.0
    %1601 = vmatprep.subr.mxu0 0.0
    %1602 = vmatpush1.xpose.msra.mxu0 0.0
    %1603 = vmatprep.subr.mxu0 0.0
    %1604 = vmatpush1.xpose.msra.mxu0 0.0
    %1605 = vmatprep.subr.mxu0 0.0
    %1606 = vmatpush1.xpose.msra.mxu0 0.0
    %1607 = vmatprep.subr.mxu0 0.0
    %1608 = vmatpush1.xpose.msra.mxu0 0.0
    %1609 = vmatprep.subr.mxu0 0.0
    %1610 = vmatpush1.xpose.msra.mxu0 0.0
    %1611 = vmatprep.subr.mxu0 0.0
    %1612 = vmatpush1.xpose.msra.mxu0 0.0
    %1613 = vmatprep.subr.mxu0 0.0
    %1614 = vmatpush1.xpose.msra.mxu0 0.0
    %1615 = vmatprep.subr.mxu0 0.0
    %1616 = vmatpush1.xpose.msra.mxu0 0.0
    %1617 = vmatprep.subr.mxu0 0.0
    %1618 = vmatpush1.xpose.msra.mxu0 0.0
    %1619 = vmatprep.subr.mxu0 0.0
    %1620 = vmatpush1.xpose.msra.mxu0 0.0
    %1621 = vmatprep.subr.mxu0 0.0
    %1622 = vmatpush1.xpose.msra.mxu0 0.0
    %1623 = vmatprep.subr.mxu0 0.0
    %1624 = vmatpush1.xpose.msra.mxu0 0.0
    %1625 = vmatprep.subr.mxu0 0.0
    %1626 = vmatpush1.xpose.msra.mxu0 0.0
    %1627 = vmatprep.subr.mxu0 0.0
    %1628 = vmatpush1.xpose.msra.mxu0 0.0
    %1629 = vmatprep.subr.mxu0 0.0
    %1630 = vmatpush1.xpose.msra.mxu0 0.0
    %1631 = vmatprep.subr.mxu0 0.0
    %1632 = vmatpush1.xpose.msra.mxu0 0.0
    %1633 = vmatprep.subr.mxu0 0.0
    %1634 = vmatpush1.xpose.msra.mxu0 0.0
    %1635 = vmatprep.subr.mxu0 0.0
    %1636 = vmatpush1.xpose.msra.mxu0 0.0
    %1637 = vmatprep.mubr.f32.mxu0 0.0
    %1638 = vmatmul.mubr.f32.gmra.mrb[0].mxu0 %v1569
    %v1639 = vpop.f32.mrb[0].mxu0
    %v1640 = vadd.f32 0.0, %v1639
    %v1641 = vpop.f32.mrb[0].mxu0
    %1642 = vdwg.mxu0
    %v1643 = vsel %vm501, %v1562, -inf
    %1644 = vmax.xlane.f32.xlu0 %v1643
    %v1645 = vpop.xlane.xlu0 %1644
    %v1646 = vsel %vm501, %v1640, -inf
    %1647 = vmax.xlane.f32.xlu0 %v1646
    %v1648 = vpop.xlane.xlu0 %1647
    %v1649 = vsub.f32 %v1562, %v1645
    %v1650 = vsub.f32 %v1640, %v1648
    %v1651 = vmul.f32 %v1649, 1.442695
    %v1652 = vpow.pop %v1651
    %v1653 = vmul.f32 %v1650, 1.442695
    %v1654 = vpow.pop %v1653
    %v1655 = vsel %vm501, %v1652, 0.0
    %1656 = vadd.xlane.f32.xlu0 %v1655
    %v1657 = vpop.xlane.xlu0 %1656
    %v1658 = vsel %vm501, %v1654, 0.0
    %1659 = vadd.xlane.f32.xlu0 %v1658
    %v1660 = vpop.xlane.xlu0 %1659
    %v1661 = vrcp.pop %v1657
    %v1662 = vrcp.pop %v1660
    %v1663 = vmul.f32 %v1652, %v1661
    %v1664 = vmul.f32 %v1654, %v1662
    %1665 = vrot.lane.b32.xlu0 %v490, 40
    %v1666 = vpop.permute.xlu0 %1665
    %v1669 = vsel %vm501, %v1663, 0
    %1671 = vmatprep.subr.mxu0 0.0
    %1672 = vmatpush1.msra.mxu0 %v1666
    %1673 = vmatprep.subr.mxu0 0.0
    %1674 = vmatpush1.msra.mxu0 0.0
    %1675 = vmatprep.subr.mxu0 0.0
    %1676 = vmatpush1.msra.mxu0 0.0
    %1677 = vmatprep.subr.mxu0 0.0
    %1678 = vmatpush1.msra.mxu0 0.0
    %1679 = vmatprep.subr.mxu0 0.0
    %1680 = vmatpush1.msra.mxu0 0.0
    %1681 = vmatprep.subr.mxu0 0.0
    %1682 = vmatpush1.msra.mxu0 0.0
    %1683 = vmatprep.subr.mxu0 0.0
    %1684 = vmatpush1.msra.mxu0 0.0
    %1685 = vmatprep.subr.mxu0 0.0
    %1686 = vmatpush1.msra.mxu0 0.0
    %1687 = vmatprep.subr.mxu0 0.0
    %1688 = vmatpush1.msra.mxu0 0.0
    %1689 = vmatprep.subr.mxu0 0.0
    %1690 = vmatpush1.msra.mxu0 0.0
    %1691 = vmatprep.subr.mxu0 0.0
    %1692 = vmatpush1.msra.mxu0 0.0
    %1693 = vmatprep.subr.mxu0 0.0
    %1694 = vmatpush1.msra.mxu0 0.0
    %1695 = vmatprep.subr.mxu0 0.0
    %1696 = vmatpush1.msra.mxu0 0.0
    %1697 = vmatprep.subr.mxu0 0.0
    %1698 = vmatpush1.msra.mxu0 0.0
    %1699 = vmatprep.subr.mxu0 0.0
    %1700 = vmatpush1.msra.mxu0 0.0
    %1701 = vmatprep.subr.mxu0 0.0
    %1702 = vmatpush1.msra.mxu0 0.0
    %1703 = vmatprep.subr.mxu0 0.0
    %1704 = vmatpush1.msra.mxu0 0.0
    %1705 = vmatprep.subr.mxu0 0.0
    %1706 = vmatpush1.msra.mxu0 0.0
    %1707 = vmatprep.subr.mxu0 0.0
    %1708 = vmatpush1.msra.mxu0 0.0
    %1709 = vmatprep.subr.mxu0 0.0
    %1710 = vmatpush1.msra.mxu0 0.0
    %1711 = vmatprep.subr.mxu0 0.0
    %1712 = vmatpush1.msra.mxu0 0.0
    %1713 = vmatprep.subr.mxu0 0.0
    %1714 = vmatpush1.msra.mxu0 0.0
    %1715 = vmatprep.subr.mxu0 0.0
    %1716 = vmatpush1.msra.mxu0 0.0
    %1717 = vmatprep.subr.mxu0 0.0
    %1718 = vmatpush1.msra.mxu0 0.0
    %1719 = vmatprep.subr.mxu0 0.0
    %1720 = vmatpush1.msra.mxu0 0.0
    %1721 = vmatprep.subr.mxu0 0.0
    %1722 = vmatpush1.msra.mxu0 0.0
    %1723 = vmatprep.subr.mxu0 0.0
    %1724 = vmatpush1.msra.mxu0 0.0
    %1725 = vmatprep.subr.mxu0 0.0
    %1726 = vmatpush1.msra.mxu0 0.0
    %1727 = vmatprep.subr.mxu0 0.0
    %1728 = vmatpush1.msra.mxu0 0.0
    %1729 = vmatprep.subr.mxu0 0.0
    %1730 = vmatpush1.msra.mxu0 0.0
    %1731 = vmatprep.subr.mxu0 0.0
    %1732 = vmatpush1.msra.mxu0 0.0
    %1733 = vmatprep.subr.mxu0 0.0
    %1734 = vmatpush1.msra.mxu0 0.0
    %1735 = vmatprep.mubr.f32.mxu0 0.0
    %1736 = vmatmul.mubr.f32.gmra.mrb[0].mxu0 %v1669
    %v1737 = vpop.f32.mrb[0].mxu0
    %v1738 = vadd.f32 0.0, %v1737
    %v1739 = vpop.f32.mrb[0].mxu0
    %1740 = vdwg.mxu0
    %1741 = vrot.lane.b32.xlu0 %v495, 40
    %v1742 = vpop.permute.xlu0 %1741
    %v1745 = vsel %vm501, %v1664, 0
    %1747 = vmatprep.subr.mxu0 0.0
    %1748 = vmatpush1.msra.mxu0 %v1742
    %1749 = vmatprep.subr.mxu0 0.0
    %1750 = vmatpush1.msra.mxu0 0.0
    %1751 = vmatprep.subr.mxu0 0.0
    %1752 = vmatpush1.msra.mxu0 0.0
    %1753 = vmatprep.subr.mxu0 0.0
    %1754 = vmatpush1.msra.mxu0 0.0
    %1755 = vmatprep.subr.mxu0 0.0
    %1756 = vmatpush1.msra.mxu0 0.0
    %1757 = vmatprep.subr.mxu0 0.0
    %1758 = vmatpush1.msra.mxu0 0.0
    %1759 = vmatprep.subr.mxu0 0.0
    %1760 = vmatpush1.msra.mxu0 0.0
    %1761 = vmatprep.subr.mxu0 0.0
    %1762 = vmatpush1.msra.mxu0 0.0
    %1763 = vmatprep.subr.mxu0 0.0
    %1764 = vmatpush1.msra.mxu0 0.0
    %1765 = vmatprep.subr.mxu0 0.0
    %1766 = vmatpush1.msra.mxu0 0.0
    %1767 = vmatprep.subr.mxu0 0.0
    %1768 = vmatpush1.msra.mxu0 0.0
    %1769 = vmatprep.subr.mxu0 0.0
    %1770 = vmatpush1.msra.mxu0 0.0
    %1771 = vmatprep.subr.mxu0 0.0
    %1772 = vmatpush1.msra.mxu0 0.0
    %1773 = vmatprep.subr.mxu0 0.0
    %1774 = vmatpush1.msra.mxu0 0.0
    %1775 = vmatprep.subr.mxu0 0.0
    %1776 = vmatpush1.msra.mxu0 0.0
    %1777 = vmatprep.subr.mxu0 0.0
    %1778 = vmatpush1.msra.mxu0 0.0
    %1779 = vmatprep.subr.mxu0 0.0
    %1780 = vmatpush1.msra.mxu0 0.0
    %1781 = vmatprep.subr.mxu0 0.0
    %1782 = vmatpush1.msra.mxu0 0.0
    %1783 = vmatprep.subr.mxu0 0.0
    %1784 = vmatpush1.msra.mxu0 0.0
    %1785 = vmatprep.subr.mxu0 0.0
    %1786 = vmatpush1.msra.mxu0 0.0
    %1787 = vmatprep.subr.mxu0 0.0
    %1788 = vmatpush1.msra.mxu0 0.0
    %1789 = vmatprep.subr.mxu0 0.0
    %1790 = vmatpush1.msra.mxu0 0.0
    %1791 = vmatprep.subr.mxu0 0.0
    %1792 = vmatpush1.msra.mxu0 0.0
    %1793 = vmatprep.subr.mxu0 0.0
    %1794 = vmatpush1.msra.mxu0 0.0
    %1795 = vmatprep.subr.mxu0 0.0
    %1796 = vmatpush1.msra.mxu0 0.0
    %1797 = vmatprep.subr.mxu0 0.0
    %1798 = vmatpush1.msra.mxu0 0.0
    %1799 = vmatprep.subr.mxu0 0.0
    %1800 = vmatpush1.msra.mxu0 0.0
    %1801 = vmatprep.subr.mxu0 0.0
    %1802 = vmatpush1.msra.mxu0 0.0
    %1803 = vmatprep.subr.mxu0 0.0
    %1804 = vmatpush1.msra.mxu0 0.0
    %1805 = vmatprep.subr.mxu0 0.0
    %1806 = vmatpush1.msra.mxu0 0.0
    %1807 = vmatprep.subr.mxu0 0.0
    %1808 = vmatpush1.msra.mxu0 0.0
    %1809 = vmatprep.subr.mxu0 0.0
    %1810 = vmatpush1.msra.mxu0 0.0
    %1811 = vmatprep.mubr.f32.mxu0 0.0
    %1812 = vmatmul.mubr.f32.gmra.mrb[0].mxu0 %v1745
    %v1813 = vpop.f32.mrb[0].mxu0
    %v1814 = vadd.f32 0.0, %v1813
    %v1815 = vpop.f32.mrb[0].mxu0
    %1816 = vdwg.mxu0
    %1819 = vrot.lane.b32.xlu0 %v1078, 8
    %v1820 = vpop.permute.xlu0 %1819
    %1821 = vrot.lane.b32.xlu0 %v1154, 8
    %v1822 = vpop.permute.xlu0 %1821
    %1827 = vrot.lane.b32.xlu0 %v1408, 16
    %v1828 = vpop.permute.xlu0 %1827
    %1829 = vrot.lane.b32.xlu0 %v1484, 16
    %v1830 = vpop.permute.xlu0 %1829
    %1835 = vrot.lane.b32.xlu0 %v1738, 24
    %v1836 = vpop.permute.xlu0 %1835
    %1837 = vrot.lane.b32.xlu0 %v1814, 24
    %v1838 = vpop.permute.xlu0 %1837
    %v1841 = vsel %vm501, %v748, %v1820
    %v1842 = vsel %vm501, %v824, %v1822
    %vm1843 = vcmask 130048
    %v1844 = vsel %vm1843, %v1841, %v1828
    %v1845 = vsel %vm1843, %v1842, %v1830
    %vm1846 = vcmask 195584
    %v1847 = vsel %vm1846, %v1844, %v1836
    %v1848 = vsel %vm1846, %v1845, %v1838
    %v1849 = vld [vmem:[%s8] sm:$0xff]
    %v1850 = vld [vmem:[%s8 + $0x8] sm:$0xff]
    %v1851 = vld [vmem:[%s8 + $0x10] sm:$0xff]
    %v1852 = vld [vmem:[%s8 + $0x18] sm:$0xff]
    %v1853 = vld [vmem:[#allocation14] sm:$0x1]
    %v1855 = vlaneseq
    %v1856 = vshrl.u32 %v1855, 7
    %v1857 = vsub.s32 0, %v1856
    %v1858 = vrot.slane %v1853, %v1857
    %v1861 = vsel %vm275, %v1847, 0
    %v1864 = vsel %vm275, %v1848, 0
    %1866 = vmatprep.subr.mxu0 0.0
    %1867 = vmatpush1.msra.mxu0 %v1849
    %1868 = vmatprep.subr.mxu0 0.0
    %1869 = vmatpush1.msra.mxu0 %v1850
    %1870 = vmatprep.subr.mxu0 0.0
    %1871 = vmatpush1.msra.mxu0 %v1851
    %1872 = vmatprep.subr.mxu0 0.0
    %1873 = vmatpush1.msra.mxu0 %v1852
    %1874 = vmatprep.subr.mxu0 0.0
    %1875 = vmatpush1.msra.mxu0 0.0
    %1876 = vmatprep.subr.mxu0 0.0
    %1877 = vmatpush1.msra.mxu0 0.0
    %1878 = vmatprep.subr.mxu0 0.0
    %1879 = vmatpush1.msra.mxu0 0.0
    %1880 = vmatprep.subr.mxu0 0.0
    %1881 = vmatpush1.msra.mxu0 0.0
    %1882 = vmatprep.subr.mxu0 0.0
    %1883 = vmatpush1.msra.mxu0 0.0
    %1884 = vmatprep.subr.mxu0 0.0
    %1885 = vmatpush1.msra.mxu0 0.0
    %1886 = vmatprep.subr.mxu0 0.0
    %1887 = vmatpush1.msra.mxu0 0.0
    %1888 = vmatprep.subr.mxu0 0.0
    %1889 = vmatpush1.msra.mxu0 0.0
    %1890 = vmatprep.subr.mxu0 0.0
    %1891 = vmatpush1.msra.mxu0 0.0
    %1892 = vmatprep.subr.mxu0 0.0
    %1893 = vmatpush1.msra.mxu0 0.0
    %1894 = vmatprep.subr.mxu0 0.0
    %1895 = vmatpush1.msra.mxu0 0.0
    %1896 = vmatprep.subr.mxu0 0.0
    %1897 = vmatpush1.msra.mxu0 0.0
    %1898 = vmatprep.subr.mxu0 0.0
    %1899 = vmatpush1.msra.mxu0 0.0
    %1900 = vmatprep.subr.mxu0 0.0
    %1901 = vmatpush1.msra.mxu0 0.0
    %1902 = vmatprep.subr.mxu0 0.0
    %1903 = vmatpush1.msra.mxu0 0.0
    %1904 = vmatprep.subr.mxu0 0.0
    %1905 = vmatpush1.msra.mxu0 0.0
    %1906 = vmatprep.subr.mxu0 0.0
    %1907 = vmatpush1.msra.mxu0 0.0
    %1908 = vmatprep.subr.mxu0 0.0
    %1909 = vmatpush1.msra.mxu0 0.0
    %1910 = vmatprep.subr.mxu0 0.0
    %1911 = vmatpush1.msra.mxu0 0.0
    %1912 = vmatprep.subr.mxu0 0.0
    %1913 = vmatpush1.msra.mxu0 0.0
    %1914 = vmatprep.subr.mxu0 0.0
    %1915 = vmatpush1.msra.mxu0 0.0
    %1916 = vmatprep.subr.mxu0 0.0
    %1917 = vmatpush1.msra.mxu0 0.0
    %1918 = vmatprep.subr.mxu0 0.0
    %1919 = vmatpush1.msra.mxu0 0.0
    %1920 = vmatprep.subr.mxu0 0.0
    %1921 = vmatpush1.msra.mxu0 0.0
    %1922 = vmatprep.subr.mxu0 0.0
    %1923 = vmatpush1.msra.mxu0 0.0
    %1924 = vmatprep.subr.mxu0 0.0
    %1925 = vmatpush1.msra.mxu0 0.0
    %1926 = vmatprep.subr.mxu0 0.0
    %1927 = vmatpush1.msra.mxu0 0.0
    %1928 = vmatprep.subr.mxu0 0.0
    %1929 = vmatpush1.msra.mxu0 0.0
    %1930 = vmatprep.mubr.f32.mxu0 0.0
    %1931 = vmatmul.mubr.f32.gmra.mrb[0].mxu0 %v1861
    %v1932 = vpop.f32.mrb[0].mxu0
    %v1933 = vadd.f32 %v1858, %v1932
    %v1934 = vpop.f32.mrb[0].mxu0
    %1935 = vmatprep.mubr.f32.mxu0 0.0
    %1936 = vmatmul.mubr.f32.gmra.mrb[0].mxu0 %v1864
    %v1937 = vpop.f32.mrb[0].mxu0
    %v1938 = vadd.f32 %v1858, %v1937
    %v1939 = vpop.f32.mrb[0].mxu0
    %1940 = vdwg.mxu0
    %v1941 = vadd.f32 %v404, %v1933
    %v1942 = vadd.f32 %v405, %v1938
    %v1943 = vld [vmem:[#allocation16] sm:$0x1]
    %v1944 = vld [vmem:[#allocation17] sm:$0x1]
    %v1945 = vsel %vm275, %v1941, 0.0
    %1946 = vadd.xlane.f32.xlu0 %v1945
    %v1947 = vpop.xlane.xlu0 %1946
    %v1948 = vsel %vm275, %v1942, 0.0
    %1949 = vadd.xlane.f32.xlu0 %v1948
    %v1950 = vpop.xlane.xlu0 %1949
    %v1951 = vmul.f32 %v1947, %v369
    %v1952 = vmul.f32 %v1950, %v369
    %v1953 = vsub.f32 %v1941, %v1951
    %v1954 = vsub.f32 %v1942, %v1952
    %v1955 = vmul.f32 %v1953, %v1953
    %v1956 = vmul.f32 %v1954, %v1954
    %v1957 = vsel %vm275, %v1955, 0.0
    %1958 = vadd.xlane.f32.xlu0 %v1957
    %v1959 = vpop.xlane.xlu0 %1958
    %v1960 = vsel %vm275, %v1956, 0.0
    %1961 = vadd.xlane.f32.xlu0 %v1960
    %v1962 = vpop.xlane.xlu0 %1961
    %v1963 = vmul.f32 %v1959, %v369
    %v1964 = vmul.f32 %v1962, %v369
    %v1965 = vadd.f32 %v1963, 1e-12
    %v1966 = vadd.f32 %v1964, 1e-12
    %v1967 = vrsqrt.pop %v1965
    %v1968 = vrsqrt.pop %v1966
    %v1969 = vmul.f32 %v1953, %v1967
    %v1970 = vmul.f32 %v1954, %v1968
    %v1972 = vlaneseq
    %v1973 = vshrl.u32 %v1972, 7
    %v1974 = vsub.s32 0, %v1973
    %v1975 = vrot.slane %v1943, %v1974
    %v1977 = vmul.f32 %v1969, %v1975
    %v1978 = vmul.f32 %v1970, %v1975
    %v1980 = vlaneseq
    %v1981 = vshrl.u32 %v1980, 7
    %v1982 = vsub.s32 0, %v1981
    %v1983 = vrot.slane %v1944, %v1982
    %v1985 = vadd.f32 %v1977, %v1983
    %v1986 = vadd.f32 %v1978, %v1983
    %v1987 = vld [vmem:[%s12] sm:$0xff]
    %v1988 = vld [vmem:[%s12 + $0x8] sm:$0xff]
    %v1989 = vld [vmem:[%s12 + $0x10] sm:$0xff]
    %v1990 = vld [vmem:[%s12 + $0x18] sm:$0xff]
    %v1991 = vld [vmem:[#allocation19] sm:$0x1]
    %v1993 = vlaneseq
    %v1994 = vshrl.u32 %v1993, 7
    %v1995 = vsub.s32 0, %v1994
    %v1996 = vrot.slane %v1991, %v1995
    %v1999 = vsel %vm275, %v1985, 0
    %v2002 = vsel %vm275, %v1986, 0
    %2004 = vmatprep.subr.mxu0 0.0
    %2005 = vmatpush1.msra.mxu0 %v1987
    %2006 = vmatprep.subr.mxu0 0.0
    %2007 = vmatpush1.msra.mxu0 %v1988
    %2008 = vmatprep.subr.mxu0 0.0
    %2009 = vmatpush1.msra.mxu0 %v1989
    %2010 = vmatprep.subr.mxu0 0.0
    %2011 = vmatpush1.msra.mxu0 %v1990
    %2012 = vmatprep.subr.mxu0 0.0
    %2013 = vmatpush1.msra.mxu0 0.0
    %2014 = vmatprep.subr.mxu0 0.0
    %2015 = vmatpush1.msra.mxu0 0.0
    %2016 = vmatprep.subr.mxu0 0.0
    %2017 = vmatpush1.msra.mxu0 0.0
    %2018 = vmatprep.subr.mxu0 0.0
    %2019 = vmatpush1.msra.mxu0 0.0
    %2020 = vmatprep.subr.mxu0 0.0
    %2021 = vmatpush1.msra.mxu0 0.0
    %2022 = vmatprep.subr.mxu0 0.0
    %2023 = vmatpush1.msra.mxu0 0.0
    %2024 = vmatprep.subr.mxu0 0.0
    %2025 = vmatpush1.msra.mxu0 0.0
    %2026 = vmatprep.subr.mxu0 0.0
    %2027 = vmatpush1.msra.mxu0 0.0
    %2028 = vmatprep.subr.mxu0 0.0
    %2029 = vmatpush1.msra.mxu0 0.0
    %2030 = vmatprep.subr.mxu0 0.0
    %2031 = vmatpush1.msra.mxu0 0.0
    %2032 = vmatprep.subr.mxu0 0.0
    %2033 = vmatpush1.msra.mxu0 0.0
    %2034 = vmatprep.subr.mxu0 0.0
    %2035 = vmatpush1.msra.mxu0 0.0
    %2036 = vmatprep.subr.mxu0 0.0
    %2037 = vmatpush1.msra.mxu0 0.0
    %2038 = vmatprep.subr.mxu0 0.0
    %2039 = vmatpush1.msra.mxu0 0.0
    %2040 = vmatprep.subr.mxu0 0.0
    %2041 = vmatpush1.msra.mxu0 0.0
    %2042 = vmatprep.subr.mxu0 0.0
    %2043 = vmatpush1.msra.mxu0 0.0
    %2044 = vmatprep.subr.mxu0 0.0
    %2045 = vmatpush1.msra.mxu0 0.0
    %2046 = vmatprep.subr.mxu0 0.0
    %2047 = vmatpush1.msra.mxu0 0.0
    %2048 = vmatprep.subr.mxu0 0.0
    %2049 = vmatpush1.msra.mxu0 0.0
    %2050 = vmatprep.subr.mxu0 0.0
    %2051 = vmatpush1.msra.mxu0 0.0
    %2052 = vmatprep.subr.mxu0 0.0
    %2053 = vmatpush1.msra.mxu0 0.0
    %2054 = vmatprep.subr.mxu0 0.0
    %2055 = vmatpush1.msra.mxu0 0.0
    %2056 = vmatprep.subr.mxu0 0.0
    %2057 = vmatpush1.msra.mxu0 0.0
    %2058 = vmatprep.subr.mxu0 0.0
    %2059 = vmatpush1.msra.mxu0 0.0
    %2060 = vmatprep.subr.mxu0 0.0
    %2061 = vmatpush1.msra.mxu0 0.0
    %2062 = vmatprep.subr.mxu0 0.0
    %2063 = vmatpush1.msra.mxu0 0.0
    %2064 = vmatprep.subr.mxu0 0.0
    %2065 = vmatpush1.msra.mxu0 0.0
    %2066 = vmatprep.subr.mxu0 0.0
    %2067 = vmatpush1.msra.mxu0 0.0
    %2068 = vmatprep.mubr.f32.mxu0 0.0
    %2069 = vmatmul.mubr.f32.gmra.mrb[0].mxu0 %v1999
    %v2070 = vpop.f32.mrb[0].mxu0
    %v2071 = vadd.f32 %v1996, %v2070
    %v2072 = vpop.f32.mrb[0].mxu0
    %2073 = vmatprep.mubr.f32.mxu0 0.0
    %2074 = vmatmul.mubr.f32.gmra.mrb[0].mxu0 %v2002
    %v2075 = vpop.f32.mrb[0].mxu0
    %v2076 = vadd.f32 %v1996, %v2075
    %v2077 = vpop.f32.mrb[0].mxu0
    %2078 = vdwg.mxu0
    %v2079 = vmul.f32 %v2071, 0.5
    %v2080 = vmul.f32 %v2076, 0.5
    %v2081 = vmul.f32 %v2071, 0.044715
    %v2082 = vmul.f32 %v2076, 0.044715
    %v2083 = vmul.f32 %v2081, %v2071
    %v2084 = vmul.f32 %v2082, %v2076
    %v2085 = vmul.f32 %v2083, %v2071
    %v2086 = vmul.f32 %v2084, %v2076
    %v2087 = vadd.f32 %v2071, %v2085
    %v2088 = vadd.f32 %v2076, %v2086
    %v2089 = vmul.f32 %v2087, 0.7978846
    %v2090 = vmul.f32 %v2088, 0.7978846
    %v2091 = vtanh.pop %v2089
    %v2092 = vtanh.pop %v2090
    %v2093 = vadd.f32 %v2091, 1.0
    %v2094 = vadd.f32 %v2092, 1.0
    %v2095 = vmul.f32 %v2079, %v2093
    %v2096 = vmul.f32 %v2080, %v2094
    %v2097 = vld [vmem:[%s14] sm:$0xff]
    %v2098 = vld [vmem:[%s14 + $0x8] sm:$0xff]
    %v2099 = vld [vmem:[%s14 + $0x10] sm:$0xff]
    %v2100 = vld [vmem:[%s14 + $0x18] sm:$0xff]
    %v2101 = vld [vmem:[%s14 + $0x20] sm:$0xff]
    %v2102 = vld [vmem:[%s14 + $0x28] sm:$0xff]
    %v2103 = vld [vmem:[%s14 + $0x30] sm:$0xff]
    %v2104 = vld [vmem:[%s14 + $0x38] sm:$0xff]
    %v2105 = vld [vmem:[#allocation20] sm:$0x1]
    %v2107 = vlaneseq
    %v2108 = vshrl.u32 %v2107, 7
    %v2109 = vsub.s32 0, %v2108
    %v2110 = vrot.slane %v2105, %v2109
    %vm2112 = vcmask 523264
    %v2114 = vsel %vm2112, %v2095, 0
    %v2117 = vsel %vm2112, %v2096, 0
    %2119 = vmatprep.subr.mxu0 0.0
    %2120 = vmatpush1.msra.mxu0 %v2097
    %2121 = vmatprep.subr.mxu0 0.0
    %2122 = vmatpush1.msra.mxu0 %v2098
    %2123 = vmatprep.subr.mxu0 0.0
    %2124 = vmatpush1.msra.mxu0 %v2099
    %2125 = vmatprep.subr.mxu0 0.0
    %2126 = vmatpush1.msra.mxu0 %v2100
    %2127 = vmatprep.subr.mxu0 0.0
    %2128 = vmatpush1.msra.mxu0 %v2101
    %2129 = vmatprep.subr.mxu0 0.0
    %2130 = vmatpush1.msra.mxu0 %v2102
    %2131 = vmatprep.subr.mxu0 0.0
    %2132 = vmatpush1.msra.mxu0 %v2103
    %2133 = vmatprep.subr.mxu0 0.0
    %2134 = vmatpush1.msra.mxu0 %v2104
    %2135 = vmatprep.subr.mxu0 0.0
    %2136 = vmatpush1.msra.mxu0 0.0
    %2137 = vmatprep.subr.mxu0 0.0
    %2138 = vmatpush1.msra.mxu0 0.0
    %2139 = vmatprep.subr.mxu0 0.0
    %2140 = vmatpush1.msra.mxu0 0.0
    %2141 = vmatprep.subr.mxu0 0.0
    %2142 = vmatpush1.msra.mxu0 0.0
    %2143 = vmatprep.subr.mxu0 0.0
    %2144 = vmatpush1.msra.mxu0 0.0
    %2145 = vmatprep.subr.mxu0 0.0
    %2146 = vmatpush1.msra.mxu0 0.0
    %2147 = vmatprep.subr.mxu0 0.0
    %2148 = vmatpush1.msra.mxu0 0.0
    %2149 = vmatprep.subr.mxu0 0.0
    %2150 = vmatpush1.msra.mxu0 0.0
    %2151 = vmatprep.subr.mxu0 0.0
    %2152 = vmatpush1.msra.mxu0 0.0
    %2153 = vmatprep.subr.mxu0 0.0
    %2154 = vmatpush1.msra.mxu0 0.0
    %2155 = vmatprep.subr.mxu0 0.0
    %2156 = vmatpush1.msra.mxu0 0.0
    %2157 = vmatprep.subr.mxu0 0.0
    %2158 = vmatpush1.msra.mxu0 0.0
    %2159 = vmatprep.subr.mxu0 0.0
    %2160 = vmatpush1.msra.mxu0 0.0
    %2161 = vmatprep.subr.mxu0 0.0
    %2162 = vmatpush1.msra.mxu0 0.0
    %2163 = vmatprep.subr.mxu0 0.0
    %2164 = vmatpush1.msra.mxu0 0.0
    %2165 = vmatprep.subr.mxu0 0.0
    %2166 = vmatpush1.msra.mxu0 0.0
    %2167 = vmatprep.subr.mxu0 0.0
    %2168 = vmatpush1.msra.mxu0 0.0
    %2169 = vmatprep.subr.mxu0 0.0
    %2170 = vmatpush1.msra.mxu0 0.0
    %2171 = vmatprep.subr.mxu0 0.0
    %2172 = vmatpush1.msra.mxu0 0.0
    %2173 = vmatprep.subr.mxu0 0.0
    %2174 = vmatpush1.msra.mxu0 0.0
    %2175 = vmatprep.subr.mxu0 0.0
    %2176 = vmatpush1.msra.mxu0 0.0
    %2177 = vmatprep.subr.mxu0 0.0
    %2178 = vmatpush1.msra.mxu0 0.0
    %2179 = vmatprep.subr.mxu0 0.0
    %2180 = vmatpush1.msra.mxu0 0.0
    %2181 = vmatprep.subr.mxu0 0.0
    %2182 = vmatpush1.msra.mxu0 0.0
    %2183 = vmatprep.mubr.f32.mxu0 0.0
    %2184 = vmatmul.mubr.f32.gmra.mrb[0].mxu0 %v2114
    %v2185 = vpop.f32.mrb[0].mxu0
    %v2186 = vadd.f32 %v2110, %v2185
    %v2187 = vpop.f32.mrb[0].mxu0
    %2188 = vmatprep.mubr.f32.mxu0 0.0
    %2189 = vmatmul.mubr.f32.gmra.mrb[0].mxu0 %v2117
    %v2190 = vpop.f32.mrb[0].mxu0
    %v2191 = vadd.f32 %v2110, %v2190
    %v2192 = vpop.f32.mrb[0].mxu0
    %2193 = vdwg.mxu0
    %v2194 = vadd.f32 %v1985, %v2186
    %v2195 = vadd.f32 %v1986, %v2191
    %v2196 = vld [vmem:[#allocation22] sm:$0x1]
    %v2197 = vld [vmem:[#allocation23] sm:$0x1]
    %v2198 = vsel %vm275, %v2194, 0.0
    %2199 = vadd.xlane.f32.xlu0 %v2198
    %v2200 = vpop.xlane.xlu0 %2199
    %v2201 = vsel %vm275, %v2195, 0.0
    %2202 = vadd.xlane.f32.xlu0 %v2201
    %v2203 = vpop.xlane.xlu0 %2202
    %v2204 = vmul.f32 %v2200, %v369
    %v2205 = vmul.f32 %v2203, %v369
    %v2206 = vsub.f32 %v2194, %v2204
    %v2207 = vsub.f32 %v2195, %v2205
    %v2208 = vmul.f32 %v2206, %v2206
    %v2209 = vmul.f32 %v2207, %v2207
    %v2210 = vsel %vm275, %v2208, 0.0
    %2211 = vadd.xlane.f32.xlu0 %v2210
    %v2212 = vpop.xlane.xlu0 %2211
    %v2213 = vsel %vm275, %v2209, 0.0
    %2214 = vadd.xlane.f32.xlu0 %v2213
    %v2215 = vpop.xlane.xlu0 %2214
    %v2216 = vmul.f32 %v2212, %v369
    %v2217 = vmul.f32 %v2215, %v369
    %v2218 = vadd.f32 %v2216, 1e-12
    %v2219 = vadd.f32 %v2217, 1e-12
    %v2220 = vrsqrt.pop %v2218
    %v2221 = vrsqrt.pop %v2219
    %v2222 = vmul.f32 %v2206, %v2220
    %v2223 = vmul.f32 %v2207, %v2221
    %v2225 = vlaneseq
    %v2226 = vshrl.u32 %v2225, 7
    %v2227 = vsub.s32 0, %v2226
    %v2228 = vrot.slane %v2196, %v2227
    %v2230 = vmul.f32 %v2222, %v2228
    %v2231 = vmul.f32 %v2223, %v2228
    %v2233 = vlaneseq
    %v2234 = vshrl.u32 %v2233, 7
    %v2235 = vsub.s32 0, %v2234
    %v2236 = vrot.slane %v2197, %v2235
    %v2238 = vadd.f32 %v2230, %v2236
    %v2239 = vadd.f32 %v2231, %v2236
    %s2240 = scalar_lea.vmem %s6, 32
    %v2241 = vld [vmem:[%s2240] sm:$0xff]
    %v2242 = vld [vmem:[%s2240 + $0x8] sm:$0xff]
    %v2243 = vld [vmem:[%s2240 + $0x10] sm:$0xff]
    %v2244 = vld [vmem:[%s2240 + $0x18] sm:$0xff]
    %s2245 = scalar_lea.vmem [#allocation13], 1
    %v2246 = vld [vmem:[%s2245] sm:$0x1]
    %v2248 = vlaneseq
    %v2249 = vshrl.u32 %v2248, 7
    %v2250 = vsub.s32 0, %v2249
    %v2251 = vrot.slane %v2246, %v2250
    %v2254 = vsel %vm275, %v2238, 0
    %v2257 = vsel %vm275, %v2239, 0
    %2259 = vmatprep.subr.mxu0 0.0
    %2260 = vmatpush1.msra.mxu0 %v2241
    %2261 = vmatprep.subr.mxu0 0.0
    %2262 = vmatpush1.msra.mxu0 %v2242
    %2263 = vmatprep.subr.mxu0 0.0
    %2264 = vmatpush1.msra.mxu0 %v2243
    %2265 = vmatprep.subr.mxu0 0.0
    %2266 = vmatpush1.msra.mxu0 %v2244
    %2267 = vmatprep.subr.mxu0 0.0
    %2268 = vmatpush1.msra.mxu0 0.0
    %2269 = vmatprep.subr.mxu0 0.0
    %2270 = vmatpush1.msra.mxu0 0.0
    %2271 = vmatprep.subr.mxu0 0.0
    %2272 = vmatpush1.msra.mxu0 0.0
    %2273 = vmatprep.subr.mxu0 0.0
    %2274 = vmatpush1.msra.mxu0 0.0
    %2275 = vmatprep.subr.mxu0 0.0
    %2276 = vmatpush1.msra.mxu0 0.0
    %2277 = vmatprep.subr.mxu0 0.0
    %2278 = vmatpush1.msra.mxu0 0.0
    %2279 = vmatprep.subr.mxu0 0.0
    %2280 = vmatpush1.msra.mxu0 0.0
    %2281 = vmatprep.subr.mxu0 0.0
    %2282 = vmatpush1.msra.mxu0 0.0
    %2283 = vmatprep.subr.mxu0 0.0
    %2284 = vmatpush1.msra.mxu0 0.0
    %2285 = vmatprep.subr.mxu0 0.0
    %2286 = vmatpush1.msra.mxu0 0.0
    %2287 = vmatprep.subr.mxu0 0.0
    %2288 = vmatpush1.msra.mxu0 0.0
    %2289 = vmatprep.subr.mxu0 0.0
    %2290 = vmatpush1.msra.mxu0 0.0
    %2291 = vmatprep.subr.mxu0 0.0
    %2292 = vmatpush1.msra.mxu0 0.0
    %2293 = vmatprep.subr.mxu0 0.0
    %2294 = vmatpush1.msra.mxu0 0.0
    %2295 = vmatprep.subr.mxu0 0.0
    %2296 = vmatpush1.msra.mxu0 0.0
    %2297 = vmatprep.subr.mxu0 0.0
    %2298 = vmatpush1.msra.mxu0 0.0
    %2299 = vmatprep.subr.mxu0 0.0
    %2300 = vmatpush1.msra.mxu0 0.0
    %2301 = vmatprep.subr.mxu0 0.0
    %2302 = vmatpush1.msra.mxu0 0.0
    %2303 = vmatprep.subr.mxu0 0.0
    %2304 = vmatpush1.msra.mxu0 0.0
    %2305 = vmatprep.subr.mxu0 0.0
    %2306 = vmatpush1.msra.mxu0 0.0
    %2307 = vmatprep.subr.mxu0 0.0
    %2308 = vmatpush1.msra.mxu0 0.0
    %2309 = vmatprep.subr.mxu0 0.0
    %2310 = vmatpush1.msra.mxu0 0.0
    %2311 = vmatprep.subr.mxu0 0.0
    %2312 = vmatpush1.msra.mxu0 0.0
    %2313 = vmatprep.subr.mxu0 0.0
    %2314 = vmatpush1.msra.mxu0 0.0
    %2315 = vmatprep.subr.mxu0 0.0
    %2316 = vmatpush1.msra.mxu0 0.0
    %2317 = vmatprep.subr.mxu0 0.0
    %2318 = vmatpush1.msra.mxu0 0.0
    %2319 = vmatprep.subr.mxu0 0.0
    %2320 = vmatpush1.msra.mxu0 0.0
    %2321 = vmatprep.subr.mxu0 0.0
    %2322 = vmatpush1.msra.mxu0 0.0
    %2323 = vmatprep.mubr.f32.mxu0 0.0
    %2324 = vmatmul.mubr.f32.gmra.mrb[0].mxu0 %v2254
    %v2325 = vpop.f32.mrb[0].mxu0
    %v2326 = vadd.f32 %v2251, %v2325
    %v2327 = vpop.f32.mrb[0].mxu0
    %2328 = vmatprep.mubr.f32.mxu0 0.0
    %2329 = vmatmul.mubr.f32.gmra.mrb[0].mxu0 %v2257
    %v2330 = vpop.f32.mrb[0].mxu0
    %v2331 = vadd.f32 %v2251, %v2330
    %v2332 = vpop.f32.mrb[0].mxu0
    %2333 = vdwg.mxu0
    %2335 = vrot.lane.b32.xlu0 %v2326, 96
    %v2336 = vpop.permute.xlu0 %2335
    %v2337 = vsel %vm501, %v2326, 0
    %v2339 = vsel %vm501, %v2336, 0
    %2341 = vmatprep.subr.mxu0 0.0
    %2342 = vmatpush1.xpose.msra.mxu0 %v2339
    %2343 = vmatprep.subr.mxu0 0.0
    %2344 = vmatpush1.xpose.msra.mxu0 0.0
    %2345 = vmatprep.subr.mxu0 0.0
    %2346 = vmatpush1.xpose.msra.mxu0 0.0
    %2347 = vmatprep.subr.mxu0 0.0
    %2348 = vmatpush1.xpose.msra.mxu0 0.0
    %2349 = vmatprep.subr.mxu0 0.0
    %2350 = vmatpush1.xpose.msra.mxu0 0.0
    %2351 = vmatprep.subr.mxu0 0.0
    %2352 = vmatpush1.xpose.msra.mxu0 0.0
    %2353 = vmatprep.subr.mxu0 0.0
    %2354 = vmatpush1.xpose.msra.mxu0 0.0
    %2355 = vmatprep.subr.mxu0 0.0
    %2356 = vmatpush1.xpose.msra.mxu0 0.0
    %2357 = vmatprep.subr.mxu0 0.0
    %2358 = vmatpush1.xpose.msra.mxu0 0.0
    %2359 = vmatprep.subr.mxu0 0.0
    %2360 = vmatpush1.xpose.msra.mxu0 0.0
    %2361 = vmatprep.subr.mxu0 0.0
    %2362 = vmatpush1.xpose.msra.mxu0 0.0
    %2363 = vmatprep.subr.mxu0 0.0
    %2364 = vmatpush1.xpose.msra.mxu0 0.0
    %2365 = vmatprep.subr.mxu0 0.0
    %2366 = vmatpush1.xpose.msra.mxu0 0.0
    %2367 = vmatprep.subr.mxu0 0.0
    %2368 = vmatpush1.xpose.msra.mxu0 0.0
    %2369 = vmatprep.subr.mxu0 0.0
    %2370 = vmatpush1.xpose.msra.mxu0 0.0
    %2371 = vmatprep.subr.mxu0 0.0
    %2372 = vmatpush1.xpose.msra.mxu0 0.0
    %2373 = vmatprep.subr.mxu0 0.0
    %2374 = vmatpush1.xpose.msra.mxu0 0.0
    %2375 = vmatprep.subr.mxu0 0.0
    %2376 = vmatpush1.xpose.msra.mxu0 0.0
    %2377 = vmatprep.subr.mxu0 0.0
    %2378 = vmatpush1.xpose.msra.mxu0 0.0
    %2379 = vmatprep.subr.mxu0 0.0
    %2380 = vmatpush1.xpose.msra.mxu0 0.0
    %2381 = vmatprep.subr.mxu0 0.0
    %2382 = vmatpush1.xpose.msra.mxu0 0.0
    %2383 = vmatprep.subr.mxu0 0.0
    %2384 = vmatpush1.xpose.msra.mxu0 0.0
    %2385 = vmatprep.subr.mxu0 0.0
    %2386 = vmatpush1.xpose.msra.mxu0 0.0
    %2387 = vmatprep.subr.mxu0 0.0
    %2388 = vmatpush1.xpose.msra.mxu0 0.0
    %2389 = vmatprep.subr.mxu0 0.0
    %2390 = vmatpush1.xpose.msra.mxu0 0.0
    %2391 = vmatprep.subr.mxu0 0.0
    %2392 = vmatpush1.xpose.msra.mxu0 0.0
    %2393 = vmatprep.subr.mxu0 0.0
    %2394 = vmatpush1.xpose.msra.mxu0 0.0
    %2395 = vmatprep.subr.mxu0 0.0
    %2396 = vmatpush1.xpose.msra.mxu0 0.0
    %2397 = vmatprep.subr.mxu0 0.0
    %2398 = vmatpush1.xpose.msra.mxu0 0.0
    %2399 = vmatprep.subr.mxu0 0.0
    %2400 = vmatpush1.xpose.msra.mxu0 0.0
    %2401 = vmatprep.subr.mxu0 0.0
    %2402 = vmatpush1.xpose.msra.mxu0 0.0
    %2403 = vmatprep.subr.mxu0 0.0
    %2404 = vmatpush1.xpose.msra.mxu0 0.0
    %2405 = vmatprep.mubr.f32.mxu0 0.0
    %2406 = vmatmul.mubr.f32.gmra.mrb[0].mxu0 %v2337
    %v2407 = vpop.f32.mrb[0].mxu0
    %v2408 = vadd.f32 0.0, %v2407
    %v2409 = vpop.f32.mrb[0].mxu0
    %2410 = vdwg.mxu0
    %2412 = vrot.lane.b32.xlu0 %v2331, 96
    %v2413 = vpop.permute.xlu0 %2412
    %v2414 = vsel %vm501, %v2331, 0
    %v2416 = vsel %vm501, %v2413, 0
    %2418 = vmatprep.subr.mxu0 0.0
    %2419 = vmatpush1.xpose.msra.mxu0 %v2416
    %2420 = vmatprep.subr.mxu0 0.0
    %2421 = vmatpush1.xpose.msra.mxu0 0.0
    %2422 = vmatprep.subr.mxu0 0.0
    %2423 = vmatpush1.xpose.msra.mxu0 0.0
    %2424 = vmatprep.subr.mxu0 0.0
    %2425 = vmatpush1.xpose.msra.mxu0 0.0
    %2426 = vmatprep.subr.mxu0 0.0
    %2427 = vmatpush1.xpose.msra.mxu0 0.0
    %2428 = vmatprep.subr.mxu0 0.0
    %2429 = vmatpush1.xpose.msra.mxu0 0.0
    %2430 = vmatprep.subr.mxu0 0.0
    %2431 = vmatpush1.xpose.msra.mxu0 0.0
    %2432 = vmatprep.subr.mxu0 0.0
    %2433 = vmatpush1.xpose.msra.mxu0 0.0
    %2434 = vmatprep.subr.mxu0 0.0
    %2435 = vmatpush1.xpose.msra.mxu0 0.0
    %2436 = vmatprep.subr.mxu0 0.0
    %2437 = vmatpush1.xpose.msra.mxu0 0.0
    %2438 = vmatprep.subr.mxu0 0.0
    %2439 = vmatpush1.xpose.msra.mxu0 0.0
    %2440 = vmatprep.subr.mxu0 0.0
    %2441 = vmatpush1.xpose.msra.mxu0 0.0
    %2442 = vmatprep.subr.mxu0 0.0
    %2443 = vmatpush1.xpose.msra.mxu0 0.0
    %2444 = vmatprep.subr.mxu0 0.0
    %2445 = vmatpush1.xpose.msra.mxu0 0.0
    %2446 = vmatprep.subr.mxu0 0.0
    %2447 = vmatpush1.xpose.msra.mxu0 0.0
    %2448 = vmatprep.subr.mxu0 0.0
    %2449 = vmatpush1.xpose.msra.mxu0 0.0
    %2450 = vmatprep.subr.mxu0 0.0
    %2451 = vmatpush1.xpose.msra.mxu0 0.0
    %2452 = vmatprep.subr.mxu0 0.0
    %2453 = vmatpush1.xpose.msra.mxu0 0.0
    %2454 = vmatprep.subr.mxu0 0.0
    %2455 = vmatpush1.xpose.msra.mxu0 0.0
    %2456 = vmatprep.subr.mxu0 0.0
    %2457 = vmatpush1.xpose.msra.mxu0 0.0
    %2458 = vmatprep.subr.mxu0 0.0
    %2459 = vmatpush1.xpose.msra.mxu0 0.0
    %2460 = vmatprep.subr.mxu0 0.0
    %2461 = vmatpush1.xpose.msra.mxu0 0.0
    %2462 = vmatprep.subr.mxu0 0.0
    %2463 = vmatpush1.xpose.msra.mxu0 0.0
    %2464 = vmatprep.subr.mxu0 0.0
    %2465 = vmatpush1.xpose.msra.mxu0 0.0
    %2466 = vmatprep.subr.mxu0 0.0
    %2467 = vmatpush1.xpose.msra.mxu0 0.0
    %2468 = vmatprep.subr.mxu0 0.0
    %2469 = vmatpush1.xpose.msra.mxu0 0.0
    %2470 = vmatprep.subr.mxu0 0.0
    %2471 = vmatpush1.xpose.msra.mxu0 0.0
    %2472 = vmatprep.subr.mxu0 0.0
    %2473 = vmatpush1.xpose.msra.mxu0 0.0
    %2474 = vmatprep.subr.mxu0 0.0
    %2475 = vmatpush1.xpose.msra.mxu0 0.0
    %2476 = vmatprep.subr.mxu0 0.0
    %2477 = vmatpush1.xpose.msra.mxu0 0.0
    %2478 = vmatprep.subr.mxu0 0.0
    %2479 = vmatpush1.xpose.msra.mxu0 0.0
    %2480 = vmatprep.subr.mxu0 0.0
    %2481 = vmatpush1.xpose.msra.mxu0 0.0
    %2482 = vmatprep.mubr.f32.mxu0 0.0
    %2483 = vmatmul.mubr.f32.gmra.mrb[0].mxu0 %v2414
    %v2484 = vpop.f32.mrb[0].mxu0
    %v2485 = vadd.f32 0.0, %v2484
    %v2486 = vpop.f32.mrb[0].mxu0
    %2487 = vdwg.mxu0
    %v2488 = vsel %vm501, %v2408, -inf
    %2489 = vmax.xlane.f32.xlu0 %v2488
    %v2490 = vpop.xlane.xlu0 %2489
    %v2491 = vsel %vm501, %v2485, -inf
    %2492 = vmax.xlane.f32.xlu0 %v2491
    %v2493 = vpop.xlane.xlu0 %2492
    %v2494 = vsub.f32 %v2408, %v2490
    %v2495 = vsub.f32 %v2485, %v2493
    %v2496 = vmul.f32 %v2494, 1.442695
    %v2497 = vpow.pop %v2496
    %v2498 = vmul.f32 %v2495, 1.442695
    %v2499 = vpow.pop %v2498
    %v2500 = vsel %vm501, %v2497, 0.0
    %2501 = vadd.xlane.f32.xlu0 %v2500
    %v2502 = vpop.xlane.xlu0 %2501
    %v2503 = vsel %vm501, %v2499, 0.0
    %2504 = vadd.xlane.f32.xlu0 %v2503
    %v2505 = vpop.xlane.xlu0 %2504
    %v2506 = vrcp.pop %v2502
    %v2507 = vrcp.pop %v2505
    %v2508 = vmul.f32 %v2497, %v2506
    %v2509 = vmul.f32 %v2499, %v2507
    %2510 = vrot.lane.b32.xlu0 %v2326, 64
    %v2511 = vpop.permute.xlu0 %2510
    %v2514 = vsel %vm501, %v2508, 0
    %2516 = vmatprep.subr.mxu0 0.0
    %2517 = vmatpush1.msra.mxu0 %v2511
    %2518 = vmatprep.subr.mxu0 0.0
    %2519 = vmatpush1.msra.mxu0 0.0
    %2520 = vmatprep.subr.mxu0 0.0
    %2521 = vmatpush1.msra.mxu0 0.0
    %2522 = vmatprep.subr.mxu0 0.0
    %2523 = vmatpush1.msra.mxu0 0.0
    %2524 = vmatprep.subr.mxu0 0.0
    %2525 = vmatpush1.msra.mxu0 0.0
    %2526 = vmatprep.subr.mxu0 0.0
    %2527 = vmatpush1.msra.mxu0 0.0
    %2528 = vmatprep.subr.mxu0 0.0
    %2529 = vmatpush1.msra.mxu0 0.0
    %2530 = vmatprep.subr.mxu0 0.0
    %2531 = vmatpush1.msra.mxu0 0.0
    %2532 = vmatprep.subr.mxu0 0.0
    %2533 = vmatpush1.msra.mxu0 0.0
    %2534 = vmatprep.subr.mxu0 0.0
    %2535 = vmatpush1.msra.mxu0 0.0
    %2536 = vmatprep.subr.mxu0 0.0
    %2537 = vmatpush1.msra.mxu0 0.0
    %2538 = vmatprep.subr.mxu0 0.0
    %2539 = vmatpush1.msra.mxu0 0.0
    %2540 = vmatprep.subr.mxu0 0.0
    %2541 = vmatpush1.msra.mxu0 0.0
    %2542 = vmatprep.subr.mxu0 0.0
    %2543 = vmatpush1.msra.mxu0 0.0
    %2544 = vmatprep.subr.mxu0 0.0
    %2545 = vmatpush1.msra.mxu0 0.0
    %2546 = vmatprep.subr.mxu0 0.0
    %2547 = vmatpush1.msra.mxu0 0.0
    %2548 = vmatprep.subr.mxu0 0.0
    %2549 = vmatpush1.msra.mxu0 0.0
    %2550 = vmatprep.subr.mxu0 0.0
    %2551 = vmatpush1.msra.mxu0 0.0
    %2552 = vmatprep.subr.mxu0 0.0
    %2553 = vmatpush1.msra.mxu0 0.0
    %2554 = vmatprep.subr.mxu0 0.0
    %2555 = vmatpush1.msra.mxu0 0.0
    %2556 = vmatprep.subr.mxu0 0.0
    %2557 = vmatpush1.msra.mxu0 0.0
    %2558 = vmatprep.subr.mxu0 0.0
    %2559 = vmatpush1.msra.mxu0 0.0
    %2560 = vmatprep.subr.mxu0 0.0
    %2561 = vmatpush1.msra.mxu0 0.0
    %2562 = vmatprep.subr.mxu0 0.0
    %2563 = vmatpush1.msra.mxu0 0.0
    %2564 = vmatprep.subr.mxu0 0.0
    %2565 = vmatpush1.msra.mxu0 0.0
    %2566 = vmatprep.subr.mxu0 0.0
    %2567 = vmatpush1.msra.mxu0 0.0
    %2568 = vmatprep.subr.mxu0 0.0
    %2569 = vmatpush1.msra.mxu0 0.0
    %2570 = vmatprep.subr.mxu0 0.0
    %2571 = vmatpush1.msra.mxu0 0.0
    %2572 = vmatprep.subr.mxu0 0.0
    %2573 = vmatpush1.msra.mxu0 0.0
    %2574 = vmatprep.subr.mxu0 0.0
    %2575 = vmatpush1.msra.mxu0 0.0
    %2576 = vmatprep.subr.mxu0 0.0
    %2577 = vmatpush1.msra.mxu0 0.0
    %2578 = vmatprep.subr.mxu0 0.0
    %2579 = vmatpush1.msra.mxu0 0.0
    %2580 = vmatprep.mubr.f32.mxu0 0.0
    %2581 = vmatmul.mubr.f32.gmra.mrb[0].mxu0 %v2514
    %v2582 = vpop.f32.mrb[0].mxu0
    %v2583 = vadd.f32 0.0, %v2582
    %v2584 = vpop.f32.mrb[0].mxu0
    %2585 = vdwg.mxu0
    %2586 = vrot.lane.b32.xlu0 %v2331, 64
    %v2587 = vpop.permute.xlu0 %2586
    %v2590 = vsel %vm501, %v2509, 0
    %2592 = vmatprep.subr.mxu0 0.0
    %2593 = vmatpush1.msra.mxu0 %v2587
    %2594 = vmatprep.subr.mxu0 0.0
    %2595 = vmatpush1.msra.mxu0 0.0
    %2596 = vmatprep.subr.mxu0 0.0
    %2597 = vmatpush1.msra.mxu0 0.0
    %2598 = vmatprep.subr.mxu0 0.0
    %2599 = vmatpush1.msra.mxu0 0.0
    %2600 = vmatprep.subr.mxu0 0.0
    %2601 = vmatpush1.msra.mxu0 0.0
    %2602 = vmatprep.subr.mxu0 0.0
    %2603 = vmatpush1.msra.mxu0 0.0
    %2604 = vmatprep.subr.mxu0 0.0
    %2605 = vmatpush1.msra.mxu0 0.0
    %2606 = vmatprep.subr.mxu0 0.0
    %2607 = vmatpush1.msra.mxu0 0.0
    %2608 = vmatprep.subr.mxu0 0.0
    %2609 = vmatpush1.msra.mxu0 0.0
    %2610 = vmatprep.subr.mxu0 0.0
    %2611 = vmatpush1.msra.mxu0 0.0
    %2612 = vmatprep.subr.mxu0 0.0
    %2613 = vmatpush1.msra.mxu0 0.0
    %2614 = vmatprep.subr.mxu0 0.0
    %2615 = vmatpush1.msra.mxu0 0.0
    %2616 = vmatprep.subr.mxu0 0.0
    %2617 = vmatpush1.msra.mxu0 0.0
    %2618 = vmatprep.subr.mxu0 0.0
    %2619 = vmatpush1.msra.mxu0 0.0
    %2620 = vmatprep.subr.mxu0 0.0
    %2621 = vmatpush1.msra.mxu0 0.0
    %2622 = vmatprep.subr.mxu0 0.0
    %2623 = vmatpush1.msra.mxu0 0.0
    %2624 = vmatprep.subr.mxu0 0.0
    %2625 = vmatpush1.msra.mxu0 0.0
    %2626 = vmatprep.subr.mxu0 0.0
    %2627 = vmatpush1.msra.mxu0 0.0
    %2628 = vmatprep.subr.mxu0 0.0
    %2629 = vmatpush1.msra.mxu0 0.0
    %2630 = vmatprep.subr.mxu0 0.0
    %2631 = vmatpush1.msra.mxu0 0.0
    %2632 = vmatprep.subr.mxu0 0.0
    %2633 = vmatpush1.msra.mxu0 0.0
    %2634 = vmatprep.subr.mxu0 0.0
    %2635 = vmatpush1.msra.mxu0 0.0
    %2636 = vmatprep.subr.mxu0 0.0
    %2637 = vmatpush1.msra.mxu0 0.0
    %2638 = vmatprep.subr.mxu0 0.0
    %2639 = vmatpush1.msra.mxu0 0.0
    %2640 = vmatprep.subr.mxu0 0.0
    %2641 = vmatpush1.msra.mxu0 0.0
    %2642 = vmatprep.subr.mxu0 0.0
    %2643 = vmatpush1.msra.mxu0 0.0
    %2644 = vmatprep.subr.mxu0 0.0
    %2645 = vmatpush1.msra.mxu0 0.0
    %2646 = vmatprep.subr.mxu0 0.0
    %2647 = vmatpush1.msra.mxu0 0.0
    %2648 = vmatprep.subr.mxu0 0.0
    %2649 = vmatpush1.msra.mxu0 0.0
    %2650 = vmatprep.subr.mxu0 0.0
    %2651 = vmatpush1.msra.mxu0 0.0
    %2652 = vmatprep.subr.mxu0 0.0
    %2653 = vmatpush1.msra.mxu0 0.0
    %2654 = vmatprep.subr.mxu0 0.0
    %2655 = vmatpush1.msra.mxu0 0.0
    %2656 = vmatprep.mubr.f32.mxu0 0.0
    %2657 = vmatmul.mubr.f32.gmra.mrb[0].mxu0 %v2590
    %v2658 = vpop.f32.mrb[0].mxu0
    %v2659 = vadd.f32 0.0, %v2658
    %v2660 = vpop.f32.mrb[0].mxu0
    %2661 = vdwg.mxu0
    %2662 = vrot.lane.b32.xlu0 %v2326, 120
    %v2663 = vpop.permute.xlu0 %2662
    %2664 = vrot.lane.b32.xlu0 %v2326, 88
    %v2665 = vpop.permute.xlu0 %2664
    %v2666 = vsel %vm501, %v2663, 0
    %v2668 = vsel %vm501, %v2665, 0
    %2670 = vmatprep.subr.mxu0 0.0
    %2671 = vmatpush1.xpose.msra.mxu0 %v2668
    %2672 = vmatprep.subr.mxu0 0.0
    %2673 = vmatpush1.xpose.msra.mxu0 0.0
    %2674 = vmatprep.subr.mxu0 0.0
    %2675 = vmatpush1.xpose.msra.mxu0 0.0
    %2676 = vmatprep.subr.mxu0 0.0
    %2677 = vmatpush1.xpose.msra.mxu0 0.0
    %2678 = vmatprep.subr.mxu0 0.0
    %2679 = vmatpush1.xpose.msra.mxu0 0.0
    %2680 = vmatprep.subr.mxu0 0.0
    %2681 = vmatpush1.xpose.msra.mxu0 0.0
    %2682 = vmatprep.subr.mxu0 0.0
    %2683 = vmatpush1.xpose.msra.mxu0 0.0
    %2684 = vmatprep.subr.mxu0 0.0
    %2685 = vmatpush1.xpose.msra.mxu0 0.0
    %2686 = vmatprep.subr.mxu0 0.0
    %2687 = vmatpush1.xpose.msra.mxu0 0.0
    %2688 = vmatprep.subr.mxu0 0.0
    %2689 = vmatpush1.xpose.msra.mxu0 0.0
    %2690 = vmatprep.subr.mxu0 0.0
    %2691 = vmatpush1.xpose.msra.mxu0 0.0
    %2692 = vmatprep.subr.mxu0 0.0
    %2693 = vmatpush1.xpose.msra.mxu0 0.0
    %2694 = vmatprep.subr.mxu0 0.0
    %2695 = vmatpush1.xpose.msra.mxu0 0.0
    %2696 = vmatprep.subr.mxu0 0.0
    %2697 = vmatpush1.xpose.msra.mxu0 0.0
    %2698 = vmatprep.subr.mxu0 0.0
    %2699 = vmatpush1.xpose.msra.mxu0 0.0
    %2700 = vmatprep.subr.mxu0 0.0
    %2701 = vmatpush1.xpose.msra.mxu0 0.0
    %2702 = vmatprep.subr.mxu0 0.0
    %2703 = vmatpush1.xpose.msra.mxu0 0.0
    %2704 = vmatprep.subr.mxu0 0.0
    %2705 = vmatpush1.xpose.msra.mxu0 0.0
    %2706 = vmatprep.subr.mxu0 0.0
    %2707 = vmatpush1.xpose.msra.mxu0 0.0
    %2708 = vmatprep.subr.mxu0 0.0
    %2709 = vmatpush1.xpose.msra.mxu0 0.0
    %2710 = vmatprep.subr.mxu0 0.0
    %2711 = vmatpush1.xpose.msra.mxu0 0.0
    %2712 = vmatprep.subr.mxu0 0.0
    %2713 = vmatpush1.xpose.msra.mxu0 0.0
    %2714 = vmatprep.subr.mxu0 0.0
    %2715 = vmatpush1.xpose.msra.mxu0 0.0
    %2716 = vmatprep.subr.mxu0 0.0
    %2717 = vmatpush1.xpose.msra.mxu0 0.0
    %2718 = vmatprep.subr.mxu0 0.0
    %2719 = vmatpush1.xpose.msra.mxu0 0.0
    %2720 = vmatprep.subr.mxu0 0.0
    %2721 = vmatpush1.xpose.msra.mxu0 0.0
    %2722 = vmatprep.subr.mxu0 0.0
    %2723 = vmatpush1.xpose.msra.mxu0 0.0
    %2724 = vmatprep.subr.mxu0 0.0
    %2725 = vmatpush1.xpose.msra.mxu0 0.0
    %2726 = vmatprep.subr.mxu0 0.0
    %2727 = vmatpush1.xpose.msra.mxu0 0.0
    %2728 = vmatprep.subr.mxu0 0.0
    %2729 = vmatpush1.xpose.msra.mxu0 0.0
    %2730 = vmatprep.subr.mxu0 0.0
    %2731 = vmatpush1.xpose.msra.mxu0 0.0
    %2732 = vmatprep.subr.mxu0 0.0
    %2733 = vmatpush1.xpose.msra.mxu0 0.0
    %2734 = vmatprep.mubr.f32.mxu0 0.0
    %2735 = vmatmul.mubr.f32.gmra.mrb[0].mxu0 %v2666
    %v2736 = vpop.f32.mrb[0].mxu0
    %v2737 = vadd.f32 0.0, %v2736
    %v2738 = vpop.f32.mrb[0].mxu0
    %2739 = vdwg.mxu0
    %2740 = vrot.lane.b32.xlu0 %v2331, 120
    %v2741 = vpop.permute.xlu0 %2740
    %2742 = vrot.lane.b32.xlu0 %v2331, 88
    %v2743 = vpop.permute.xlu0 %2742
    %v2744 = vsel %vm501, %v2741, 0
    %v2746 = vsel %vm501, %v2743, 0
    %2748 = vmatprep.subr.mxu0 0.0
    %2749 = vmatpush1.xpose.msra.mxu0 %v2746
    %2750 = vmatprep.subr.mxu0 0.0
    %2751 = vmatpush1.xpose.msra.mxu0 0.0
    %2752 = vmatprep.subr.mxu0 0.0
    %2753 = vmatpush1.xpose.msra.mxu0 0.0
    %2754 = vmatprep.subr.mxu0 0.0
    %2755 = vmatpush1.xpose.msra.mxu0 0.0
    %2756 = vmatprep.subr.mxu0 0.0
    %2757 = vmatpush1.xpose.msra.mxu0 0.0
    %2758 = vmatprep.subr.mxu0 0.0
    %2759 = vmatpush1.xpose.msra.mxu0 0.0
    %2760 = vmatprep.subr.mxu0 0.0
    %2761 = vmatpush1.xpose.msra.mxu0 0.0
    %2762 = vmatprep.subr.mxu0 0.0
    %2763 = vmatpush1.xpose.msra.mxu0 0.0
    %2764 = vmatprep.subr.mxu0 0.0
    %2765 = vmatpush1.xpose.msra.mxu0 0.0
    %2766 = vmatprep.subr.mxu0 0.0
    %2767 = vmatpush1.xpose.msra.mxu0 0.0
    %2768 = vmatprep.subr.mxu0 0.0
    %2769 = vmatpush1.xpose.msra.mxu0 0.0
    %2770 = vmatprep.subr.mxu0 0.0
    %2771 = vmatpush1.xpose.msra.mxu0 0.0
    %2772 = vmatprep.subr.mxu0 0.0
    %2773 = vmatpush1.xpose.msra.mxu0 0.0
    %2774 = vmatprep.subr.mxu0 0.0
    %2775 = vmatpush1.xpose.msra.mxu0 0.0
    %2776 = vmatprep.subr.mxu0 0.0
    %2777 = vmatpush1.xpose.msra.mxu0 0.0
    %2778 = vmatprep.subr.mxu0 0.0
    %2779 = vmatpush1.xpose.msra.mxu0 0.0
    %2780 = vmatprep.subr.mxu0 0.0
    %2781 = vmatpush1.xpose.msra.mxu0 0.0
    %2782 = vmatprep.subr.mxu0 0.0
    %2783 = vmatpush1.xpose.msra.mxu0 0.0
    %2784 = vmatprep.subr.mxu0 0.0
    %2785 = vmatpush1.xpose.msra.mxu0 0.0
    %2786 = vmatprep.subr.mxu0 0.0
    %2787 = vmatpush1.xpose.msra.mxu0 0.0
    %2788 = vmatprep.subr.mxu0 0.0
    %2789 = vmatpush1.xpose.msra.mxu0 0.0
    %2790 = vmatprep.subr.mxu0 0.0
    %2791 = vmatpush1.xpose.msra.mxu0 0.0
    %2792 = vmatprep.subr.mxu0 0.0
    %2793 = vmatpush1.xpose.msra.mxu0 0.0
    %2794 = vmatprep.subr.mxu0 0.0
    %2795 = vmatpush1.xpose.msra.mxu0 0.0
    %2796 = vmatprep.subr.mxu0 0.0
    %2797 = vmatpush1.xpose.msra.mxu0 0.0
    %2798 = vmatprep.subr.mxu0 0.0
    %2799 = vmatpush1.xpose.msra.mxu0 0.0
    %2800 = vmatprep.subr.mxu0 0.0
    %2801 = vmatpush1.xpose.msra.mxu0 0.0
    %2802 = vmatprep.subr.mxu0 0.0
    %2803 = vmatpush1.xpose.msra.mxu0 0.0
    %2804 = vmatprep.subr.mxu0 0.0
    %2805 = vmatpush1.xpose.msra.mxu0 0.0
    %2806 = vmatprep.subr.mxu0 0.0
    %2807 = vmatpush1.xpose.msra.mxu0 0.0
    %2808 = vmatprep.subr.mxu0 0.0
    %2809 = vmatpush1.xpose.msra.mxu0 0.0
    %2810 = vmatprep.subr.mxu0 0.0
    %2811 = vmatpush1.xpose.msra.mxu0 0.0
    %2812 = vmatprep.mubr.f32.mxu0 0.0
    %2813 = vmatmul.mubr.f32.gmra.mrb[0].mxu0 %v2744
    %v2814 = vpop.f32.mrb[0].mxu0
    %v2815 = vadd.f32 0.0, %v2814
    %v2816 = vpop.f32.mrb[0].mxu0
    %2817 = vdwg.mxu0
    %v2818 = vsel %vm501, %v2737, -inf
    %2819 = vmax.xlane.f32.xlu0 %v2818
    %v2820 = vpop.xlane.xlu0 %2819
    %v2821 = vsel %vm501, %v2815, -inf
    %2822 = vmax.xlane.f32.xlu0 %v2821
    %v2823 = vpop.xlane.xlu0 %2822
    %v2824 = vsub.f32 %v2737, %v2820
    %v2825 = vsub.f32 %v2815, %v2823
    %v2826 = vmul.f32 %v2824, 1.442695
    %v2827 = vpow.pop %v2826
    %v2828 = vmul.f32 %v2825, 1.442695
    %v2829 = vpow.pop %v2828
    %v2830 = vsel %vm501, %v2827, 0.0
    %2831 = vadd.xlane.f32.xlu0 %v2830
    %v2832 = vpop.xlane.xlu0 %2831
    %v2833 = vsel %vm501, %v2829, 0.0
    %2834 = vadd.xlane.f32.xlu0 %v2833
    %v2835 = vpop.xlane.xlu0 %2834
    %v2836 = vrcp.pop %v2832
    %v2837 = vrcp.pop %v2835
    %v2838 = vmul.f32 %v2827, %v2836
    %v2839 = vmul.f32 %v2829, %v2837
    %2840 = vrot.lane.b32.xlu0 %v2326, 56
    %v2841 = vpop.permute.xlu0 %2840
    %v2844 = vsel %vm501, %v2838, 0
    %2846 = vmatprep.subr.mxu0 0.0
    %2847 = vmatpush1.msra.mxu0 %v2841
    %2848 = vmatprep.subr.mxu0 0.0
    %2849 = vmatpush1.msra.mxu0 0.0
    %2850 = vmatprep.subr.mxu0 0.0
    %2851 = vmatpush1.msra.mxu0 0.0
    %2852 = vmatprep.subr.mxu0 0.0
    %2853 = vmatpush1.msra.mxu0 0.0
    %2854 = vmatprep.subr.mxu0 0.0
    %2855 = vmatpush1.msra.mxu0 0.0
    %2856 = vmatprep.subr.mxu0 0.0
    %2857 = vmatpush1.msra.mxu0 0.0
    %2858 = vmatprep.subr.mxu0 0.0
    %2859 = vmatpush1.msra.mxu0 0.0
    %2860 = vmatprep.subr.mxu0 0.0
    %2861 = vmatpush1.msra.mxu0 0.0
    %2862 = vmatprep.subr.mxu0 0.0
    %2863 = vmatpush1.msra.mxu0 0.0
    %2864 = vmatprep.subr.mxu0 0.0
    %2865 = vmatpush1.msra.mxu0 0.0
    %2866 = vmatprep.subr.mxu0 0.0
    %2867 = vmatpush1.msra.mxu0 0.0
    %2868 = vmatprep.subr.mxu0 0.0
    %2869 = vmatpush1.msra.mxu0 0.0
    %2870 = vmatprep.subr.mxu0 0.0
    %2871 = vmatpush1.msra.mxu0 0.0
    %2872 = vmatprep.subr.mxu0 0.0
    %2873 = vmatpush1.msra.mxu0 0.0
    %2874 = vmatprep.subr.mxu0 0.0
    %2875 = vmatpush1.msra.mxu0 0.0
    %2876 = vmatprep.subr.mxu0 0.0
    %2877 = vmatpush1.msra.mxu0 0.0
    %2878 = vmatprep.subr.mxu0 0.0
    %2879 = vmatpush1.msra.mxu0 0.0
    %2880 = vmatprep.subr.mxu0 0.0
    %2881 = vmatpush1.msra.mxu0 0.0
    %2882 = vmatprep.subr.mxu0 0.0
    %2883 = vmatpush1.msra.mxu0 0.0
    %2884 = vmatprep.subr.mxu0 0.0
    %2885 = vmatpush1.msra.mxu0 0.0
    %2886 = vmatprep.subr.mxu0 0.0
    %2887 = vmatpush1.msra.mxu0 0.0
    %2888 = vmatprep.subr.mxu0 0.0
    %2889 = vmatpush1.msra.mxu0 0.0
    %2890 = vmatprep.subr.mxu0 0.0
    %2891 = vmatpush1.msra.mxu0 0.0
    %2892 = vmatprep.subr.mxu0 0.0
    %2893 = vmatpush1.msra.mxu0 0.0
    %2894 = vmatprep.subr.mxu0 0.0
    %2895 = vmatpush1.msra.mxu0 0.0
    %2896 = vmatprep.subr.mxu0 0.0
    %2897 = vmatpush1.msra.mxu0 0.0
    %2898 = vmatprep.subr.mxu0 0.0
    %2899 = vmatpush1.msra.mxu0 0.0
    %2900 = vmatprep.subr.mxu0 0.0
    %2901 = vmatpush1.msra.mxu0 0.0
    %2902 = vmatprep.subr.mxu0 0.0
    %2903 = vmatpush1.msra.mxu0 0.0
    %2904 = vmatprep.subr.mxu0 0.0
    %2905 = vmatpush1.msra.mxu0 0.0
    %2906 = vmatprep.subr.mxu0 0.0
    %2907 = vmatpush1.msra.mxu0 0.0
    %2908 = vmatprep.subr.mxu0 0.0
    %2909 = vmatpush1.msra.mxu0 0.0
    %2910 = vmatprep.mubr.f32.mxu0 0.0
    %2911 = vmatmul.mubr.f32.gmra.mrb[0].mxu0 %v2844
    %v2912 = vpop.f32.mrb[0].mxu0
    %v2913 = vadd.f32 0.0, %v2912
    %v2914 = vpop.f32.mrb[0].mxu0
    %2915 = vdwg.mxu0
    %2916 = vrot.lane.b32.xlu0 %v2331, 56
    %v2917 = vpop.permute.xlu0 %2916
    %v2920 = vsel %vm501, %v2839, 0
    %2922 = vmatprep.subr.mxu0 0.0
    %2923 = vmatpush1.msra.mxu0 %v2917
    %2924 = vmatprep.subr.mxu0 0.0
    %2925 = vmatpush1.msra.mxu0 0.0
    %2926 = vmatprep.subr.mxu0 0.0
    %2927 = vmatpush1.msra.mxu0 0.0
    %2928 = vmatprep.subr.mxu0 0.0
    %2929 = vmatpush1.msra.mxu0 0.0
    %2930 = vmatprep.subr.mxu0 0.0
    %2931 = vmatpush1.msra.mxu0 0.0
    %2932 = vmatprep.subr.mxu0 0.0
    %2933 = vmatpush1.msra.mxu0 0.0
    %2934 = vmatprep.subr.mxu0 0.0
    %2935 = vmatpush1.msra.mxu0 0.0
    %2936 = vmatprep.subr.mxu0 0.0
    %2937 = vmatpush1.msra.mxu0 0.0
    %2938 = vmatprep.subr.mxu0 0.0
    %2939 = vmatpush1.msra.mxu0 0.0
    %2940 = vmatprep.subr.mxu0 0.0
    %2941 = vmatpush1.msra.mxu0 0.0
    %2942 = vmatprep.subr.mxu0 0.0
    %2943 = vmatpush1.msra.mxu0 0.0
    %2944 = vmatprep.subr.mxu0 0.0
    %2945 = vmatpush1.msra.mxu0 0.0
    %2946 = vmatprep.subr.mxu0 0.0
    %2947 = vmatpush1.msra.mxu0 0.0
    %2948 = vmatprep.subr.mxu0 0.0
    %2949 = vmatpush1.msra.mxu0 0.0
    %2950 = vmatprep.subr.mxu0 0.0
    %2951 = vmatpush1.msra.mxu0 0.0
    %2952 = vmatprep.subr.mxu0 0.0
    %2953 = vmatpush1.msra.mxu0 0.0
    %2954 = vmatprep.subr.mxu0 0.0
    %2955 = vmatpush1.msra.mxu0 0.0
    %2956 = vmatprep.subr.mxu0 0.0
    %2957 = vmatpush1.msra.mxu0 0.0
    %2958 = vmatprep.subr.mxu0 0.0
    %2959 = vmatpush1.msra.mxu0 0.0
    %2960 = vmatprep.subr.mxu0 0.0
    %2961 = vmatpush1.msra.mxu0 0.0
    %2962 = vmatprep.subr.mxu0 0.0
    %2963 = vmatpush1.msra.mxu0 0.0
    %2964 = vmatprep.subr.mxu0 0.0
    %2965 = vmatpush1.msra.mxu0 0.0
    %2966 = vmatprep.subr.mxu0 0.0
    %2967 = vmatpush1.msra.mxu0 0.0
    %2968 = vmatprep.subr.mxu0 0.0
    %2969 = vmatpush1.msra.mxu0 0.0
    %2970 = vmatprep.subr.mxu0 0.0
    %2971 = vmatpush1.msra.mxu0 0.0
    %2972 = vmatprep.subr.mxu0 0.0
    %2973 = vmatpush1.msra.mxu0 0.0
    %2974 = vmatprep.subr.mxu0 0.0
    %2975 = vmatpush1.msra.mxu0 0.0
    %2976 = vmatprep.subr.mxu0 0.0
    %2977 = vmatpush1.msra.mxu0 0.0
    %2978 = vmatprep.subr.mxu0 0.0
    %2979 = vmatpush1.msra.mxu0 0.0
    %2980 = vmatprep.subr.mxu0 0.0
    %2981 = vmatpush1.msra.mxu0 0.0
    %2982 = vmatprep.subr.mxu0 0.0
    %2983 = vmatpush1.msra.mxu0 0.0
    %2984 = vmatprep.subr.mxu0 0.0
    %2985 = vmatpush1.msra.mxu0 0.0
    %2986 = vmatprep.mubr.f32.mxu0 0.0
    %2987 = vmatmul.mubr.f32.gmra.mrb[0].mxu0 %v2920
    %v2988 = vpop.f32.mrb[0].mxu0
    %v2989 = vadd.f32 0.0, %v2988
    %v2990 = vpop.f32.mrb[0].mxu0
    %2991 = vdwg.mxu0
    %2992 = vrot.lane.b32.xlu0 %v2326, 112
    %v2993 = vpop.permute.xlu0 %2992
    %2994 = vrot.lane.b32.xlu0 %v2326, 80
    %v2995 = vpop.permute.xlu0 %2994
    %v2996 = vsel %vm501, %v2993, 0
    %v2998 = vsel %vm501, %v2995, 0
    %3000 = vmatprep.subr.mxu0 0.0
    %3001 = vmatpush1.xpose.msra.mxu0 %v2998
    %3002 = vmatprep.subr.mxu0 0.0
    %3003 = vmatpush1.xpose.msra.mxu0 0.0
    %3004 = vmatprep.subr.mxu0 0.0
    %3005 = vmatpush1.xpose.msra.mxu0 0.0
    %3006 = vmatprep.subr.mxu0 0.0
    %3007 = vmatpush1.xpose.msra.mxu0 0.0
    %3008 = vmatprep.subr.mxu0 0.0
    %3009 = vmatpush1.xpose.msra.mxu0 0.0
    %3010 = vmatprep.subr.mxu0 0.0
    %3011 = vmatpush1.xpose.msra.mxu0 0.0
    %3012 = vmatprep.subr.mxu0 0.0
    %3013 = vmatpush1.xpose.msra.mxu0 0.0
    %3014 = vmatprep.subr.mxu0 0.0
    %3015 = vmatpush1.xpose.msra.mxu0 0.0
    %3016 = vmatprep.subr.mxu0 0.0
    %3017 = vmatpush1.xpose.msra.mxu0 0.0
    %3018 = vmatprep.subr.mxu0 0.0
    %3019 = vmatpush1.xpose.msra.mxu0 0.0
    %3020 = vmatprep.subr.mxu0 0.0
    %3021 = vmatpush1.xpose.msra.mxu0 0.0
    %3022 = vmatprep.subr.mxu0 0.0
    %3023 = vmatpush1.xpose.msra.mxu0 0.0
    %3024 = vmatprep.subr.mxu0 0.0
    %3025 = vmatpush1.xpose.msra.mxu0 0.0
    %3026 = vmatprep.subr.mxu0 0.0
    %3027 = vmatpush1.xpose.msra.mxu0 0.0
    %3028 = vmatprep.subr.mxu0 0.0
    %3029 = vmatpush1.xpose.msra.mxu0 0.0
    %3030 = vmatprep.subr.mxu0 0.0
    %3031 = vmatpush1.xpose.msra.mxu0 0.0
    %3032 = vmatprep.subr.mxu0 0.0
    %3033 = vmatpush1.xpose.msra.mxu0 0.0
    %3034 = vmatprep.subr.mxu0 0.0
    %3035 = vmatpush1.xpose.msra.mxu0 0.0
    %3036 = vmatprep.subr.mxu0 0.0
    %3037 = vmatpush1.xpose.msra.mxu0 0.0
    %3038 = vmatprep.subr.mxu0 0.0
    %3039 = vmatpush1.xpose.msra.mxu0 0.0
    %3040 = vmatprep.subr.mxu0 0.0
    %3041 = vmatpush1.xpose.msra.mxu0 0.0
    %3042 = vmatprep.subr.mxu0 0.0
    %3043 = vmatpush1.xpose.msra.mxu0 0.0
    %3044 = vmatprep.subr.mxu0 0.0
    %3045 = vmatpush1.xpose.msra.mxu0 0.0
    %3046 = vmatprep.subr.mxu0 0.0
    %3047 = vmatpush1.xpose.msra.mxu0 0.0
    %3048 = vmatprep.subr.mxu0 0.0
    %3049 = vmatpush1.xpose.msra.mxu0 0.0
    %3050 = vmatprep.subr.mxu0 0.0
    %3051 = vmatpush1.xpose.msra.mxu0 0.0
    %3052 = vmatprep.subr.mxu0 0.0
    %3053 = vmatpush1.xpose.msra.mxu0 0.0
    %3054 = vmatprep.subr.mxu0 0.0
    %3055 = vmatpush1.xpose.msra.mxu0 0.0
    %3056 = vmatprep.subr.mxu0 0.0
    %3057 = vmatpush1.xpose.msra.mxu0 0.0
    %3058 = vmatprep.subr.mxu0 0.0
    %3059 = vmatpush1.xpose.msra.mxu0 0.0
    %3060 = vmatprep.subr.mxu0 0.0
    %3061 = vmatpush1.xpose.msra.mxu0 0.0
    %3062 = vmatprep.subr.mxu0 0.0
    %3063 = vmatpush1.xpose.msra.mxu0 0.0
    %3064 = vmatprep.mubr.f32.mxu0 0.0
    %3065 = vmatmul.mubr.f32.gmra.mrb[0].mxu0 %v2996
    %v3066 = vpop.f32.mrb[0].mxu0
    %v3067 = vadd.f32 0.0, %v3066
    %v3068 = vpop.f32.mrb[0].mxu0
    %3069 = vdwg.mxu0
    %3070 = vrot.lane.b32.xlu0 %v2331, 112
    %v3071 = vpop.permute.xlu0 %3070
    %3072 = vrot.lane.b32.xlu0 %v2331, 80
    %v3073 = vpop.permute.xlu0 %3072
    %v3074 = vsel %vm501, %v3071, 0
    %v3076 = vsel %vm501, %v3073, 0
    %3078 = vmatprep.subr.mxu0 0.0
    %3079 = vmatpush1.xpose.msra.mxu0 %v3076
    %3080 = vmatprep.subr.mxu0 0.0
    %3081 = vmatpush1.xpose.msra.mxu0 0.0
    %3082 = vmatprep.subr.mxu0 0.0
    %3083 = vmatpush1.xpose.msra.mxu0 0.0
    %3084 = vmatprep.subr.mxu0 0.0
    %3085 = vmatpush1.xpose.msra.mxu0 0.0
    %3086 = vmatprep.subr.mxu0 0.0
    %3087 = vmatpush1.xpose.msra.mxu0 0.0
    %3088 = vmatprep.subr.mxu0 0.0
    %3089 = vmatpush1.xpose.msra.mxu0 0.0
    %3090 = vmatprep.subr.mxu0 0.0
    %3091 = vmatpush1.xpose.msra.mxu0 0.0
    %3092 = vmatprep.subr.mxu0 0.0
    %3093 = vmatpush1.xpose.msra.mxu0 0.0
    %3094 = vmatprep.subr.mxu0 0.0
    %3095 = vmatpush1.xpose.msra.mxu0 0.0
    %3096 = vmatprep.subr.mxu0 0.0
    %3097 = vmatpush1.xpose.msra.mxu0 0.0
    %3098 = vmatprep.subr.mxu0 0.0
    %3099 = vmatpush1.xpose.msra.mxu0 0.0
    %3100 = vmatprep.subr.mxu0 0.0
    %3101 = vmatpush1.xpose.msra.mxu0 0.0
    %3102 = vmatprep.subr.mxu0 0.0
    %3103 = vmatpush1.xpose.msra.mxu0 0.0
    %3104 = vmatprep.subr.mxu0 0.0
    %3105 = vmatpush1.xpose.msra.mxu0 0.0
    %3106 = vmatprep.subr.mxu0 0.0
    %3107 = vmatpush1.xpose.msra.mxu0 0.0
    %3108 = vmatprep.subr.mxu0 0.0
    %3109 = vmatpush1.xpose.msra.mxu0 0.0
    %3110 = vmatprep.subr.mxu0 0.0
    %3111 = vmatpush1.xpose.msra.mxu0 0.0
    %3112 = vmatprep.subr.mxu0 0.0
    %3113 = vmatpush1.xpose.msra.mxu0 0.0
    %3114 = vmatprep.subr.mxu0 0.0
    %3115 = vmatpush1.xpose.msra.mxu0 0.0
    %3116 = vmatprep.subr.mxu0 0.0
    %3117 = vmatpush1.xpose.msra.mxu0 0.0
    %3118 = vmatprep.subr.mxu0 0.0
    %3119 = vmatpush1.xpose.msra.mxu0 0.0
    %3120 = vmatprep.subr.mxu0 0.0
    %3121 = vmatpush1.xpose.msra.mxu0 0.0
    %3122 = vmatprep.subr.mxu0 0.0
    %3123 = vmatpush1.xpose.msra.mxu0 0.0
    %3124 = vmatprep.subr.mxu0 0.0
    %3125 = vmatpush1.xpose.msra.mxu0 0.0
    %3126 = vmatprep.subr.mxu0 0.0
    %3127 = vmatpush1.xpose.msra.mxu0 0.0
    %3128 = vmatprep.subr.mxu0 0.0
    %3129 = vmatpush1.xpose.msra.mxu0 0.0
    %3130 = vmatprep.subr.mxu0 0.0
    %3131 = vmatpush1.xpose.msra.mxu0 0.0
    %3132 = vmatprep.subr.mxu0 0.0
    %3133 = vmatpush1.xpose.msra.mxu0 0.0
    %3134 = vmatprep.subr.mxu0 0.0
    %3135 = vmatpush1.xpose.msra.mxu0 0.0
    %3136 = vmatprep.subr.mxu0 0.0
    %3137 = vmatpush1.xpose.msra.mxu0 0.0
    %3138 = vmatprep.subr.mxu0 0.0
    %3139 = vmatpush1.xpose.msra.mxu0 0.0
    %3140 = vmatprep.subr.mxu0 0.0
    %3141 = vmatpush1.xpose.msra.mxu0 0.0
    %3142 = vmatprep.mubr.f32.mxu0 0.0
    %3143 = vmatmul.mubr.f32.gmra.mrb[0].mxu0 %v3074
    %v3144 = vpop.f32.mrb[0].mxu0
    %v3145 = vadd.f32 0.0, %v3144
    %v3146 = vpop.f32.mrb[0].mxu0
    %3147 = vdwg.mxu0
    %v3148 = vsel %vm501, %v3067, -inf
    %3149 = vmax.xlane.f32.xlu0 %v3148
    %v3150 = vpop.xlane.xlu0 %3149
    %v3151 = vsel %vm501, %v3145, -inf
    %3152 = vmax.xlane.f32.xlu0 %v3151
    %v3153 = vpop.xlane.xlu0 %3152
    %v3154 = vsub.f32 %v3067, %v3150
    %v3155 = vsub.f32 %v3145, %v3153
    %v3156 = vmul.f32 %v3154, 1.442695
    %v3157 = vpow.pop %v3156
    %v3158 = vmul.f32 %v3155, 1.442695
    %v3159 = vpow.pop %v3158
    %v3160 = vsel %vm501, %v3157, 0.0
    %3161 = vadd.xlane.f32.xlu0 %v3160
    %v3162 = vpop.xlane.xlu0 %3161
    %v3163 = vsel %vm501, %v3159, 0.0
    %3164 = vadd.xlane.f32.xlu0 %v3163
    %v3165 = vpop.xlane.xlu0 %3164
    %v3166 = vrcp.pop %v3162
    %v3167 = vrcp.pop %v3165
    %v3168 = vmul.f32 %v3157, %v3166
    %v3169 = vmul.f32 %v3159, %v3167
    %3170 = vrot.lane.b32.xlu0 %v2326, 48
    %v3171 = vpop.permute.xlu0 %3170
    %v3174 = vsel %vm501, %v3168, 0
    %3176 = vmatprep.subr.mxu0 0.0
    %3177 = vmatpush1.msra.mxu0 %v3171
    %3178 = vmatprep.subr.mxu0 0.0
    %3179 = vmatpush1.msra.mxu0 0.0
    %3180 = vmatprep.subr.mxu0 0.0
    %3181 = vmatpush1.msra.mxu0 0.0
    %3182 = vmatprep.subr.mxu0 0.0
    %3183 = vmatpush1.msra.mxu0 0.0
    %3184 = vmatprep.subr.mxu0 0.0
    %3185 = vmatpush1.msra.mxu0 0.0
    %3186 = vmatprep.subr.mxu0 0.0
    %3187 = vmatpush1.msra.mxu0 0.0
    %3188 = vmatprep.subr.mxu0 0.0
    %3189 = vmatpush1.msra.mxu0 0.0
    %3190 = vmatprep.subr.mxu0 0.0
    %3191 = vmatpush1.msra.mxu0 0.0
    %3192 = vmatprep.subr.mxu0 0.0
    %3193 = vmatpush1.msra.mxu0 0.0
    %3194 = vmatprep.subr.mxu0 0.0
    %3195 = vmatpush1.msra.mxu0 0.0
    %3196 = vmatprep.subr.mxu0 0.0
    %3197 = vmatpush1.msra.mxu0 0.0
    %3198 = vmatprep.subr.mxu0 0.0
    %3199 = vmatpush1.msra.mxu0 0.0
    %3200 = vmatprep.subr.mxu0 0.0
    %3201 = vmatpush1.msra.mxu0 0.0
    %3202 = vmatprep.subr.mxu0 0.0
    %3203 = vmatpush1.msra.mxu0 0.0
    %3204 = vmatprep.subr.mxu0 0.0
    %3205 = vmatpush1.msra.mxu0 0.0
    %3206 = vmatprep.subr.mxu0 0.0
    %3207 = vmatpush1.msra.mxu0 0.0
    %3208 = vmatprep.subr.mxu0 0.0
    %3209 = vmatpush1.msra.mxu0 0.0
    %3210 = vmatprep.subr.mxu0 0.0
    %3211 = vmatpush1.msra.mxu0 0.0
    %3212 = vmatprep.subr.mxu0 0.0
    %3213 = vmatpush1.msra.mxu0 0.0
    %3214 = vmatprep.subr.mxu0 0.0
    %3215 = vmatpush1.msra.mxu0 0.0
    %3216 = vmatprep.subr.mxu0 0.0
    %3217 = vmatpush1.msra.mxu0 0.0
    %3218 = vmatprep.subr.mxu0 0.0
    %3219 = vmatpush1.msra.mxu0 0.0
    %3220 = vmatprep.subr.mxu0 0.0
    %3221 = vmatpush1.msra.mxu0 0.0
    %3222 = vmatprep.subr.mxu0 0.0
    %3223 = vmatpush1.msra.mxu0 0.0
    %3224 = vmatprep.subr.mxu0 0.0
    %3225 = vmatpush1.msra.mxu0 0.0
    %3226 = vmatprep.subr.mxu0 0.0
    %3227 = vmatpush1.msra.mxu0 0.0
    %3228 = vmatprep.subr.mxu0 0.0
    %3229 = vmatpush1.msra.mxu0 0.0
    %3230 = vmatprep.subr.mxu0 0.0
    %3231 = vmatpush1.msra.mxu0 0.0
    %3232 = vmatprep.subr.mxu0 0.0
    %3233 = vmatpush1.msra.mxu0 0.0
    %3234 = vmatprep.subr.mxu0 0.0
    %3235 = vmatpush1.msra.mxu0 0.0
    %3236 = vmatprep.subr.mxu0 0.0
    %3237 = vmatpush1.msra.mxu0 0.0
    %3238 = vmatprep.subr.mxu0 0.0
    %3239 = vmatpush1.msra.mxu0 0.0
    %3240 = vmatprep.mubr.f32.mxu0 0.0
    %3241 = vmatmul.mubr.f32.gmra.mrb[0].mxu0 %v3174
    %v3242 = vpop.f32.mrb[0].mxu0
    %v3243 = vadd.f32 0.0, %v3242
    %v3244 = vpop.f32.mrb[0].mxu0
    %3245 = vdwg.mxu0
    %3246 = vrot.lane.b32.xlu0 %v2331, 48
    %v3247 = vpop.permute.xlu0 %3246
    %v3250 = vsel %vm501, %v3169, 0
    %3252 = vmatprep.subr.mxu0 0.0
    %3253 = vmatpush1.msra.mxu0 %v3247
    %3254 = vmatprep.subr.mxu0 0.0
    %3255 = vmatpush1.msra.mxu0 0.0
    %3256 = vmatprep.subr.mxu0 0.0
    %3257 = vmatpush1.msra.mxu0 0.0
    %3258 = vmatprep.subr.mxu0 0.0
    %3259 = vmatpush1.msra.mxu0 0.0
    %3260 = vmatprep.subr.mxu0 0.0
    %3261 = vmatpush1.msra.mxu0 0.0
    %3262 = vmatprep.subr.mxu0 0.0
    %3263 = vmatpush1.msra.mxu0 0.0
    %3264 = vmatprep.subr.mxu0 0.0
    %3265 = vmatpush1.msra.mxu0 0.0
    %3266 = vmatprep.subr.mxu0 0.0
    %3267 = vmatpush1.msra.mxu0 0.0
    %3268 = vmatprep.subr.mxu0 0.0
    %3269 = vmatpush1.msra.mxu0 0.0
    %3270 = vmatprep.subr.mxu0 0.0
    %3271 = vmatpush1.msra.mxu0 0.0
    %3272 = vmatprep.subr.mxu0 0.0
    %3273 = vmatpush1.msra.mxu0 0.0
    %3274 = vmatprep.subr.mxu0 0.0
    %3275 = vmatpush1.msra.mxu0 0.0
    %3276 = vmatprep.subr.mxu0 0.0
    %3277 = vmatpush1.msra.mxu0 0.0
    %3278 = vmatprep.subr.mxu0 0.0
    %3279 = vmatpush1.msra.mxu0 0.0
    %3280 = vmatprep.subr.mxu0 0.0
    %3281 = vmatpush1.msra.mxu0 0.0
    %3282 = vmatprep.subr.mxu0 0.0
    %3283 = vmatpush1.msra.mxu0 0.0
    %3284 = vmatprep.subr.mxu0 0.0
    %3285 = vmatpush1.msra.mxu0 0.0
    %3286 = vmatprep.subr.mxu0 0.0
    %3287 = vmatpush1.msra.mxu0 0.0
    %3288 = vmatprep.subr.mxu0 0.0
    %3289 = vmatpush1.msra.mxu0 0.0
    %3290 = vmatprep.subr.mxu0 0.0
    %3291 = vmatpush1.msra.mxu0 0.0
    %3292 = vmatprep.subr.mxu0 0.0
    %3293 = vmatpush1.msra.mxu0 0.0
    %3294 = vmatprep.subr.mxu0 0.0
    %3295 = vmatpush1.msra.mxu0 0.0
    %3296 = vmatprep.subr.mxu0 0.0
    %3297 = vmatpush1.msra.mxu0 0.0
    %3298 = vmatprep.subr.mxu0 0.0
    %3299 = vmatpush1.msra.mxu0 0.0
    %3300 = vmatprep.subr.mxu0 0.0
    %3301 = vmatpush1.msra.mxu0 0.0
    %3302 = vmatprep.subr.mxu0 0.0
    %3303 = vmatpush1.msra.mxu0 0.0
    %3304 = vmatprep.subr.mxu0 0.0
    %3305 = vmatpush1.msra.mxu0 0.0
    %3306 = vmatprep.subr.mxu0 0.0
    %3307 = vmatpush1.msra.mxu0 0.0
    %3308 = vmatprep.subr.mxu0 0.0
    %3309 = vmatpush1.msra.mxu0 0.0
    %3310 = vmatprep.subr.mxu0 0.0
    %3311 = vmatpush1.msra.mxu0 0.0
    %3312 = vmatprep.subr.mxu0 0.0
    %3313 = vmatpush1.msra.mxu0 0.0
    %3314 = vmatprep.subr.mxu0 0.0
    %3315 = vmatpush1.msra.mxu0 0.0
    %3316 = vmatprep.mubr.f32.mxu0 0.0
    %3317 = vmatmul.mubr.f32.gmra.mrb[0].mxu0 %v3250
    %v3318 = vpop.f32.mrb[0].mxu0
    %v3319 = vadd.f32 0.0, %v3318
    %v3320 = vpop.f32.mrb[0].mxu0
    %3321 = vdwg.mxu0
    %3322 = vrot.lane.b32.xlu0 %v2326, 104
    %v3323 = vpop.permute.xlu0 %3322
    %3324 = vrot.lane.b32.xlu0 %v2326, 72
    %v3325 = vpop.permute.xlu0 %3324
    %v3326 = vsel %vm501, %v3323, 0
    %v3328 = vsel %vm501, %v3325, 0
    %3330 = vmatprep.subr.mxu0 0.0
    %3331 = vmatpush1.xpose.msra.mxu0 %v3328
    %3332 = vmatprep.subr.mxu0 0.0
    %3333 = vmatpush1.xpose.msra.mxu0 0.0
    %3334 = vmatprep.subr.mxu0 0.0
    %3335 = vmatpush1.xpose.msra.mxu0 0.0
    %3336 = vmatprep.subr.mxu0 0.0
    %3337 = vmatpush1.xpose.msra.mxu0 0.0
    %3338 = vmatprep.subr.mxu0 0.0
    %3339 = vmatpush1.xpose.msra.mxu0 0.0
    %3340 = vmatprep.subr.mxu0 0.0
    %3341 = vmatpush1.xpose.msra.mxu0 0.0
    %3342 = vmatprep.subr.mxu0 0.0
    %3343 = vmatpush1.xpose.msra.mxu0 0.0
    %3344 = vmatprep.subr.mxu0 0.0
    %3345 = vmatpush1.xpose.msra.mxu0 0.0
    %3346 = vmatprep.subr.mxu0 0.0
    %3347 = vmatpush1.xpose.msra.mxu0 0.0
    %3348 = vmatprep.subr.mxu0 0.0
    %3349 = vmatpush1.xpose.msra.mxu0 0.0
    %3350 = vmatprep.subr.mxu0 0.0
    %3351 = vmatpush1.xpose.msra.mxu0 0.0
    %3352 = vmatprep.subr.mxu0 0.0
    %3353 = vmatpush1.xpose.msra.mxu0 0.0
    %3354 = vmatprep.subr.mxu0 0.0
    %3355 = vmatpush1.xpose.msra.mxu0 0.0
    %3356 = vmatprep.subr.mxu0 0.0
    %3357 = vmatpush1.xpose.msra.mxu0 0.0
    %3358 = vmatprep.subr.mxu0 0.0
    %3359 = vmatpush1.xpose.msra.mxu0 0.0
    %3360 = vmatprep.subr.mxu0 0.0
    %3361 = vmatpush1.xpose.msra.mxu0 0.0
    %3362 = vmatprep.subr.mxu0 0.0
    %3363 = vmatpush1.xpose.msra.mxu0 0.0
    %3364 = vmatprep.subr.mxu0 0.0
    %3365 = vmatpush1.xpose.msra.mxu0 0.0
    %3366 = vmatprep.subr.mxu0 0.0
    %3367 = vmatpush1.xpose.msra.mxu0 0.0
    %3368 = vmatprep.subr.mxu0 0.0
    %3369 = vmatpush1.xpose.msra.mxu0 0.0
    %3370 = vmatprep.subr.mxu0 0.0
    %3371 = vmatpush1.xpose.msra.mxu0 0.0
    %3372 = vmatprep.subr.mxu0 0.0
    %3373 = vmatpush1.xpose.msra.mxu0 0.0
    %3374 = vmatprep.subr.mxu0 0.0
    %3375 = vmatpush1.xpose.msra.mxu0 0.0
    %3376 = vmatprep.subr.mxu0 0.0
    %3377 = vmatpush1.xpose.msra.mxu0 0.0
    %3378 = vmatprep.subr.mxu0 0.0
    %3379 = vmatpush1.xpose.msra.mxu0 0.0
    %3380 = vmatprep.subr.mxu0 0.0
    %3381 = vmatpush1.xpose.msra.mxu0 0.0
    %3382 = vmatprep.subr.mxu0 0.0
    %3383 = vmatpush1.xpose.msra.mxu0 0.0
    %3384 = vmatprep.subr.mxu0 0.0
    %3385 = vmatpush1.xpose.msra.mxu0 0.0
    %3386 = vmatprep.subr.mxu0 0.0
    %3387 = vmatpush1.xpose.msra.mxu0 0.0
    %3388 = vmatprep.subr.mxu0 0.0
    %3389 = vmatpush1.xpose.msra.mxu0 0.0
    %3390 = vmatprep.subr.mxu0 0.0
    %3391 = vmatpush1.xpose.msra.mxu0 0.0
    %3392 = vmatprep.subr.mxu0 0.0
    %3393 = vmatpush1.xpose.msra.mxu0 0.0
    %3394 = vmatprep.mubr.f32.mxu0 0.0
    %3395 = vmatmul.mubr.f32.gmra.mrb[0].mxu0 %v3326
    %v3396 = vpop.f32.mrb[0].mxu0
    %v3397 = vadd.f32 0.0, %v3396
    %v3398 = vpop.f32.mrb[0].mxu0
    %3399 = vdwg.mxu0
    %3400 = vrot.lane.b32.xlu0 %v2331, 104
    %v3401 = vpop.permute.xlu0 %3400
    %3402 = vrot.lane.b32.xlu0 %v2331, 72
    %v3403 = vpop.permute.xlu0 %3402
    %v3404 = vsel %vm501, %v3401, 0
    %v3406 = vsel %vm501, %v3403, 0
    %3408 = vmatprep.subr.mxu0 0.0
    %3409 = vmatpush1.xpose.msra.mxu0 %v3406
    %3410 = vmatprep.subr.mxu0 0.0
    %3411 = vmatpush1.xpose.msra.mxu0 0.0
    %3412 = vmatprep.subr.mxu0 0.0
    %3413 = vmatpush1.xpose.msra.mxu0 0.0
    %3414 = vmatprep.subr.mxu0 0.0
    %3415 = vmatpush1.xpose.msra.mxu0 0.0
    %3416 = vmatprep.subr.mxu0 0.0
    %3417 = vmatpush1.xpose.msra.mxu0 0.0
    %3418 = vmatprep.subr.mxu0 0.0
    %3419 = vmatpush1.xpose.msra.mxu0 0.0
    %3420 = vmatprep.subr.mxu0 0.0
    %3421 = vmatpush1.xpose.msra.mxu0 0.0
    %3422 = vmatprep.subr.mxu0 0.0
    %3423 = vmatpush1.xpose.msra.mxu0 0.0
    %3424 = vmatprep.subr.mxu0 0.0
    %3425 = vmatpush1.xpose.msra.mxu0 0.0
    %3426 = vmatprep.subr.mxu0 0.0
    %3427 = vmatpush1.xpose.msra.mxu0 0.0
    %3428 = vmatprep.subr.mxu0 0.0
    %3429 = vmatpush1.xpose.msra.mxu0 0.0
    %3430 = vmatprep.subr.mxu0 0.0
    %3431 = vmatpush1.xpose.msra.mxu0 0.0
    %3432 = vmatprep.subr.mxu0 0.0
    %3433 = vmatpush1.xpose.msra.mxu0 0.0
    %3434 = vmatprep.subr.mxu0 0.0
    %3435 = vmatpush1.xpose.msra.mxu0 0.0
    %3436 = vmatprep.subr.mxu0 0.0
    %3437 = vmatpush1.xpose.msra.mxu0 0.0
    %3438 = vmatprep.subr.mxu0 0.0
    %3439 = vmatpush1.xpose.msra.mxu0 0.0
    %3440 = vmatprep.subr.mxu0 0.0
    %3441 = vmatpush1.xpose.msra.mxu0 0.0
    %3442 = vmatprep.subr.mxu0 0.0
    %3443 = vmatpush1.xpose.msra.mxu0 0.0
    %3444 = vmatprep.subr.mxu0 0.0
    %3445 = vmatpush1.xpose.msra.mxu0 0.0
    %3446 = vmatprep.subr.mxu0 0.0
    %3447 = vmatpush1.xpose.msra.mxu0 0.0
    %3448 = vmatprep.subr.mxu0 0.0
    %3449 = vmatpush1.xpose.msra.mxu0 0.0
    %3450 = vmatprep.subr.mxu0 0.0
    %3451 = vmatpush1.xpose.msra.mxu0 0.0
    %3452 = vmatprep.subr.mxu0 0.0
    %3453 = vmatpush1.xpose.msra.mxu0 0.0
    %3454 = vmatprep.subr.mxu0 0.0
    %3455 = vmatpush1.xpose.msra.mxu0 0.0
    %3456 = vmatprep.subr.mxu0 0.0
    %3457 = vmatpush1.xpose.msra.mxu0 0.0
    %3458 = vmatprep.subr.mxu0 0.0
    %3459 = vmatpush1.xpose.msra.mxu0 0.0
    %3460 = vmatprep.subr.mxu0 0.0
    %3461 = vmatpush1.xpose.msra.mxu0 0.0
    %3462 = vmatprep.subr.mxu0 0.0
    %3463 = vmatpush1.xpose.msra.mxu0 0.0
    %3464 = vmatprep.subr.mxu0 0.0
    %3465 = vmatpush1.xpose.msra.mxu0 0.0
    %3466 = vmatprep.subr.mxu0 0.0
    %3467 = vmatpush1.xpose.msra.mxu0 0.0
    %3468 = vmatprep.subr.mxu0 0.0
    %3469 = vmatpush1.xpose.msra.mxu0 0.0
    %3470 = vmatprep.subr.mxu0 0.0
    %3471 = vmatpush1.xpose.msra.mxu0 0.0
    %3472 = vmatprep.mubr.f32.mxu0 0.0
    %3473 = vmatmul.mubr.f32.gmra.mrb[0].mxu0 %v3404
    %v3474 = vpop.f32.mrb[0].mxu0
    %v3475 = vadd.f32 0.0, %v3474
    %v3476 = vpop.f32.mrb[0].mxu0
    %3477 = vdwg.mxu0
    %v3478 = vsel %vm501, %v3397, -inf
    %3479 = vmax.xlane.f32.xlu0 %v3478
    %v3480 = vpop.xlane.xlu0 %3479
    %v3481 = vsel %vm501, %v3475, -inf
    %3482 = vmax.xlane.f32.xlu0 %v3481
    %v3483 = vpop.xlane.xlu0 %3482
    %v3484 = vsub.f32 %v3397, %v3480
    %v3485 = vsub.f32 %v3475, %v3483
    %v3486 = vmul.f32 %v3484, 1.442695
    %v3487 = vpow.pop %v3486
    %v3488 = vmul.f32 %v3485, 1.442695
    %v3489 = vpow.pop %v3488
    %v3490 = vsel %vm501, %v3487, 0.0
    %3491 = vadd.xlane.f32.xlu0 %v3490
    %v3492 = vpop.xlane.xlu0 %3491
    %v3493 = vsel %vm501, %v3489, 0.0
    %3494 = vadd.xlane.f32.xlu0 %v3493
    %v3495 = vpop.xlane.xlu0 %3494
    %v3496 = vrcp.pop %v3492
    %v3497 = vrcp.pop %v3495
    %v3498 = vmul.f32 %v3487, %v3496
    %v3499 = vmul.f32 %v3489, %v3497
    %3500 = vrot.lane.b32.xlu0 %v2326, 40
    %v3501 = vpop.permute.xlu0 %3500
    %v3504 = vsel %vm501, %v3498, 0
    %3506 = vmatprep.subr.mxu0 0.0
    %3507 = vmatpush1.msra.mxu0 %v3501
    %3508 = vmatprep.subr.mxu0 0.0
    %3509 = vmatpush1.msra.mxu0 0.0
    %3510 = vmatprep.subr.mxu0 0.0
    %3511 = vmatpush1.msra.mxu0 0.0
    %3512 = vmatprep.subr.mxu0 0.0
    %3513 = vmatpush1.msra.mxu0 0.0
    %3514 = vmatprep.subr.mxu0 0.0
    %3515 = vmatpush1.msra.mxu0 0.0
    %3516 = vmatprep.subr.mxu0 0.0
    %3517 = vmatpush1.msra.mxu0 0.0
    %3518 = vmatprep.subr.mxu0 0.0
    %3519 = vmatpush1.msra.mxu0 0.0
    %3520 = vmatprep.subr.mxu0 0.0
    %3521 = vmatpush1.msra.mxu0 0.0
    %3522 = vmatprep.subr.mxu0 0.0
    %3523 = vmatpush1.msra.mxu0 0.0
    %3524 = vmatprep.subr.mxu0 0.0
    %3525 = vmatpush1.msra.mxu0 0.0
    %3526 = vmatprep.subr.mxu0 0.0
    %3527 = vmatpush1.msra.mxu0 0.0
    %3528 = vmatprep.subr.mxu0 0.0
    %3529 = vmatpush1.msra.mxu0 0.0
    %3530 = vmatprep.subr.mxu0 0.0
    %3531 = vmatpush1.msra.mxu0 0.0
    %3532 = vmatprep.subr.mxu0 0.0
    %3533 = vmatpush1.msra.mxu0 0.0
    %3534 = vmatprep.subr.mxu0 0.0
    %3535 = vmatpush1.msra.mxu0 0.0
    %3536 = vmatprep.subr.mxu0 0.0
    %3537 = vmatpush1.msra.mxu0 0.0
    %3538 = vmatprep.subr.mxu0 0.0
    %3539 = vmatpush1.msra.mxu0 0.0
    %3540 = vmatprep.subr.mxu0 0.0
    %3541 = vmatpush1.msra.mxu0 0.0
    %3542 = vmatprep.subr.mxu0 0.0
    %3543 = vmatpush1.msra.mxu0 0.0
    %3544 = vmatprep.subr.mxu0 0.0
    %3545 = vmatpush1.msra.mxu0 0.0
    %3546 = vmatprep.subr.mxu0 0.0
    %3547 = vmatpush1.msra.mxu0 0.0
    %3548 = vmatprep.subr.mxu0 0.0
    %3549 = vmatpush1.msra.mxu0 0.0
    %3550 = vmatprep.subr.mxu0 0.0
    %3551 = vmatpush1.msra.mxu0 0.0
    %3552 = vmatprep.subr.mxu0 0.0
    %3553 = vmatpush1.msra.mxu0 0.0
    %3554 = vmatprep.subr.mxu0 0.0
    %3555 = vmatpush1.msra.mxu0 0.0
    %3556 = vmatprep.subr.mxu0 0.0
    %3557 = vmatpush1.msra.mxu0 0.0
    %3558 = vmatprep.subr.mxu0 0.0
    %3559 = vmatpush1.msra.mxu0 0.0
    %3560 = vmatprep.subr.mxu0 0.0
    %3561 = vmatpush1.msra.mxu0 0.0
    %3562 = vmatprep.subr.mxu0 0.0
    %3563 = vmatpush1.msra.mxu0 0.0
    %3564 = vmatprep.subr.mxu0 0.0
    %3565 = vmatpush1.msra.mxu0 0.0
    %3566 = vmatprep.subr.mxu0 0.0
    %3567 = vmatpush1.msra.mxu0 0.0
    %3568 = vmatprep.subr.mxu0 0.0
    %3569 = vmatpush1.msra.mxu0 0.0
    %3570 = vmatprep.mubr.f32.mxu0 0.0
    %3571 = vmatmul.mubr.f32.gmra.mrb[0].mxu0 %v3504
    %v3572 = vpop.f32.mrb[0].mxu0
    %v3573 = vadd.f32 0.0, %v3572
    %v3574 = vpop.f32.mrb[0].mxu0
    %3575 = vdwg.mxu0
    %3576 = vrot.lane.b32.xlu0 %v2331, 40
    %v3577 = vpop.permute.xlu0 %3576
    %v3580 = vsel %vm501, %v3499, 0
    %3582 = vmatprep.subr.mxu0 0.0
    %3583 = vmatpush1.msra.mxu0 %v3577
    %3584 = vmatprep.subr.mxu0 0.0
    %3585 = vmatpush1.msra.mxu0 0.0
    %3586 = vmatprep.subr.mxu0 0.0
    %3587 = vmatpush1.msra.mxu0 0.0
    %3588 = vmatprep.subr.mxu0 0.0
    %3589 = vmatpush1.msra.mxu0 0.0
    %3590 = vmatprep.subr.mxu0 0.0
    %3591 = vmatpush1.msra.mxu0 0.0
    %3592 = vmatprep.subr.mxu0 0.0
    %3593 = vmatpush1.msra.mxu0 0.0
    %3594 = vmatprep.subr.mxu0 0.0
    %3595 = vmatpush1.msra.mxu0 0.0
    %3596 = vmatprep.subr.mxu0 0.0
    %3597 = vmatpush1.msra.mxu0 0.0
    %3598 = vmatprep.subr.mxu0 0.0
    %3599 = vmatpush1.msra.mxu0 0.0
    %3600 = vmatprep.subr.mxu0 0.0
    %3601 = vmatpush1.msra.mxu0 0.0
    %3602 = vmatprep.subr.mxu0 0.0
    %3603 = vmatpush1.msra.mxu0 0.0
    %3604 = vmatprep.subr.mxu0 0.0
    %3605 = vmatpush1.msra.mxu0 0.0
    %3606 = vmatprep.subr.mxu0 0.0
    %3607 = vmatpush1.msra.mxu0 0.0
    %3608 = vmatprep.subr.mxu0 0.0
    %3609 = vmatpush1.msra.mxu0 0.0
    %3610 = vmatprep.subr.mxu0 0.0
    %3611 = vmatpush1.msra.mxu0 0.0
    %3612 = vmatprep.subr.mxu0 0.0
    %3613 = vmatpush1.msra.mxu0 0.0
    %3614 = vmatprep.subr.mxu0 0.0
    %3615 = vmatpush1.msra.mxu0 0.0
    %3616 = vmatprep.subr.mxu0 0.0
    %3617 = vmatpush1.msra.mxu0 0.0
    %3618 = vmatprep.subr.mxu0 0.0
    %3619 = vmatpush1.msra.mxu0 0.0
    %3620 = vmatprep.subr.mxu0 0.0
    %3621 = vmatpush1.msra.mxu0 0.0
    %3622 = vmatprep.subr.mxu0 0.0
    %3623 = vmatpush1.msra.mxu0 0.0
    %3624 = vmatprep.subr.mxu0 0.0
    %3625 = vmatpush1.msra.mxu0 0.0
    %3626 = vmatprep.subr.mxu0 0.0
    %3627 = vmatpush1.msra.mxu0 0.0
    %3628 = vmatprep.subr.mxu0 0.0
    %3629 = vmatpush1.msra.mxu0 0.0
    %3630 = vmatprep.subr.mxu0 0.0
    %3631 = vmatpush1.msra.mxu0 0.0
    %3632 = vmatprep.subr.mxu0 0.0
    %3633 = vmatpush1.msra.mxu0 0.0
    %3634 = vmatprep.subr.mxu0 0.0
    %3635 = vmatpush1.msra.mxu0 0.0
    %3636 = vmatprep.subr.mxu0 0.0
    %3637 = vmatpush1.msra.mxu0 0.0
    %3638 = vmatprep.subr.mxu0 0.0
    %3639 = vmatpush1.msra.mxu0 0.0
    %3640 = vmatprep.subr.mxu0 0.0
    %3641 = vmatpush1.msra.mxu0 0.0
    %3642 = vmatprep.subr.mxu0 0.0
    %3643 = vmatpush1.msra.mxu0 0.0
    %3644 = vmatprep.subr.mxu0 0.0
    %3645 = vmatpush1.msra.mxu0 0.0
    %3646 = vmatprep.mubr.f32.mxu0 0.0
    %3647 = vmatmul.mubr.f32.gmra.mrb[0].mxu0 %v3580
    %v3648 = vpop.f32.mrb[0].mxu0
    %v3649 = vadd.f32 0.0, %v3648
    %v3650 = vpop.f32.mrb[0].mxu0
    %3651 = vdwg.mxu0
    %3654 = vrot.lane.b32.xlu0 %v2913, 8
    %v3655 = vpop.permute.xlu0 %3654
    %3656 = vrot.lane.b32.xlu0 %v2989, 8
    %v3657 = vpop.permute.xlu0 %3656
    %3662 = vrot.lane.b32.xlu0 %v3243, 16
    %v3663 = vpop.permute.xlu0 %3662
    %3664 = vrot.lane.b32.xlu0 %v3319, 16
    %v3665 = vpop.permute.xlu0 %3664
    %3670 = vrot.lane.b32.xlu0 %v3573, 24
    %v3671 = vpop.permute.xlu0 %3670
    %3672 = vrot.lane.b32.xlu0 %v3649, 24
    %v3673 = vpop.permute.xlu0 %3672
    %v3676 = vsel %vm501, %v2583, %v3655
    %v3677 = vsel %vm501, %v2659, %v3657
    %v3678 = vsel %vm1843, %v3676, %v3663
    %v3679 = vsel %vm1843, %v3677, %v3665
    %v3680 = vsel %vm1846, %v3678, %v3671
    %v3681 = vsel %vm1846, %v3679, %v3673
    %s3682 = scalar_lea.vmem %s8, 32
    %v3683 = vld [vmem:[%s3682] sm:$0xff]
    %v3684 = vld [vmem:[%s3682 + $0x8] sm:$0xff]
    %v3685 = vld [vmem:[%s3682 + $0x10] sm:$0xff]
    %v3686 = vld [vmem:[%s3682 + $0x18] sm:$0xff]
    %s3687 = scalar_lea.vmem [#allocation14], 1
    %v3688 = vld [vmem:[%s3687] sm:$0x1]
    %v3690 = vlaneseq
    %v3691 = vshrl.u32 %v3690, 7
    %v3692 = vsub.s32 0, %v3691
    %v3693 = vrot.slane %v3688, %v3692
    %v3696 = vsel %vm275, %v3680, 0
    %v3699 = vsel %vm275, %v3681, 0
    %3701 = vmatprep.subr.mxu0 0.0
    %3702 = vmatpush1.msra.mxu0 %v3683
    %3703 = vmatprep.subr.mxu0 0.0
    %3704 = vmatpush1.msra.mxu0 %v3684
    %3705 = vmatprep.subr.mxu0 0.0
    %3706 = vmatpush1.msra.mxu0 %v3685
    %3707 = vmatprep.subr.mxu0 0.0
    %3708 = vmatpush1.msra.mxu0 %v3686
    %3709 = vmatprep.subr.mxu0 0.0
    %3710 = vmatpush1.msra.mxu0 0.0
    %3711 = vmatprep.subr.mxu0 0.0
    %3712 = vmatpush1.msra.mxu0 0.0
    %3713 = vmatprep.subr.mxu0 0.0
    %3714 = vmatpush1.msra.mxu0 0.0
    %3715 = vmatprep.subr.mxu0 0.0
    %3716 = vmatpush1.msra.mxu0 0.0
    %3717 = vmatprep.subr.mxu0 0.0
    %3718 = vmatpush1.msra.mxu0 0.0
    %3719 = vmatprep.subr.mxu0 0.0
    %3720 = vmatpush1.msra.mxu0 0.0
    %3721 = vmatprep.subr.mxu0 0.0
    %3722 = vmatpush1.msra.mxu0 0.0
    %3723 = vmatprep.subr.mxu0 0.0
    %3724 = vmatpush1.msra.mxu0 0.0
    %3725 = vmatprep.subr.mxu0 0.0
    %3726 = vmatpush1.msra.mxu0 0.0
    %3727 = vmatprep.subr.mxu0 0.0
    %3728 = vmatpush1.msra.mxu0 0.0
    %3729 = vmatprep.subr.mxu0 0.0
    %3730 = vmatpush1.msra.mxu0 0.0
    %3731 = vmatprep.subr.mxu0 0.0
    %3732 = vmatpush1.msra.mxu0 0.0
    %3733 = vmatprep.subr.mxu0 0.0
    %3734 = vmatpush1.msra.mxu0 0.0
    %3735 = vmatprep.subr.mxu0 0.0
    %3736 = vmatpush1.msra.mxu0 0.0
    %3737 = vmatprep.subr.mxu0 0.0
    %3738 = vmatpush1.msra.mxu0 0.0
    %3739 = vmatprep.subr.mxu0 0.0
    %3740 = vmatpush1.msra.mxu0 0.0
    %3741 = vmatprep.subr.mxu0 0.0
    %3742 = vmatpush1.msra.mxu0 0.0
    %3743 = vmatprep.subr.mxu0 0.0
    %3744 = vmatpush1.msra.mxu0 0.0
    %3745 = vmatprep.subr.mxu0 0.0
    %3746 = vmatpush1.msra.mxu0 0.0
    %3747 = vmatprep.subr.mxu0 0.0
    %3748 = vmatpush1.msra.mxu0 0.0
    %3749 = vmatprep.subr.mxu0 0.0
    %3750 = vmatpush1.msra.mxu0 0.0
    %3751 = vmatprep.subr.mxu0 0.0
    %3752 = vmatpush1.msra.mxu0 0.0
    %3753 = vmatprep.subr.mxu0 0.0
    %3754 = vmatpush1.msra.mxu0 0.0
    %3755 = vmatprep.subr.mxu0 0.0
    %3756 = vmatpush1.msra.mxu0 0.0
    %3757 = vmatprep.subr.mxu0 0.0
    %3758 = vmatpush1.msra.mxu0 0.0
    %3759 = vmatprep.subr.mxu0 0.0
    %3760 = vmatpush1.msra.mxu0 0.0
    %3761 = vmatprep.subr.mxu0 0.0
    %3762 = vmatpush1.msra.mxu0 0.0
    %3763 = vmatprep.subr.mxu0 0.0
    %3764 = vmatpush1.msra.mxu0 0.0
    %3765 = vmatprep.mubr.f32.mxu0 0.0
    %3766 = vmatmul.mubr.f32.gmra.mrb[0].mxu0 %v3696
    %v3767 = vpop.f32.mrb[0].mxu0
    %v3768 = vadd.f32 %v3693, %v3767
    %v3769 = vpop.f32.mrb[0].mxu0
    %3770 = vmatprep.mubr.f32.mxu0 0.0
    %3771 = vmatmul.mubr.f32.gmra.mrb[0].mxu0 %v3699
    %v3772 = vpop.f32.mrb[0].mxu0
    %v3773 = vadd.f32 %v3693, %v3772
    %v3774 = vpop.f32.mrb[0].mxu0
    %3775 = vdwg.mxu0
    %v3776 = vadd.f32 %v2238, %v3768
    %v3777 = vadd.f32 %v2239, %v3773
    %s3778 = scalar_lea.vmem [#allocation16], 1
    %v3779 = vld [vmem:[%s3778] sm:$0x1]
    %s3780 = scalar_lea.vmem [#allocation17], 1
    %v3781 = vld [vmem:[%s3780] sm:$0x1]
    %v3782 = vsel %vm275, %v3776, 0.0
    %3783 = vadd.xlane.f32.xlu0 %v3782
    %v3784 = vpop.xlane.xlu0 %3783
    %v3785 = vsel %vm275, %v3777, 0.0
    %3786 = vadd.xlane.f32.xlu0 %v3785
    %v3787 = vpop.xlane.xlu0 %3786
    %v3788 = vmul.f32 %v3784, %v369
    %v3789 = vmul.f32 %v3787, %v369
    %v3790 = vsub.f32 %v3776, %v3788
    %v3791 = vsub.f32 %v3777, %v3789
    %v3792 = vmul.f32 %v3790, %v3790
    %v3793 = vmul.f32 %v3791, %v3791
    %v3794 = vsel %vm275, %v3792, 0.0
    %3795 = vadd.xlane.f32.xlu0 %v3794
    %v3796 = vpop.xlane.xlu0 %3795
    %v3797 = vsel %vm275, %v3793, 0.0
    %3798 = vadd.xlane.f32.xlu0 %v3797
    %v3799 = vpop.xlane.xlu0 %3798
    %v3800 = vmul.f32 %v3796, %v369
    %v3801 = vmul.f32 %v3799, %v369
    %v3802 = vadd.f32 %v3800, 1e-12
    %v3803 = vadd.f32 %v3801, 1e-12
    %v3804 = vrsqrt.pop %v3802
    %v3805 = vrsqrt.pop %v3803
    %v3806 = vmul.f32 %v3790, %v3804
    %v3807 = vmul.f32 %v3791, %v3805
    %v3809 = vlaneseq
    %v3810 = vshrl.u32 %v3809, 7
    %v3811 = vsub.s32 0, %v3810
    %v3812 = vrot.slane %v3779, %v3811
    %v3814 = vmul.f32 %v3806, %v3812
    %v3815 = vmul.f32 %v3807, %v3812
    %v3817 = vlaneseq
    %v3818 = vshrl.u32 %v3817, 7
    %v3819 = vsub.s32 0, %v3818
    %v3820 = vrot.slane %v3781, %v3819
    %v3822 = vadd.f32 %v3814, %v3820
    %v3823 = vadd.f32 %v3815, %v3820
    %s3824 = scalar_lea.vmem %s12, 32
    %v3825 = vld [vmem:[%s3824] sm:$0xff]
    %v3826 = vld [vmem:[%s3824 + $0x8] sm:$0xff]
    %v3827 = vld [vmem:[%s3824 + $0x10] sm:$0xff]
    %v3828 = vld [vmem:[%s3824 + $0x18] sm:$0xff]
    %s3829 = scalar_lea.vmem [#allocation19], 1
    %v3830 = vld [vmem:[%s3829] sm:$0x1]
    %v3832 = vlaneseq
    %v3833 = vshrl.u32 %v3832, 7
    %v3834 = vsub.s32 0, %v3833
    %v3835 = vrot.slane %v3830, %v3834
    %v3838 = vsel %vm275, %v3822, 0
    %v3841 = vsel %vm275, %v3823, 0
    %3843 = vmatprep.subr.mxu0 0.0
    %3844 = vmatpush1.msra.mxu0 %v3825
    %3845 = vmatprep.subr.mxu0 0.0
    %3846 = vmatpush1.msra.mxu0 %v3826
    %3847 = vmatprep.subr.mxu0 0.0
    %3848 = vmatpush1.msra.mxu0 %v3827
    %3849 = vmatprep.subr.mxu0 0.0
    %3850 = vmatpush1.msra.mxu0 %v3828
    %3851 = vmatprep.subr.mxu0 0.0
    %3852 = vmatpush1.msra.mxu0 0.0
    %3853 = vmatprep.subr.mxu0 0.0
    %3854 = vmatpush1.msra.mxu0 0.0
    %3855 = vmatprep.subr.mxu0 0.0
    %3856 = vmatpush1.msra.mxu0 0.0
    %3857 = vmatprep.subr.mxu0 0.0
    %3858 = vmatpush1.msra.mxu0 0.0
    %3859 = vmatprep.subr.mxu0 0.0
    %3860 = vmatpush1.msra.mxu0 0.0
    %3861 = vmatprep.subr.mxu0 0.0
    %3862 = vmatpush1.msra.mxu0 0.0
    %3863 = vmatprep.subr.mxu0 0.0
    %3864 = vmatpush1.msra.mxu0 0.0
    %3865 = vmatprep.subr.mxu0 0.0
    %3866 = vmatpush1.msra.mxu0 0.0
    %3867 = vmatprep.subr.mxu0 0.0
    %3868 = vmatpush1.msra.mxu0 0.0
    %3869 = vmatprep.subr.mxu0 0.0
    %3870 = vmatpush1.msra.mxu0 0.0
    %3871 = vmatprep.subr.mxu0 0.0
    %3872 = vmatpush1.msra.mxu0 0.0
    %3873 = vmatprep.subr.mxu0 0.0
    %3874 = vmatpush1.msra.mxu0 0.0
    %3875 = vmatprep.subr.mxu0 0.0
    %3876 = vmatpush1.msra.mxu0 0.0
    %3877 = vmatprep.subr.mxu0 0.0
    %3878 = vmatpush1.msra.mxu0 0.0
    %3879 = vmatprep.subr.mxu0 0.0
    %3880 = vmatpush1.msra.mxu0 0.0
    %3881 = vmatprep.subr.mxu0 0.0
    %3882 = vmatpush1.msra.mxu0 0.0
    %3883 = vmatprep.subr.mxu0 0.0
    %3884 = vmatpush1.msra.mxu0 0.0
    %3885 = vmatprep.subr.mxu0 0.0
    %3886 = vmatpush1.msra.mxu0 0.0
    %3887 = vmatprep.subr.mxu0 0.0
    %3888 = vmatpush1.msra.mxu0 0.0
    %3889 = vmatprep.subr.mxu0 0.0
    %3890 = vmatpush1.msra.mxu0 0.0
    %3891 = vmatprep.subr.mxu0 0.0
    %3892 = vmatpush1.msra.mxu0 0.0
    %3893 = vmatprep.subr.mxu0 0.0
    %3894 = vmatpush1.msra.mxu0 0.0
    %3895 = vmatprep.subr.mxu0 0.0
    %3896 = vmatpush1.msra.mxu0 0.0
    %3897 = vmatprep.subr.mxu0 0.0
    %3898 = vmatpush1.msra.mxu0 0.0
    %3899 = vmatprep.subr.mxu0 0.0
    %3900 = vmatpush1.msra.mxu0 0.0
    %3901 = vmatprep.subr.mxu0 0.0
    %3902 = vmatpush1.msra.mxu0 0.0
    %3903 = vmatprep.subr.mxu0 0.0
    %3904 = vmatpush1.msra.mxu0 0.0
    %3905 = vmatprep.subr.mxu0 0.0
    %3906 = vmatpush1.msra.mxu0 0.0
    %3907 = vmatprep.mubr.f32.mxu0 0.0
    %3908 = vmatmul.mubr.f32.gmra.mrb[0].mxu0 %v3838
    %v3909 = vpop.f32.mrb[0].mxu0
    %v3910 = vadd.f32 %v3835, %v3909
    %v3911 = vpop.f32.mrb[0].mxu0
    %3912 = vmatprep.mubr.f32.mxu0 0.0
    %3913 = vmatmul.mubr.f32.gmra.mrb[0].mxu0 %v3841
    %v3914 = vpop.f32.mrb[0].mxu0
    %v3915 = vadd.f32 %v3835, %v3914
    %v3916 = vpop.f32.mrb[0].mxu0
    %3917 = vdwg.mxu0
    %v3918 = vmul.f32 %v3910, 0.5
    %v3919 = vmul.f32 %v3915, 0.5
    %v3920 = vmul.f32 %v3910, 0.044715
    %v3921 = vmul.f32 %v3915, 0.044715
    %v3922 = vmul.f32 %v3920, %v3910
    %v3923 = vmul.f32 %v3921, %v3915
    %v3924 = vmul.f32 %v3922, %v3910
    %v3925 = vmul.f32 %v3923, %v3915
    %v3926 = vadd.f32 %v3910, %v3924
    %v3927 = vadd.f32 %v3915, %v3925
    %v3928 = vmul.f32 %v3926, 0.7978846
    %v3929 = vmul.f32 %v3927, 0.7978846
    %v3930 = vtanh.pop %v3928
    %v3931 = vtanh.pop %v3929
    %v3932 = vadd.f32 %v3930, 1.0
    %v3933 = vadd.f32 %v3931, 1.0
    %v3934 = vmul.f32 %v3918, %v3932
    %v3935 = vmul.f32 %v3919, %v3933
    %s3936 = scalar_lea.vmem %s14, 64
    %v3937 = vld [vmem:[%s3936] sm:$0xff]
    %v3938 = vld [vmem:[%s3936 + $0x8] sm:$0xff]
    %v3939 = vld [vmem:[%s3936 + $0x10] sm:$0xff]
    %v3940 = vld [vmem:[%s3936 + $0x18] sm:$0xff]
    %v3941 = vld [vmem:[%s3936 + $0x20] sm:$0xff]
    %v3942 = vld [vmem:[%s3936 + $0x28] sm:$0xff]
    %v3943 = vld [vmem:[%s3936 + $0x30] sm:$0xff]
    %v3944 = vld [vmem:[%s3936 + $0x38] sm:$0xff]
    %s3945 = scalar_lea.vmem [#allocation20], 1
    %v3946 = vld [vmem:[%s3945] sm:$0x1]
    %v3948 = vlaneseq
    %v3949 = vshrl.u32 %v3948, 7
    %v3950 = vsub.s32 0, %v3949
    %v3951 = vrot.slane %v3946, %v3950
    %v3954 = vsel %vm2112, %v3934, 0
    %v3957 = vsel %vm2112, %v3935, 0
    %3959 = vmatprep.subr.mxu0 0.0
    %3960 = vmatpush1.msra.mxu0 %v3937
    %3961 = vmatprep.subr.mxu0 0.0
    %3962 = vmatpush1.msra.mxu0 %v3938
    %3963 = vmatprep.subr.mxu0 0.0
    %3964 = vmatpush1.msra.mxu0 %v3939
    %3965 = vmatprep.subr.mxu0 0.0
    %3966 = vmatpush1.msra.mxu0 %v3940
    %3967 = vmatprep.subr.mxu0 0.0
    %3968 = vmatpush1.msra.mxu0 %v3941
    %3969 = vmatprep.subr.mxu0 0.0
    %3970 = vmatpush1.msra.mxu0 %v3942
    %3971 = vmatprep.subr.mxu0 0.0
    %3972 = vmatpush1.msra.mxu0 %v3943
    %3973 = vmatprep.subr.mxu0 0.0
    %3974 = vmatpush1.msra.mxu0 %v3944
    %3975 = vmatprep.subr.mxu0 0.0
    %3976 = vmatpush1.msra.mxu0 0.0
    %3977 = vmatprep.subr.mxu0 0.0
    %3978 = vmatpush1.msra.mxu0 0.0
    %3979 = vmatprep.subr.mxu0 0.0
    %3980 = vmatpush1.msra.mxu0 0.0
    %3981 = vmatprep.subr.mxu0 0.0
    %3982 = vmatpush1.msra.mxu0 0.0
    %3983 = vmatprep.subr.mxu0 0.0
    %3984 = vmatpush1.msra.mxu0 0.0
    %3985 = vmatprep.subr.mxu0 0.0
    %3986 = vmatpush1.msra.mxu0 0.0
    %3987 = vmatprep.subr.mxu0 0.0
    %3988 = vmatpush1.msra.mxu0 0.0
    %3989 = vmatprep.subr.mxu0 0.0
    %3990 = vmatpush1.msra.mxu0 0.0
    %3991 = vmatprep.subr.mxu0 0.0
    %3992 = vmatpush1.msra.mxu0 0.0
    %3993 = vmatprep.subr.mxu0 0.0
    %3994 = vmatpush1.msra.mxu0 0.0
    %3995 = vmatprep.subr.mxu0 0.0
    %3996 = vmatpush1.msra.mxu0 0.0
    %3997 = vmatprep.subr.mxu0 0.0
    %3998 = vmatpush1.msra.mxu0 0.0
    %3999 = vmatprep.subr.mxu0 0.0
    %4000 = vmatpush1.msra.mxu0 0.0
    %4001 = vmatprep.subr.mxu0 0.0
    %4002 = vmatpush1.msra.mxu0 0.0
    %4003 = vmatprep.subr.mxu0 0.0
    %4004 = vmatpush1.msra.mxu0 0.0
    %4005 = vmatprep.subr.mxu0 0.0
    %4006 = vmatpush1.msra.mxu0 0.0
    %4007 = vmatprep.subr.mxu0 0.0
    %4008 = vmatpush1.msra.mxu0 0.0
    %4009 = vmatprep.subr.mxu0 0.0
    %4010 = vmatpush1.msra.mxu0 0.0
    %4011 = vmatprep.subr.mxu0 0.0
    %4012 = vmatpush1.msra.mxu0 0.0
    %4013 = vmatprep.subr.mxu0 0.0
    %4014 = vmatpush1.msra.mxu0 0.0
    %4015 = vmatprep.subr.mxu0 0.0
    %4016 = vmatpush1.msra.mxu0 0.0
    %4017 = vmatprep.subr.mxu0 0.0
    %4018 = vmatpush1.msra.mxu0 0.0
    %4019 = vmatprep.subr.mxu0 0.0
    %4020 = vmatpush1.msra.mxu0 0.0
    %4021 = vmatprep.subr.mxu0 0.0
    %4022 = vmatpush1.msra.mxu0 0.0
    %4023 = vmatprep.mubr.f32.mxu0 0.0
    %4024 = vmatmul.mubr.f32.gmra.mrb[0].mxu0 %v3954
    %v4025 = vpop.f32.mrb[0].mxu0
    %v4026 = vadd.f32 %v3951, %v4025
    %v4027 = vpop.f32.mrb[0].mxu0
    %4028 = vmatprep.mubr.f32.mxu0 0.0
    %4029 = vmatmul.mubr.f32.gmra.mrb[0].mxu0 %v3957
    %v4030 = vpop.f32.mrb[0].mxu0
    %v4031 = vadd.f32 %v3951, %v4030
    %v4032 = vpop.f32.mrb[0].mxu0
    %4033 = vdwg.mxu0
    %v4034 = vadd.f32 %v3822, %v4026
    %v4035 = vadd.f32 %v3823, %v4031
    %s4036 = scalar_lea.vmem [#allocation22], 1
    %v4037 = vld [vmem:[%s4036] sm:$0x1]
    %s4038 = scalar_lea.vmem [#allocation23], 1
    %v4039 = vld [vmem:[%s4038] sm:$0x1]
    %v4040 = vsel %vm275, %v4034, 0.0
    %4041 = vadd.xlane.f32.xlu0 %v4040
    %v4042 = vpop.xlane.xlu0 %4041
    %v4043 = vsel %vm275, %v4035, 0.0
    %4044 = vadd.xlane.f32.xlu0 %v4043
    %v4045 = vpop.xlane.xlu0 %4044
    %v4046 = vmul.f32 %v4042, %v369
    %v4047 = vmul.f32 %v4045, %v369
    %v4048 = vsub.f32 %v4034, %v4046
    %v4049 = vsub.f32 %v4035, %v4047
    %v4050 = vmul.f32 %v4048, %v4048
    %v4051 = vmul.f32 %v4049, %v4049
    %v4052 = vsel %vm275, %v4050, 0.0
    %4053 = vadd.xlane.f32.xlu0 %v4052
    %v4054 = vpop.xlane.xlu0 %4053
    %v4055 = vsel %vm275, %v4051, 0.0
    %4056 = vadd.xlane.f32.xlu0 %v4055
    %v4057 = vpop.xlane.xlu0 %4056
    %v4058 = vmul.f32 %v4054, %v369
    %v4059 = vmul.f32 %v4057, %v369
    %v4060 = vadd.f32 %v4058, 1e-12
    %v4061 = vadd.f32 %v4059, 1e-12
    %v4062 = vrsqrt.pop %v4060
    %v4063 = vrsqrt.pop %v4061
    %v4064 = vmul.f32 %v4048, %v4062
    %v4065 = vmul.f32 %v4049, %v4063
    %v4067 = vlaneseq
    %v4068 = vshrl.u32 %v4067, 7
    %v4069 = vsub.s32 0, %v4068
    %v4070 = vrot.slane %v4037, %v4069
    %v4072 = vmul.f32 %v4064, %v4070
    %v4073 = vmul.f32 %v4065, %v4070
    %v4075 = vlaneseq
    %v4076 = vshrl.u32 %v4075, 7
    %v4077 = vsub.s32 0, %v4076
    %v4078 = vrot.slane %v4039, %v4077
    %v4080 = vadd.f32 %v4072, %v4078
    %v4081 = vadd.f32 %v4073, %v4078
    %v4082 = vld [vmem:[%s18] sm:$0xff]
    %v4083 = vld [vmem:[%s18 + $0x8] sm:$0xff]
    %v4084 = vld [vmem:[%s18 + $0x10] sm:$0xff]
    %v4085 = vld [vmem:[%s18 + $0x18] sm:$0xff]
    %v4086 = vld [vmem:[%s19] sm:$0x1]
    %v4088 = vlaneseq
    %v4089 = vshrl.u32 %v4088, 7
    %v4090 = vsub.s32 0, %v4089
    %v4091 = vrot.slane %v4086, %v4090
    %v4094 = vsel %vm275, %v4080, 0
    %v4097 = vsel %vm275, %v4081, 0
    %4099 = vmatprep.subr.mxu0 0.0
    %4100 = vmatpush1.msra.mxu0 %v4082
    %4101 = vmatprep.subr.mxu0 0.0
    %4102 = vmatpush1.msra.mxu0 %v4083
    %4103 = vmatprep.subr.mxu0 0.0
    %4104 = vmatpush1.msra.mxu0 %v4084
    %4105 = vmatprep.subr.mxu0 0.0
    %4106 = vmatpush1.msra.mxu0 %v4085
    %4107 = vmatprep.subr.mxu0 0.0
    %4108 = vmatpush1.msra.mxu0 0.0
    %4109 = vmatprep.subr.mxu0 0.0
    %4110 = vmatpush1.msra.mxu0 0.0
    %4111 = vmatprep.subr.mxu0 0.0
    %4112 = vmatpush1.msra.mxu0 0.0
    %4113 = vmatprep.subr.mxu0 0.0
    %4114 = vmatpush1.msra.mxu0 0.0
    %4115 = vmatprep.subr.mxu0 0.0
    %4116 = vmatpush1.msra.mxu0 0.0
    %4117 = vmatprep.subr.mxu0 0.0
    %4118 = vmatpush1.msra.mxu0 0.0
    %4119 = vmatprep.subr.mxu0 0.0
    %4120 = vmatpush1.msra.mxu0 0.0
    %4121 = vmatprep.subr.mxu0 0.0
    %4122 = vmatpush1.msra.mxu0 0.0
    %4123 = vmatprep.subr.mxu0 0.0
    %4124 = vmatpush1.msra.mxu0 0.0
    %4125 = vmatprep.subr.mxu0 0.0
    %4126 = vmatpush1.msra.mxu0 0.0
    %4127 = vmatprep.subr.mxu0 0.0
    %4128 = vmatpush1.msra.mxu0 0.0
    %4129 = vmatprep.subr.mxu0 0.0
    %4130 = vmatpush1.msra.mxu0 0.0
    %4131 = vmatprep.subr.mxu0 0.0
    %4132 = vmatpush1.msra.mxu0 0.0
    %4133 = vmatprep.subr.mxu0 0.0
    %4134 = vmatpush1.msra.mxu0 0.0
    %4135 = vmatprep.subr.mxu0 0.0
    %4136 = vmatpush1.msra.mxu0 0.0
    %4137 = vmatprep.subr.mxu0 0.0
    %4138 = vmatpush1.msra.mxu0 0.0
    %4139 = vmatprep.subr.mxu0 0.0
    %4140 = vmatpush1.msra.mxu0 0.0
    %4141 = vmatprep.subr.mxu0 0.0
    %4142 = vmatpush1.msra.mxu0 0.0
    %4143 = vmatprep.subr.mxu0 0.0
    %4144 = vmatpush1.msra.mxu0 0.0
    %4145 = vmatprep.subr.mxu0 0.0
    %4146 = vmatpush1.msra.mxu0 0.0
    %4147 = vmatprep.subr.mxu0 0.0
    %4148 = vmatpush1.msra.mxu0 0.0
    %4149 = vmatprep.subr.mxu0 0.0
    %4150 = vmatpush1.msra.mxu0 0.0
    %4151 = vmatprep.subr.mxu0 0.0
    %4152 = vmatpush1.msra.mxu0 0.0
    %4153 = vmatprep.subr.mxu0 0.0
    %4154 = vmatpush1.msra.mxu0 0.0
    %4155 = vmatprep.subr.mxu0 0.0
    %4156 = vmatpush1.msra.mxu0 0.0
    %4157 = vmatprep.subr.mxu0 0.0
    %4158 = vmatpush1.msra.mxu0 0.0
    %4159 = vmatprep.subr.mxu0 0.0
    %4160 = vmatpush1.msra.mxu0 0.0
    %4161 = vmatprep.subr.mxu0 0.0
    %4162 = vmatpush1.msra.mxu0 0.0
    %4163 = vmatprep.mubr.f32.mxu0 0.0
    %4164 = vmatmul.mubr.f32.gmra.mrb[0].mxu0 %v418
    %v4165 = vpop.f32.mrb[0].mxu0
    %v4166 = vadd.f32 %v4091, %v4165
    %v4167 = vpop.f32.mrb[0].mxu0
    %4168 = vmatprep.mubr.f32.mxu0 0.0
    %4169 = vmatmul.mubr.f32.gmra.mrb[0].mxu0 %v421
    %v4170 = vpop.f32.mrb[0].mxu0
    %v4171 = vadd.f32 %v4091, %v4170
    %v4172 = vpop.f32.mrb[0].mxu0
    %4173 = vmatprep.mubr.f32.mxu0 0.0
    %4174 = vmatmul.mubr.f32.gmra.mrb[0].mxu0 %v2254
    %v4175 = vpop.f32.mrb[0].mxu0
    %v4176 = vadd.f32 %v4091, %v4175
    %v4177 = vpop.f32.mrb[0].mxu0
    %4178 = vmatprep.mubr.f32.mxu0 0.0
    %4179 = vmatmul.mubr.f32.gmra.mrb[0].mxu0 %v2257
    %v4180 = vpop.f32.mrb[0].mxu0
    %v4181 = vadd.f32 %v4091, %v4180
    %v4182 = vpop.f32.mrb[0].mxu0
    %4183 = vmatprep.mubr.f32.mxu0 0.0
    %4184 = vmatmul.mubr.f32.gmra.mrb[0].mxu0 %v4094
    %v4185 = vpop.f32.mrb[0].mxu0
    %v4186 = vadd.f32 %v4091, %v4185
    %v4187 = vpop.f32.mrb[0].mxu0
    %4188 = vmatprep.mubr.f32.mxu0 0.0
    %4189 = vmatmul.mubr.f32.gmra.mrb[0].mxu0 %v4097
    %v4190 = vpop.f32.mrb[0].mxu0
    %v4191 = vadd.f32 %v4091, %v4190
    %v4192 = vpop.f32.mrb[0].mxu0
    %4193 = vdwg.mxu0
    %v4194 = vmul.f32 %v4166, 0.5
    %v4195 = vmul.f32 %v4171, 0.5
    %v4196 = vmul.f32 %v4176, 0.5
    %v4197 = vmul.f32 %v4181, 0.5
    %v4198 = vmul.f32 %v4186, 0.5
    %v4199 = vmul.f32 %v4191, 0.5
    %v4200 = vmul.f32 %v4166, 0.044715
    %v4201 = vmul.f32 %v4171, 0.044715
    %v4202 = vmul.f32 %v4176, 0.044715
    %v4203 = vmul.f32 %v4181, 0.044715
    %v4204 = vmul.f32 %v4186, 0.044715
    %v4205 = vmul.f32 %v4191, 0.044715
    %v4206 = vmul.f32 %v4200, %v4166
    %v4207 = vmul.f32 %v4201, %v4171
    %v4208 = vmul.f32 %v4202, %v4176
    %v4209 = vmul.f32 %v4203, %v4181
    %v4210 = vmul.f32 %v4204, %v4186
    %v4211 = vmul.f32 %v4205, %v4191
    %v4212 = vmul.f32 %v4206, %v4166
    %v4213 = vmul.f32 %v4207, %v4171
    %v4214 = vmul.f32 %v4208, %v4176
    %v4215 = vmul.f32 %v4209, %v4181
    %v4216 = vmul.f32 %v4210, %v4186
    %v4217 = vmul.f32 %v4211, %v4191
    %v4218 = vadd.f32 %v4166, %v4212
    %v4219 = vadd.f32 %v4171, %v4213
    %v4220 = vadd.f32 %v4176, %v4214
    %v4221 = vadd.f32 %v4181, %v4215
    %v4222 = vadd.f32 %v4186, %v4216
    %v4223 = vadd.f32 %v4191, %v4217
    %v4224 = vmul.f32 %v4218, 0.7978846
    %v4225 = vmul.f32 %v4219, 0.7978846
    %v4226 = vmul.f32 %v4220, 0.7978846
    %v4227 = vmul.f32 %v4221, 0.7978846
    %v4228 = vmul.f32 %v4222, 0.7978846
    %v4229 = vmul.f32 %v4223, 0.7978846
    %v4230 = vtanh.pop %v4224
    %v4231 = vtanh.pop %v4225
    %v4232 = vtanh.pop %v4226
    %v4233 = vtanh.pop %v4227
    %v4234 = vtanh.pop %v4228
    %v4235 = vtanh.pop %v4229
    %v4236 = vadd.f32 %v4230, 1.0
    %v4237 = vadd.f32 %v4231, 1.0
    %v4238 = vadd.f32 %v4232, 1.0
    %v4239 = vadd.f32 %v4233, 1.0
    %v4240 = vadd.f32 %v4234, 1.0
    %v4241 = vadd.f32 %v4235, 1.0
    %v4242 = vmul.f32 %v4194, %v4236
    %v4243 = vmul.f32 %v4195, %v4237
    %v4244 = vmul.f32 %v4196, %v4238
    %v4245 = vmul.f32 %v4197, %v4239
    %v4246 = vmul.f32 %v4198, %v4240
    %v4247 = vmul.f32 %v4199, %v4241
    %v4248 = vld [vmem:[%s20] sm:$0x1]
    %v4249 = vld [vmem:[%s21] sm:$0x1]
    %v4250 = vsel %vm275, %v4242, 0.0
    %4251 = vadd.xlane.f32.xlu0 %v4250
    %v4252 = vpop.xlane.xlu0 %4251
    %v4253 = vsel %vm275, %v4243, 0.0
    %4254 = vadd.xlane.f32.xlu0 %v4253
    %v4255 = vpop.xlane.xlu0 %4254
    %v4256 = vsel %vm275, %v4244, 0.0
    %4257 = vadd.xlane.f32.xlu0 %v4256
    %v4258 = vpop.xlane.xlu0 %4257
    %v4259 = vsel %vm275, %v4245, 0.0
    %4260 = vadd.xlane.f32.xlu0 %v4259
    %v4261 = vpop.xlane.xlu0 %4260
    %v4262 = vsel %vm275, %v4246, 0.0
    %4263 = vadd.xlane.f32.xlu0 %v4262
    %v4264 = vpop.xlane.xlu0 %4263
    %v4265 = vsel %vm275, %v4247, 0.0
    %4266 = vadd.xlane.f32.xlu0 %v4265
    %v4267 = vpop.xlane.xlu0 %4266
    %v4268 = vmul.f32 %v4252, %v369
    %v4269 = vmul.f32 %v4255, %v369
    %v4270 = vmul.f32 %v4258, %v369
    %v4271 = vmul.f32 %v4261, %v369
    %v4272 = vmul.f32 %v4264, %v369
    %v4273 = vmul.f32 %v4267, %v369
    %v4274 = vsub.f32 %v4242, %v4268
    %v4275 = vsub.f32 %v4243, %v4269
    %v4276 = vsub.f32 %v4244, %v4270
    %v4277 = vsub.f32 %v4245, %v4271
    %v4278 = vsub.f32 %v4246, %v4272
    %v4279 = vsub.f32 %v4247, %v4273
    %v4280 = vmul.f32 %v4274, %v4274
    %v4281 = vmul.f32 %v4275, %v4275
    %v4282 = vmul.f32 %v4276, %v4276
    %v4283 = vmul.f32 %v4277, %v4277
    %v4284 = vmul.f32 %v4278, %v4278
    %v4285 = vmul.f32 %v4279, %v4279
    %v4286 = vsel %vm275, %v4280, 0.0
    %4287 = vadd.xlane.f32.xlu0 %v4286
    %v4288 = vpop.xlane.xlu0 %4287
    %v4289 = vsel %vm275, %v4281, 0.0
    %4290 = vadd.xlane.f32.xlu0 %v4289
    %v4291 = vpop.xlane.xlu0 %4290
    %v4292 = vsel %vm275, %v4282, 0.0
    %4293 = vadd.xlane.f32.xlu0 %v4292
    %v4294 = vpop.xlane.xlu0 %4293
    %v4295 = vsel %vm275, %v4283, 0.0
    %4296 = vadd.xlane.f32.xlu0 %v4295
    %v4297 = vpop.xlane.xlu0 %4296
    %v4298 = vsel %vm275, %v4284, 0.0
    %4299 = vadd.xlane.f32.xlu0 %v4298
    %v4300 = vpop.xlane.xlu0 %4299
    %v4301 = vsel %vm275, %v4285, 0.0
    %4302 = vadd.xlane.f32.xlu0 %v4301
    %v4303 = vpop.xlane.xlu0 %4302
    %v4304 = vmul.f32 %v4288, %v369
    %v4305 = vmul.f32 %v4291, %v369
    %v4306 = vmul.f32 %v4294, %v369
    %v4307 = vmul.f32 %v4297, %v369
    %v4308 = vmul.f32 %v4300, %v369
    %v4309 = vmul.f32 %v4303, %v369
    %v4310 = vadd.f32 %v4304, 1e-12
    %v4311 = vadd.f32 %v4305, 1e-12
    %v4312 = vadd.f32 %v4306, 1e-12
    %v4313 = vadd.f32 %v4307, 1e-12
    %v4314 = vadd.f32 %v4308, 1e-12
    %v4315 = vadd.f32 %v4309, 1e-12
    %v4316 = vrsqrt.pop %v4310
    %v4317 = vrsqrt.pop %v4311
    %v4318 = vrsqrt.pop %v4312
    %v4319 = vrsqrt.pop %v4313
    %v4320 = vrsqrt.pop %v4314
    %v4321 = vrsqrt.pop %v4315
    %v4322 = vmul.f32 %v4274, %v4316
    %v4323 = vmul.f32 %v4275, %v4317
    %v4324 = vmul.f32 %v4276, %v4318
    %v4325 = vmul.f32 %v4277, %v4319
    %v4326 = vmul.f32 %v4278, %v4320
    %v4327 = vmul.f32 %v4279, %v4321
    %v4329 = vlaneseq
    %v4330 = vshrl.u32 %v4329, 7
    %v4331 = vsub.s32 0, %v4330
    %v4332 = vrot.slane %v4248, %v4331
    %v4334 = vmul.f32 %v4322, %v4332
    %v4335 = vmul.f32 %v4323, %v4332
    %v4336 = vmul.f32 %v4324, %v4332
    %v4337 = vmul.f32 %v4325, %v4332
    %v4338 = vmul.f32 %v4326, %v4332
    %v4339 = vmul.f32 %v4327, %v4332
    %v4341 = vlaneseq
    %v4342 = vshrl.u32 %v4341, 7
    %v4343 = vsub.s32 0, %v4342
    %v4344 = vrot.slane %v4249, %v4343
    %v4346 = vadd.f32 %v4334, %v4344
    %v4347 = vadd.f32 %v4335, %v4344
    %v4348 = vadd.f32 %v4336, %v4344
    %v4349 = vadd.f32 %v4337, %v4344
    %v4350 = vadd.f32 %v4338, %v4344
    %v4351 = vadd.f32 %v4339, %v4344
    %v4352 = vld [vmem:[%s22] sm:$0xff]
    %v4353 = vld [vmem:[%s22 + $0x8] sm:$0xff]
    %v4354 = vld [vmem:[%s22 + $0x10] sm:$0xff]
    %v4355 = vld [vmem:[%s22 + $0x18] sm:$0xff]
    %v4356 = vld [vmem:[%s23] sm:$0x1]
    %v4358 = vlaneseq
    %v4359 = vshrl.u32 %v4358, 7
    %v4360 = vsub.s32 0, %v4359
    %v4361 = vrot.slane %v4356, %v4360
    %v4364 = vsel %vm275, %v4346, 0
    %v4367 = vsel %vm275, %v4347, 0
    %v4370 = vsel %vm275, %v4348, 0
    %v4373 = vsel %vm275, %v4349, 0
    %v4376 = vsel %vm275, %v4350, 0
    %v4379 = vsel %vm275, %v4351, 0
    %4381 = vmatprep.subr.mxu0 0.0
    %4382 = vmatpush1.msra.mxu0 %v4352
    %4383 = vmatprep.subr.mxu0 0.0
    %4384 = vmatpush1.msra.mxu0 %v4353
    %4385 = vmatprep.subr.mxu0 0.0
    %4386 = vmatpush1.msra.mxu0 %v4354
    %4387 = vmatprep.subr.mxu0 0.0
    %4388 = vmatpush1.msra.mxu0 %v4355
    %4389 = vmatprep.subr.mxu0 0.0
    %4390 = vmatpush1.msra.mxu0 0.0
    %4391 = vmatprep.subr.mxu0 0.0
    %4392 = vmatpush1.msra.mxu0 0.0
    %4393 = vmatprep.subr.mxu0 0.0
    %4394 = vmatpush1.msra.mxu0 0.0
    %4395 = vmatprep.subr.mxu0 0.0
    %4396 = vmatpush1.msra.mxu0 0.0
    %4397 = vmatprep.subr.mxu0 0.0
    %4398 = vmatpush1.msra.mxu0 0.0
    %4399 = vmatprep.subr.mxu0 0.0
    %4400 = vmatpush1.msra.mxu0 0.0
    %4401 = vmatprep.subr.mxu0 0.0
    %4402 = vmatpush1.msra.mxu0 0.0
    %4403 = vmatprep.subr.mxu0 0.0
    %4404 = vmatpush1.msra.mxu0 0.0
    %4405 = vmatprep.subr.mxu0 0.0
    %4406 = vmatpush1.msra.mxu0 0.0
    %4407 = vmatprep.subr.mxu0 0.0
    %4408 = vmatpush1.msra.mxu0 0.0
    %4409 = vmatprep.subr.mxu0 0.0
    %4410 = vmatpush1.msra.mxu0 0.0
    %4411 = vmatprep.subr.mxu0 0.0
    %4412 = vmatpush1.msra.mxu0 0.0
    %4413 = vmatprep.subr.mxu0 0.0
    %4414 = vmatpush1.msra.mxu0 0.0
    %4415 = vmatprep.subr.mxu0 0.0
    %4416 = vmatpush1.msra.mxu0 0.0
    %4417 = vmatprep.subr.mxu0 0.0
    %4418 = vmatpush1.msra.mxu0 0.0
    %4419 = vmatprep.subr.mxu0 0.0
    %4420 = vmatpush1.msra.mxu0 0.0
    %4421 = vmatprep.subr.mxu0 0.0
    %4422 = vmatpush1.msra.mxu0 0.0
    %4423 = vmatprep.subr.mxu0 0.0
    %4424 = vmatpush1.msra.mxu0 0.0
    %4425 = vmatprep.subr.mxu0 0.0
    %4426 = vmatpush1.msra.mxu0 0.0
    %4427 = vmatprep.subr.mxu0 0.0
    %4428 = vmatpush1.msra.mxu0 0.0
    %4429 = vmatprep.subr.mxu0 0.0
    %4430 = vmatpush1.msra.mxu0 0.0
    %4431 = vmatprep.subr.mxu0 0.0
    %4432 = vmatpush1.msra.mxu0 0.0
    %4433 = vmatprep.subr.mxu0 0.0
    %4434 = vmatpush1.msra.mxu0 0.0
    %4435 = vmatprep.subr.mxu0 0.0
    %4436 = vmatpush1.msra.mxu0 0.0
    %4437 = vmatprep.subr.mxu0 0.0
    %4438 = vmatpush1.msra.mxu0 0.0
    %4439 = vmatprep.subr.mxu0 0.0
    %4440 = vmatpush1.msra.mxu0 0.0
    %4441 = vmatprep.subr.mxu0 0.0
    %4442 = vmatpush1.msra.mxu0 0.0
    %4443 = vmatprep.subr.mxu0 0.0
    %4444 = vmatpush1.msra.mxu0 0.0
    %4445 = vmatprep.mubr.f32.mxu0 0.0
    %4446 = vmatmul.mubr.f32.gmra.mrb[0].mxu0 %v4364
    %v4447 = vpop.f32.mrb[0].mxu0
    %v4448 = vadd.f32 %v4361, %v4447
    %v4449 = vpop.f32.mrb[0].mxu0
    %4450 = vmatprep.mubr.f32.mxu0 0.0
    %4451 = vmatmul.mubr.f32.gmra.mrb[0].mxu0 %v4367
    %v4452 = vpop.f32.mrb[0].mxu0
    %v4453 = vadd.f32 %v4361, %v4452
    %v4454 = vpop.f32.mrb[0].mxu0
    %4455 = vmatprep.mubr.f32.mxu0 0.0
    %4456 = vmatmul.mubr.f32.gmra.mrb[0].mxu0 %v4370
    %v4457 = vpop.f32.mrb[0].mxu0
    %v4458 = vadd.f32 %v4361, %v4457
    %v4459 = vpop.f32.mrb[0].mxu0
    %4460 = vmatprep.mubr.f32.mxu0 0.0
    %4461 = vmatmul.mubr.f32.gmra.mrb[0].mxu0 %v4373
    %v4462 = vpop.f32.mrb[0].mxu0
    %v4463 = vadd.f32 %v4361, %v4462
    %v4464 = vpop.f32.mrb[0].mxu0
    %4465 = vmatprep.mubr.f32.mxu0 0.0
    %4466 = vmatmul.mubr.f32.gmra.mrb[0].mxu0 %v4376
    %v4467 = vpop.f32.mrb[0].mxu0
    %v4468 = vadd.f32 %v4361, %v4467
    %v4469 = vpop.f32.mrb[0].mxu0
    %4470 = vmatprep.mubr.f32.mxu0 0.0
    %4471 = vmatmul.mubr.f32.gmra.mrb[0].mxu0 %v4379
    %v4472 = vpop.f32.mrb[0].mxu0
    %v4473 = vadd.f32 %v4361, %v4472
    %v4474 = vpop.f32.mrb[0].mxu0
    %4475 = vdwg.mxu0
    %4476 = vst [vmem:[#allocation25] sm:$0xff] %v4448
    %4477 = vst [vmem:[#allocation25 + $0x8] sm:$0xff] %v4453
    %4478 = vst [vmem:[#allocation25 + $0x10] sm:$0xff] %v4458
    %4479 = vst [vmem:[#allocation25 + $0x18] sm:$0xff] %v4463
    %4480 = vst [vmem:[#allocation25 + $0x20] sm:$0xff] %v4468
    %4481 = vst [vmem:[#allocation25 + $0x28] sm:$0xff] %v4473
    // Predicated region
    $region154: #{tpu_custom_call.1} parent=1 // pred_check
      _
    $region155: #{tpu_custom_call.1} parent=1 // pred_check_branch
      %4483 = sbr.rel (0) target = $region157
    $region156: #{tpu_custom_call.1} parent=1 // pred_region
      %s4485 = ssub.s32 768, 768
      %4486 = vsyncadd [#allocation4], %s4485
      %s4487 = sshll.u32 [#allocation25], 4
      %s4488 = int_to_ptr.vmem [resolvable:$true] %s4487
      %4493 = dma.vmem_to_hbm [thread:$0]  %s4488, 768, %s24, [#allocation4], 128, 128, 8
    $region157: #{tpu_custom_call.1} parent=1 // pred_fallthru
      _
    // Predicated region
    $region158: #{tpu_custom_call.1} parent=1 // pred_check
      _
    $region159: #{tpu_custom_call.1} parent=1 // pred_check_branch
      %4495 = sbr.rel (0) target = $region161
    $region160: #{tpu_custom_call.1} parent=1 // pred_region
      %4496 = dma.done [#allocation4], 768
    $region161: #{tpu_custom_call.1} parent=1 // pred_fallthru
      _
    %4497 = vsyncpa [#allocation3], 1
    %4498 = vsyncpa [#allocation6], 1
    %4499 = vsyncpa [#allocation9], 1
    %4500 = vsyncpa [#allocation12], 1
    %4501 = vsyncpa [#allocation15], 1
    %4502 = vsyncpa [#allocation18], 1
    %4503 = vsyncpa [#allocation21], 1
    %4504 = vsyncpa [#allocation24], 1
    %4505 = vsyncpa [#allocation4], 1

</llo_original>
